<compile_context>
chip_gen: v7x
topology: tpu7x:2x2x1
jax: 0.10.0
libtpu: 0.0.40
codegen_flags: <defaults>
</compile_context>

<pallas_src>
import functools

import numpy as np
import jax
import jax.numpy as jnp
from jax import lax
from jax.experimental import pallas as pl
from jax.experimental.pallas import tpu as pltpu

EPS_LN = 1e-5
EPS_INTERP = 1e-8
BIG_D = 1e30          # "infinity" for distances (finite -> no inf/NaN paths)
BIG_I = 1e18          # "infinity" for the index tie-break reduction
LANES = 128
VMEM_LIMIT = 40 * 1024 * 1024   # fits v7x (64 MiB/TC); plenty on v5e/v6e


def _round_up(x, m):
    return (x + m - 1) // m * m


def _f32_dot(a, b):
    """f32-accurate matmul built from three bf16 MXU passes.

    out = a_hi@b_hi + a_hi@b_lo + a_lo@b_hi  (lo*lo term ~2^-18, dropped).
    This makes the result independent of whether the backend contracts f32
    operands at bf16 (DEFAULT) or fp32 precision — the precision mismatch with
    the reference was the main source of the previous 7e-3 error.  The 3x MXU
    cost is negligible here: the MXU is idle in phase 0 and phase 1 is gated.
    """
    a_hi = a.astype(jnp.bfloat16)
    a_lo = (a - a_hi.astype(jnp.float32)).astype(jnp.bfloat16)
    b_hi = b.astype(jnp.bfloat16)
    b_lo = (b - b_hi.astype(jnp.float32)).astype(jnp.bfloat16)
    out = jnp.dot(a_hi, b_hi, preferred_element_type=jnp.float32)
    out = out + jnp.dot(a_hi, b_lo, preferred_element_type=jnp.float32)
    out = out + jnp.dot(a_lo, b_hi, preferred_element_type=jnp.float32)
    return out


def _layer_norm(x, gamma, beta):
    mean = jnp.mean(x, axis=-1, keepdims=True)
    xc = x - mean
    var = jnp.mean(xc * xc, axis=-1, keepdims=True)       # biased, like torch
    return xc * lax.rsqrt(var + EPS_LN) * gamma + beta


# ---------------------------------------------------------------------------
# Fused UpsampleBlock kernel.
#
# Grid = (up_tiles, 2 * n_chunks).  For a fixed up tile i:
#   phase 0 (c in [0, n_chunks)): stream (3, nc) source-coordinate chunks,
#     compute squared distances on the VPU and keep an exact online top-k of
#     (distance, global index) in a (tm, 128) scratch pair.
#   c == n_chunks: fold the 1/(d2+eps) normalization into the stored weights
#     (exact divide), once per tile.
#   phase 1 (c in [n_chunks, 2*n_chunks)): per raw (nc, Cin) feature chunk,
#     IF the chunk holds any selected neighbour: LayerNorm+Linear the chunk
#     (fused coarse branch) and accumulate ONE normalization-folded gather
#     matmul; otherwise skip everything.
#   last step: fused up-branch LayerNorm+Linear + residual, lane-dense store.
# ---------------------------------------------------------------------------
def _upsample_kernel(up_xyz_ref, src_xyz_t_ref, src_feat_ref, up_feat_ref,
                     g_ref, b_ref, w_ref, lb_ref,
                     gup_ref, bup_ref, wup_ref, blup_ref, eye_ref,
                     o_ref, sd_ref, si_ref, acc_ref, flag_ref, *, k):
    c = pl.program_id(1)
    n_chunks = pl.num_programs(1) // 2
    tm = up_xyz_ref.shape[0]
    nc = src_feat_ref.shape[0]

    # ---- once per up tile: reset running top-k state + accumulator ----
    @pl.when(c == 0)
    def _init():
        lane = lax.broadcasted_iota(jnp.int32, (tm, LANES), 1)
        sd_ref[...] = jnp.full((tm, LANES), BIG_D, jnp.float32)
        si_ref[...] = -(lane.astype(jnp.float32) + 1.0)    # distinct sentinels
        acc_ref[...] = jnp.zeros_like(acc_ref)

    # ---- phase 0: VPU distances + exact online top-k (no staging slab) ----
    @pl.when(c < n_chunks)
    def _select():
        u = up_xyz_ref[...].astype(jnp.float32)             # (tm, 3)
        xt = src_xyz_t_ref[...].astype(jnp.float32)         # (3, nc)
        d2 = jnp.zeros((tm, nc), jnp.float32)
        for a in range(3):                                  # VPU, no K=3 MXU op
            diff = u[:, a:a + 1] - xt[a:a + 1, :]
            d2 = d2 + diff * diff
        gcols = (lax.broadcasted_iota(jnp.int32, (tm, nc), 1)
                 + c * nc).astype(jnp.float32)              # exact for n < 2^24

        # (a) k best inside this chunk (lowest-index tie break).
        sel_d, sel_i = [], []
        dwork = d2
        for _ in range(k):                                  # k tiny + static
            dmin = jnp.min(dwork, axis=-1, keepdims=True)
            imin = jnp.min(jnp.where(dwork <= dmin, gcols, BIG_I),
                           axis=-1, keepdims=True)
            dwork = jnp.where(gcols == imin, BIG_D, dwork)  # drop the winner
            sel_d.append(dmin)
            sel_i.append(imin)

        # (b) merge chunk winners with the stored winners over a narrow
        #     (tm, 128) candidate slab (stored state sits in lanes [0,k)).
        lane = lax.broadcasted_iota(jnp.int32, (tm, LANES), 1)
        cand_d = sd_ref[...]
        cand_i = si_ref[...]
        for j in range(k):
            cand_d = jnp.where(lane == k + j, sel_d[j], cand_d)
            cand_i = jnp.where(lane == k + j, sel_i[j], cand_i)
        new_d = jnp.full((tm, LANES), BIG_D, jnp.float32)
        new_i = -(lane.astype(jnp.float32) + 1.0)
        for j in range(k):
            dmin = jnp.min(cand_d, axis=-1, keepdims=True)
            imin = jnp.min(jnp.where(cand_d <= dmin, cand_i, BIG_I),
                           axis=-1, keepdims=True)
            cand_d = jnp.where(cand_i == imin, BIG_D, cand_d)
            new_d = jnp.where(lane == j, dmin, new_d)
            new_i = jnp.where(lane == j, imin, new_i)
        sd_ref[...] = new_d
        si_ref[...] = new_i

    # ---- once per tile: fold the normalization into the stored weights ----
    @pl.when(c == n_chunks)
    def _weights():
        lane = lax.broadcasted_iota(jnp.int32, (tm, LANES), 1)
        d = sd_ref[...]
        inv = jnp.where(lane < k, 1.0 / (d + EPS_INTERP), 0.0)
        sd_ref[...] = inv / jnp.sum(inv, axis=-1, keepdims=True)   # exact divide

    # ---- phase 1: gated, normalization-folded gather matmul per chunk ----
    @pl.when(c >= n_chunks)
    def _gather():
        lo_f = ((c - n_chunks) * nc).astype(jnp.float32)
        idxs = si_ref[...]                                   # (tm, 128)
        hit = jnp.where((idxs >= lo_f) & (idxs < lo_f + nc), 1.0, 0.0)
        hit = jnp.max(hit, axis=-1, keepdims=True)           # (tm, 1)
        flag_ref[...] = jnp.max(hit, axis=0, keepdims=True)  # (1, 1)

        @pl.when(flag_ref[0, 0] > 0.5)                       # skip no-hit chunks
        def _do():
            # fused coarse branch: LayerNorm + Linear on the raw chunk.
            normed = _layer_norm(src_feat_ref[...].astype(jnp.float32),
                                 g_ref[...], b_ref[...])
            feats = _f32_dot(normed, w_ref[...]) + lb_ref[...]      # (nc, Cout)

            wsel = sd_ref[:, :k]                             # normalized weights
            isel = si_ref[:, :k]                             # global indices
            gcols = lax.broadcasted_iota(jnp.int32, (tm, nc), 1
                                         ).astype(jnp.float32) + lo_f
            w_chunk = jnp.zeros((tm, nc), jnp.float32)
            for j in range(k):
                w_chunk = w_chunk + jnp.where(gcols == isel[:, j:j + 1],
                                              wsel[:, j:j + 1], 0.0)
            acc_ref[...] += _f32_dot(w_chunk, feats)

    # ---- epilogue: up-branch LN + Linear + residual, lane-dense store ----
    @pl.when(c == pl.num_programs(1) - 1)
    def _finalize():
        normed = _layer_norm(up_feat_ref[...].astype(jnp.float32),
                             gup_ref[...], bup_ref[...])
        up_t = _f32_dot(normed, wup_ref[...]) + blup_ref[...]        # (tm, 128)
        # inject the (tm, Cout) accumulator into lanes [0,Cout) via [I|0].
        o_ref[...] = (up_t + _f32_dot(acc_ref[...], eye_ref[...])
                      ).astype(o_ref.dtype)


def upsample_block(x_feat, x_xyz, up_feat, up_xyz, p, *, k=3,
                   tile_m=512, chunk_n=1024):
    """UpsampleBlock forward.  x_*: coarse cloud (N, Cin)/(N,3); up_*: dense
    cloud (M, Cout)/(M,3).  tile_m/chunk_n can be raised on v5e/v6e (128 MiB
    VMEM); defaults fit v7x (64 MiB)."""
    m, cout = up_feat.shape
    n, cin = x_feat.shape

    # --- source axis: pad to whole lane-aligned chunks; padded points sit far
    #     away (never selected) and their features are irrelevant (weight 0).
    nc = min(chunk_n, _round_up(n, 128))
    n_pad = _round_up(n, nc)
    assert n_pad < (1 << 24), "f32-carried indices require n < 2^24"
    if n_pad != n:
        x_xyz = jnp.pad(x_xyz, ((0, n_pad - n), (0, 0)), constant_values=1e6)
        x_feat = jnp.pad(x_feat, ((0, n_pad - n), (0, 0)))
    src_xyz_t = x_xyz.T                                      # (3, n_pad)
    n_chunks = n_pad // nc

    # --- up axis: >=2 row tiles (feed both v7x TensorCores) with minimal
    #     padding (at most ~8*n_tiles wasted rows).
    n_tiles = max(2, -(-m // tile_m)) if m > 8 else 1
    tm = _round_up(-(-m // n_tiles), 8)
    m_pad = n_tiles * tm
    if m_pad != m:
        up_xyz = jnp.pad(up_xyz, ((0, m_pad - m), (0, 0)))
        up_feat = jnp.pad(up_feat, ((0, m_pad - m), (0, 0)))

    # --- lane-dense output: pad up-branch weights/bias to 128 lanes; the
    #     accumulator is injected through an [I | 0] matmul in the epilogue.
    wup_pad = jnp.zeros((cout, LANES), jnp.float32).at[:, :cout].set(p["linup_w"])
    bup_pad = jnp.zeros((1, LANES), jnp.float32).at[:, :cout].set(p["linup_b"])
    eye_pad = jnp.zeros((cout, LANES), jnp.float32).at[:, :cout].set(
        jnp.eye(cout, dtype=jnp.float32))

    grid = (m_pad // tm, 2 * n_chunks)
    kern = functools.partial(_upsample_kernel, k=k)
    out = pl.pallas_call(
        kern,
        out_shape=jax.ShapeDtypeStruct((m_pad, LANES), jnp.float32),
        grid_spec=pltpu.PrefetchScalarGridSpec(
            num_scalar_prefetch=0,
            grid=grid,
            in_specs=[
                pl.BlockSpec((tm, 3), lambda i, c: (i, 0)),
                # coords: walked in phase 0, then parked (no re-DMA)
                pl.BlockSpec((3, nc),
                             lambda i, c: (0, jnp.minimum(c, n_chunks - 1))),
                # raw features: parked in phase 0, walked in phase 1
                pl.BlockSpec((nc, cin),
                             lambda i, c: (jnp.maximum(c - n_chunks, 0), 0)),
                pl.BlockSpec((tm, cout), lambda i, c: (i, 0)),
                pl.BlockSpec((1, cin), lambda i, c: (0, 0)),      # norm gamma
                pl.BlockSpec((1, cin), lambda i, c: (0, 0)),      # norm beta
                pl.BlockSpec((cin, cout), lambda i, c: (0, 0)),   # lin W
                pl.BlockSpec((1, cout), lambda i, c: (0, 0)),     # lin b
                pl.BlockSpec((1, cout), lambda i, c: (0, 0)),     # norm_up gamma
                pl.BlockSpec((1, cout), lambda i, c: (0, 0)),     # norm_up beta
                pl.BlockSpec((cout, LANES), lambda i, c: (0, 0)), # lin_up W (pad)
                pl.BlockSpec((1, LANES), lambda i, c: (0, 0)),    # lin_up b (pad)
                pl.BlockSpec((cout, LANES), lambda i, c: (0, 0)), # [I | 0]
            ],
            out_specs=pl.BlockSpec((tm, LANES), lambda i, c: (i, 0)),
            scratch_shapes=[
                pltpu.VMEM((tm, LANES), jnp.float32),   # top-k dists -> weights
                pltpu.VMEM((tm, LANES), jnp.float32),   # top-k global indices
                pltpu.VMEM((tm, cout), jnp.float32),    # interpolation acc
                pltpu.VMEM((1, 1), jnp.float32),        # per-chunk hit flag
            ],
        ),
        compiler_params=pltpu.CompilerParams(
            dimension_semantics=("parallel", "arbitrary"),
            vmem_limit_bytes=VMEM_LIMIT),
    )(up_xyz, src_xyz_t, x_feat, up_feat,
      p["norm_gamma"], p["norm_beta"], p["lin_w"], p["lin_b"],
      p["normup_gamma"], p["normup_beta"], wup_pad, bup_pad, eye_pad)
    return out[:m, :cout]


# ---------------------------------------------------------------------------
# float64 numpy reference (unambiguous ground truth; no TPU matmul-precision
# ambiguity on the reference side).
# ---------------------------------------------------------------------------
def _ref_forward_np(x_feat, x_xyz, up_feat, up_xyz, p, k):
    f64 = lambda a: np.asarray(a, dtype=np.float64)

    def ln(x, g, b):
        mu = x.mean(-1, keepdims=True)
        var = ((x - mu) ** 2).mean(-1, keepdims=True)
        return (x - mu) / np.sqrt(var + EPS_LN) * g + b

    xf = ln(f64(x_feat), f64(p["norm_gamma"]), f64(p["norm_beta"])) \
        @ f64(p["lin_w"]) + f64(p["lin_b"])
    uf = ln(f64(up_feat), f64(p["normup_gamma"]), f64(p["normup_beta"])) \
        @ f64(p["linup_w"]) + f64(p["linup_b"])
    d2 = ((f64(up_xyz)[:, None, :] - f64(x_xyz)[None, :, :]) ** 2).sum(-1)
    idx = np.argsort(d2, axis=1, kind="stable")[:, :k]        # lowest-index ties
    dk = np.take_along_axis(d2, idx, axis=1)
    w = 1.0 / (dk + EPS_INTERP)
    w = w / w.sum(-1, keepdims=True)
    interp = np.einsum("mk,mkc->mc", w, xf[idx])
    return interp + uf


if __name__ == "__main__":
    N, M = 64, 256            # coarse points, upsampled points
    CIN, COUT = 32, 16
    K = 3

    key = jax.random.PRNGKey(0)
    ks = jax.random.split(key, 8)
    x_feat = jax.random.normal(ks[0], (N, CIN), jnp.float32)
    x_xyz = jax.random.normal(ks[1], (N, 3), jnp.float32)
    up_feat = jax.random.normal(ks[2], (M, COUT), jnp.float32)
    up_xyz = jax.random.normal(ks[3], (M, 3), jnp.float32)

    params = {
        "norm_gamma": jnp.ones((1, CIN), jnp.float32),
        "norm_beta": jnp.zeros((1, CIN), jnp.float32),
        "lin_w": jax.random.normal(ks[4], (CIN, COUT), jnp.float32) / jnp.sqrt(CIN),
        "lin_b": jax.random.normal(ks[5], (1, COUT), jnp.float32) * 0.01,
        "normup_gamma": jnp.ones((1, COUT), jnp.float32),
        "normup_beta": jnp.zeros((1, COUT), jnp.float32),
        "linup_w": jax.random.normal(ks[6], (COUT, COUT), jnp.float32) / jnp.sqrt(COUT),
        "linup_b": jax.random.normal(ks[7], (1, COUT), jnp.float32) * 0.01,
    }

    out = upsample_block(x_feat, x_xyz, up_feat, up_xyz, params, k=K)
    out = jax.block_until_ready(out)

    ref = _ref_forward_np(x_feat, x_xyz, up_feat, up_xyz, params, K)
    assert out.shape == (M, COUT)
    err = float(np.max(np.abs(np.asarray(out, dtype=np.float64) - ref)))
    assert err < 1e-3, f"max abs err {err}"
    print("KERNEL_OK")
</pallas_src>

<mosaic_0001>
module attributes {stable_mosaic.version = 11 : i64} {
  func.func @_upsample_kernel(%arg0: i32, %arg1: i32, %arg2: memref<128x3xf32, #tpu.memory_space<vmem>>, %arg3: memref<3x128xf32, #tpu.memory_space<vmem>>, %arg4: memref<128x32xf32, #tpu.memory_space<vmem>>, %arg5: memref<128x16xf32, #tpu.memory_space<vmem>>, %arg6: memref<1x32xf32, #tpu.memory_space<vmem>>, %arg7: memref<1x32xf32, #tpu.memory_space<vmem>>, %arg8: memref<32x16xf32, #tpu.memory_space<vmem>>, %arg9: memref<1x16xf32, #tpu.memory_space<vmem>>, %arg10: memref<1x16xf32, #tpu.memory_space<vmem>>, %arg11: memref<1x16xf32, #tpu.memory_space<vmem>>, %arg12: memref<16x128xf32, #tpu.memory_space<vmem>>, %arg13: memref<1x128xf32, #tpu.memory_space<vmem>>, %arg14: memref<16x128xf32, #tpu.memory_space<vmem>>, %arg15: memref<128x128xf32, #tpu.memory_space<vmem>>, %arg16: memref<128x128xf32, #tpu.memory_space<vmem>>, %arg17: memref<128x128xf32, #tpu.memory_space<vmem>>, %arg18: memref<128x16xf32, #tpu.memory_space<vmem>>, %arg19: memref<1x1xf32, #tpu.memory_space<vmem>>) attributes {dimension_semantics = [#tpu.dimension_semantics<parallel>, #tpu.dimension_semantics<arbitrary>], iteration_bounds = array<i64: 2, 2>, scalar_prefetch = 0 : i64, scratch_operands = 4 : i64, tpu.core_type = #tpu.core_type<tc>, window_params = [{transform_indices = @transform_0, window_bounds = array<i64: 128, 3>}, {transform_indices = @transform_1, window_bounds = array<i64: 3, 128>}, {transform_indices = @transform_2, window_bounds = array<i64: 128, 32>}, {transform_indices = @transform_3, window_bounds = array<i64: 128, 16>}, {pipeline_mode = #tpu.pipeline_mode<synchronous>, transform_indices = @transform_4, window_bounds = array<i64: 1, 32>}, {pipeline_mode = #tpu.pipeline_mode<synchronous>, transform_indices = @transform_5, window_bounds = array<i64: 1, 32>}, {pipeline_mode = #tpu.pipeline_mode<synchronous>, transform_indices = @transform_6, window_bounds = array<i64: 32, 16>}, {pipeline_mode = #tpu.pipeline_mode<synchronous>, transform_indices = @transform_7, window_bounds = array<i64: 1, 16>}, {pipeline_mode = #tpu.pipeline_mode<synchronous>, transform_indices = @transform_8, window_bounds = array<i64: 1, 16>}, {pipeline_mode = #tpu.pipeline_mode<synchronous>, transform_indices = @transform_9, window_bounds = array<i64: 1, 16>}, {pipeline_mode = #tpu.pipeline_mode<synchronous>, transform_indices = @transform_10, window_bounds = array<i64: 16, 128>}, {pipeline_mode = #tpu.pipeline_mode<synchronous>, transform_indices = @transform_11, window_bounds = array<i64: 1, 128>}, {pipeline_mode = #tpu.pipeline_mode<synchronous>, transform_indices = @transform_12, window_bounds = array<i64: 16, 128>}, {transform_indices = @transform_13, window_bounds = array<i64: 128, 128>}]} {
    %c0_i32 = arith.constant 0 : i32
    %0 = arith.cmpi eq, %arg1, %c0_i32 : i32
    %1 = arith.extui %0 : i1 to i32
    %c0_i32_0 = arith.constant 0 : i32
    %2 = arith.cmpi ne, %1, %c0_i32_0 : i32
    scf.if %2 {
      %15 = tpu.iota {dimensions = array<i32: 1>} : vector<128x128xi32>
      %cst = arith.constant 1.000000e+30 : f32
      %16 = vector.broadcast %cst : f32 to vector<128x128xf32>
      %c0 = arith.constant 0 : index
      %c0_8 = arith.constant 0 : index
      %17 = vector.load %arg16[%c0, %c0_8] : memref<128x128xf32, #tpu.memory_space<vmem>>, vector<128x128xf32>
      tpu.vector_store %arg16[%c0, %c0_8], %16 {strides = array<i32>} : memref<128x128xf32, #tpu.memory_space<vmem>>, vector<128x128xf32>,
      %18 = arith.sitofp %15 : vector<128x128xi32> to vector<128x128xf32>
      %cst_9 = arith.constant 1.000000e+00 : f32
      %19 = vector.broadcast %cst_9 : f32 to vector<128x128xf32>
      %20 = arith.addf %18, %19 : vector<128x128xf32>
      %cst_10 = arith.constant 0.000000e+00 : f32
      %21 = vector.broadcast %cst_10 : f32 to vector<128x128xf32>
      %22 = arith.subf %21, %20 : vector<128x128xf32>
      %c0_11 = arith.constant 0 : index
      %c0_12 = arith.constant 0 : index
      %23 = vector.load %arg17[%c0_11, %c0_12] : memref<128x128xf32, #tpu.memory_space<vmem>>, vector<128x128xf32>
      tpu.vector_store %arg17[%c0_11, %c0_12], %22 {strides = array<i32>} : memref<128x128xf32, #tpu.memory_space<vmem>>, vector<128x128xf32>,
      %cst_13 = arith.constant 0.000000e+00 : f32
      %24 = vector.broadcast %cst_13 : f32 to vector<128x16xf32>
      %c0_14 = arith.constant 0 : index
      %c0_15 = arith.constant 0 : index
      %25 = vector.load %arg18[%c0_14, %c0_15] : memref<128x16xf32, #tpu.memory_space<vmem>>, vector<128x16xf32>
      tpu.vector_store %arg18[%c0_14, %c0_15], %24 {strides = array<i32>} : memref<128x16xf32, #tpu.memory_space<vmem>>, vector<128x16xf32>,
    } else {
    }
    %c1_i32 = arith.constant 1 : i32
    %3 = arith.cmpi slt, %arg1, %c1_i32 : i32
    %4 = arith.extui %3 : i1 to i32
    %c0_i32_1 = arith.constant 0 : i32
    %5 = arith.cmpi ne, %4, %c0_i32_1 : i32
    scf.if %5 {
      %c0 = arith.constant 0 : index
      %c0_8 = arith.constant 0 : index
      %15 = vector.load %arg2[%c0, %c0_8] : memref<128x3xf32, #tpu.memory_space<vmem>>, vector<128x3xf32>
      %c0_9 = arith.constant 0 : index
      %c0_10 = arith.constant 0 : index
      %16 = vector.load %arg3[%c0_9, %c0_10] : memref<3x128xf32, #tpu.memory_space<vmem>>, vector<3x128xf32>
      %cst = arith.constant 0.000000e+00 : f32
      %17 = vector.broadcast %cst : f32 to vector<128x128xf32>
      %18 = vector.extract_strided_slice %15 {offsets = [0, 0], sizes = [128, 1], strides = [1, 1]} : vector<128x3xf32> to vector<128x1xf32>
      %19 = vector.extract_strided_slice %16 {offsets = [0, 0], sizes = [1, 128], strides = [1, 1]} : vector<3x128xf32> to vector<1x128xf32>
      %20 = vector.broadcast %18 : vector<128x1xf32> to vector<128x128xf32>
      %21 = vector.broadcast %19 : vector<1x128xf32> to vector<128x128xf32>
      %22 = arith.subf %20, %21 : vector<128x128xf32>
      %23 = arith.mulf %22, %22 : vector<128x128xf32>
      %24 = arith.addf %17, %23 : vector<128x128xf32>
      %25 = vector.extract_strided_slice %15 {offsets = [0, 1], sizes = [128, 1], strides = [1, 1]} : vector<128x3xf32> to vector<128x1xf32>
      %26 = vector.extract_strided_slice %16 {offsets = [1, 0], sizes = [1, 128], strides = [1, 1]} : vector<3x128xf32> to vector<1x128xf32>
      %27 = vector.broadcast %25 : vector<128x1xf32> to vector<128x128xf32>
      %28 = vector.broadcast %26 : vector<1x128xf32> to vector<128x128xf32>
      %29 = arith.subf %27, %28 : vector<128x128xf32>
      %30 = arith.mulf %29, %29 : vector<128x128xf32>
      %31 = arith.addf %24, %30 : vector<128x128xf32>
      %32 = vector.extract_strided_slice %15 {offsets = [0, 2], sizes = [128, 1], strides = [1, 1]} : vector<128x3xf32> to vector<128x1xf32>
      %33 = vector.extract_strided_slice %16 {offsets = [2, 0], sizes = [1, 128], strides = [1, 1]} : vector<3x128xf32> to vector<1x128xf32>
      %34 = vector.broadcast %32 : vector<128x1xf32> to vector<128x128xf32>
      %35 = vector.broadcast %33 : vector<1x128xf32> to vector<128x128xf32>
      %36 = arith.subf %34, %35 : vector<128x128xf32>
      %37 = arith.mulf %36, %36 : vector<128x128xf32>
      %38 = arith.addf %31, %37 : vector<128x128xf32>
      %39 = tpu.iota {dimensions = array<i32: 1>} : vector<128x128xi32>
      %c128_i32 = arith.constant 128 : i32
      %40 = arith.muli %arg1, %c128_i32 : i32
      %41 = vector.broadcast %40 : i32 to vector<128x128xi32>
      %42 = arith.addi %39, %41 : vector<128x128xi32>
      %43 = arith.sitofp %42 : vector<128x128xi32> to vector<128x128xf32>
      %cst_11 = arith.constant dense<0x7F800000> : vector<128xf32>
      %44 = vector.multi_reduction <minimumf>, %38, %cst_11 [1] : vector<128x128xf32> to vector<128xf32>
      %45 = vector.shape_cast %44 : vector<128xf32> to vector<128x1xf32>
      %46 = vector.broadcast %45 : vector<128x1xf32> to vector<128x128xf32>
      %47 = arith.cmpf ole, %38, %46 : vector<128x128xf32>
      %cst_12 = arith.constant 9.99999984E+17 : f32
      %48 = vector.broadcast %cst_12 : f32 to vector<128x128xf32>
      %49 = arith.select %47, %43, %48 : vector<128x128xi1>, vector<128x128xf32>
      %cst_13 = arith.constant dense<0x7F800000> : vector<128xf32>
      %50 = vector.multi_reduction <minimumf>, %49, %cst_13 [1] : vector<128x128xf32> to vector<128xf32>
      %51 = vector.shape_cast %50 : vector<128xf32> to vector<128x1xf32>
      %52 = vector.broadcast %51 : vector<128x1xf32> to vector<128x128xf32>
      %53 = arith.cmpf oeq, %43, %52 : vector<128x128xf32>
      %cst_14 = arith.constant 1.000000e+30 : f32
      %54 = vector.broadcast %cst_14 : f32 to vector<128x128xf32>
      %55 = arith.select %53, %54, %38 : vector<128x128xi1>, vector<128x128xf32>
      %cst_15 = arith.constant dense<0x7F800000> : vector<128xf32>
      %56 = vector.multi_reduction <minimumf>, %55, %cst_15 [1] : vector<128x128xf32> to vector<128xf32>
      %57 = vector.shape_cast %56 : vector<128xf32> to vector<128x1xf32>
      %58 = vector.broadcast %57 : vector<128x1xf32> to vector<128x128xf32>
      %59 = arith.cmpf ole, %55, %58 : vector<128x128xf32>
      %cst_16 = arith.constant 9.99999984E+17 : f32
      %60 = vector.broadcast %cst_16 : f32 to vector<128x128xf32>
      %61 = arith.select %59, %43, %60 : vector<128x128xi1>, vector<128x128xf32>
      %cst_17 = arith.constant dense<0x7F800000> : vector<128xf32>
      %62 = vector.multi_reduction <minimumf>, %61, %cst_17 [1] : vector<128x128xf32> to vector<128xf32>
      %63 = vector.shape_cast %62 : vector<128xf32> to vector<128x1xf32>
      %64 = vector.broadcast %63 : vector<128x1xf32> to vector<128x128xf32>
      %65 = arith.cmpf oeq, %43, %64 : vector<128x128xf32>
      %cst_18 = arith.constant 1.000000e+30 : f32
      %66 = vector.broadcast %cst_18 : f32 to vector<128x128xf32>
      %67 = arith.select %65, %66, %55 : vector<128x128xi1>, vector<128x128xf32>
      %cst_19 = arith.constant dense<0x7F800000> : vector<128xf32>
      %68 = vector.multi_reduction <minimumf>, %67, %cst_19 [1] : vector<128x128xf32> to vector<128xf32>
      %69 = vector.shape_cast %68 : vector<128xf32> to vector<128x1xf32>
      %70 = vector.broadcast %69 : vector<128x1xf32> to vector<128x128xf32>
      %71 = arith.cmpf ole, %67, %70 : vector<128x128xf32>
      %cst_20 = arith.constant 9.99999984E+17 : f32
      %72 = vector.broadcast %cst_20 : f32 to vector<128x128xf32>
      %73 = arith.select %71, %43, %72 : vector<128x128xi1>, vector<128x128xf32>
      %cst_21 = arith.constant dense<0x7F800000> : vector<128xf32>
      %74 = vector.multi_reduction <minimumf>, %73, %cst_21 [1] : vector<128x128xf32> to vector<128xf32>
      %75 = vector.shape_cast %74 : vector<128xf32> to vector<128x1xf32>
      %76 = tpu.iota {dimensions = array<i32: 1>} : vector<128x128xi32>
      %c0_22 = arith.constant 0 : index
      %c0_23 = arith.constant 0 : index
      %77 = vector.load %arg16[%c0_22, %c0_23] : memref<128x128xf32, #tpu.memory_space<vmem>>, vector<128x128xf32>
      %c0_24 = arith.constant 0 : index
      %c0_25 = arith.constant 0 : index
      %78 = vector.load %arg17[%c0_24, %c0_25] : memref<128x128xf32, #tpu.memory_space<vmem>>, vector<128x128xf32>
      %c3_i32 = arith.constant 3 : i32
      %79 = vector.broadcast %c3_i32 : i32 to vector<128x128xi32>
      %80 = arith.cmpi eq, %76, %79 : vector<128x128xi32>
      %81 = vector.shape_cast %45 : vector<128x1xf32> to vector<128x1xf32>
      %82 = vector.broadcast %81 : vector<128x1xf32> to vector<128x128xf32>
      %83 = arith.select %80, %82, %77 : vector<128x128xi1>, vector<128x128xf32>
      %c3_i32_26 = arith.constant 3 : i32
      %84 = vector.broadcast %c3_i32_26 : i32 to vector<128x128xi32>
      %85 = arith.cmpi eq, %76, %84 : vector<128x128xi32>
      %86 = vector.shape_cast %51 : vector<128x1xf32> to vector<128x1xf32>
      %87 = vector.broadcast %86 : vector<128x1xf32> to vector<128x128xf32>
      %88 = arith.select %85, %87, %78 : vector<128x128xi1>, vector<128x128xf32>
      %c4_i32 = arith.constant 4 : i32
      %89 = vector.broadcast %c4_i32 : i32 to vector<128x128xi32>
      %90 = arith.cmpi eq, %76, %89 : vector<128x128xi32>
      %91 = vector.shape_cast %57 : vector<128x1xf32> to vector<128x1xf32>
      %92 = vector.broadcast %91 : vector<128x1xf32> to vector<128x128xf32>
      %93 = arith.select %90, %92, %83 : vector<128x128xi1>, vector<128x128xf32>
      %c4_i32_27 = arith.constant 4 : i32
      %94 = vector.broadcast %c4_i32_27 : i32 to vector<128x128xi32>
      %95 = arith.cmpi eq, %76, %94 : vector<128x128xi32>
      %96 = vector.shape_cast %63 : vector<128x1xf32> to vector<128x1xf32>
      %97 = vector.broadcast %96 : vector<128x1xf32> to vector<128x128xf32>
      %98 = arith.select %95, %97, %88 : vector<128x128xi1>, vector<128x128xf32>
      %c5_i32 = arith.constant 5 : i32
      %99 = vector.broadcast %c5_i32 : i32 to vector<128x128xi32>
      %100 = arith.cmpi eq, %76, %99 : vector<128x128xi32>
      %101 = vector.shape_cast %69 : vector<128x1xf32> to vector<128x1xf32>
      %102 = vector.broadcast %101 : vector<128x1xf32> to vector<128x128xf32>
      %103 = arith.select %100, %102, %93 : vector<128x128xi1>, vector<128x128xf32>
      %c5_i32_28 = arith.constant 5 : i32
      %104 = vector.broadcast %c5_i32_28 : i32 to vector<128x128xi32>
      %105 = arith.cmpi eq, %76, %104 : vector<128x128xi32>
      %106 = vector.shape_cast %75 : vector<128x1xf32> to vector<128x1xf32>
      %107 = vector.broadcast %106 : vector<128x1xf32> to vector<128x128xf32>
      %108 = arith.select %105, %107, %98 : vector<128x128xi1>, vector<128x128xf32>
      %cst_29 = arith.constant 1.000000e+30 : f32
      %109 = vector.broadcast %cst_29 : f32 to vector<128x128xf32>
      %110 = arith.sitofp %76 : vector<128x128xi32> to vector<128x128xf32>
      %cst_30 = arith.constant 1.000000e+00 : f32
      %111 = vector.broadcast %cst_30 : f32 to vector<128x128xf32>
      %112 = arith.addf %110, %111 : vector<128x128xf32>
      %cst_31 = arith.constant 0.000000e+00 : f32
      %113 = vector.broadcast %cst_31 : f32 to vector<128x128xf32>
      %114 = arith.subf %113, %112 : vector<128x128xf32>
      %cst_32 = arith.constant dense<0x7F800000> : vector<128xf32>
      %115 = vector.multi_reduction <minimumf>, %103, %cst_32 [1] : vector<128x128xf32> to vector<128xf32>
      %116 = vector.shape_cast %115 : vector<128xf32> to vector<128x1xf32>
      %117 = vector.broadcast %116 : vector<128x1xf32> to vector<128x128xf32>
      %118 = arith.cmpf ole, %103, %117 : vector<128x128xf32>
      %cst_33 = arith.constant 9.99999984E+17 : f32
      %119 = vector.broadcast %cst_33 : f32 to vector<128x128xf32>
      %120 = arith.select %118, %108, %119 : vector<128x128xi1>, vector<128x128xf32>
      %cst_34 = arith.constant dense<0x7F800000> : vector<128xf32>
      %121 = vector.multi_reduction <minimumf>, %120, %cst_34 [1] : vector<128x128xf32> to vector<128xf32>
      %122 = vector.shape_cast %121 : vector<128xf32> to vector<128x1xf32>
      %123 = vector.broadcast %122 : vector<128x1xf32> to vector<128x128xf32>
      %124 = arith.cmpf oeq, %108, %123 : vector<128x128xf32>
      %cst_35 = arith.constant 1.000000e+30 : f32
      %125 = vector.broadcast %cst_35 : f32 to vector<128x128xf32>
      %126 = arith.select %124, %125, %103 : vector<128x128xi1>, vector<128x128xf32>
      %c0_i32_36 = arith.constant 0 : i32
      %127 = vector.broadcast %c0_i32_36 : i32 to vector<128x128xi32>
      %128 = arith.cmpi eq, %76, %127 : vector<128x128xi32>
      %129 = vector.shape_cast %116 : vector<128x1xf32> to vector<128x1xf32>
      %130 = vector.broadcast %129 : vector<128x1xf32> to vector<128x128xf32>
      %131 = arith.select %128, %130, %109 : vector<128x128xi1>, vector<128x128xf32>
      %c0_i32_37 = arith.constant 0 : i32
      %132 = vector.broadcast %c0_i32_37 : i32 to vector<128x128xi32>
      %133 = arith.cmpi eq, %76, %132 : vector<128x128xi32>
      %134 = vector.shape_cast %122 : vector<128x1xf32> to vector<128x1xf32>
      %135 = vector.broadcast %134 : vector<128x1xf32> to vector<128x128xf32>
      %136 = arith.select %133, %135, %114 : vector<128x128xi1>, vector<128x128xf32>
      %cst_38 = arith.constant dense<0x7F800000> : vector<128xf32>
      %137 = vector.multi_reduction <minimumf>, %126, %cst_38 [1] : vector<128x128xf32> to vector<128xf32>
      %138 = vector.shape_cast %137 : vector<128xf32> to vector<128x1xf32>
      %139 = vector.broadcast %138 : vector<128x1xf32> to vector<128x128xf32>
      %140 = arith.cmpf ole, %126, %139 : vector<128x128xf32>
      %cst_39 = arith.constant 9.99999984E+17 : f32
      %141 = vector.broadcast %cst_39 : f32 to vector<128x128xf32>
      %142 = arith.select %140, %108, %141 : vector<128x128xi1>, vector<128x128xf32>
      %cst_40 = arith.constant dense<0x7F800000> : vector<128xf32>
      %143 = vector.multi_reduction <minimumf>, %142, %cst_40 [1] : vector<128x128xf32> to vector<128xf32>
      %144 = vector.shape_cast %143 : vector<128xf32> to vector<128x1xf32>
      %145 = vector.broadcast %144 : vector<128x1xf32> to vector<128x128xf32>
      %146 = arith.cmpf oeq, %108, %145 : vector<128x128xf32>
      %cst_41 = arith.constant 1.000000e+30 : f32
      %147 = vector.broadcast %cst_41 : f32 to vector<128x128xf32>
      %148 = arith.select %146, %147, %126 : vector<128x128xi1>, vector<128x128xf32>
      %c1_i32_42 = arith.constant 1 : i32
      %149 = vector.broadcast %c1_i32_42 : i32 to vector<128x128xi32>
      %150 = arith.cmpi eq, %76, %149 : vector<128x128xi32>
      %151 = vector.shape_cast %138 : vector<128x1xf32> to vector<128x1xf32>
      %152 = vector.broadcast %151 : vector<128x1xf32> to vector<128x128xf32>
      %153 = arith.select %150, %152, %131 : vector<128x128xi1>, vector<128x128xf32>
      %c1_i32_43 = arith.constant 1 : i32
      %154 = vector.broadcast %c1_i32_43 : i32 to vector<128x128xi32>
      %155 = arith.cmpi eq, %76, %154 : vector<128x128xi32>
      %156 = vector.shape_cast %144 : vector<128x1xf32> to vector<128x1xf32>
      %157 = vector.broadcast %156 : vector<128x1xf32> to vector<128x128xf32>
      %158 = arith.select %155, %157, %136 : vector<128x128xi1>, vector<128x128xf32>
      %cst_44 = arith.constant dense<0x7F800000> : vector<128xf32>
      %159 = vector.multi_reduction <minimumf>, %148, %cst_44 [1] : vector<128x128xf32> to vector<128xf32>
      %160 = vector.shape_cast %159 : vector<128xf32> to vector<128x1xf32>
      %161 = vector.broadcast %160 : vector<128x1xf32> to vector<128x128xf32>
      %162 = arith.cmpf ole, %148, %161 : vector<128x128xf32>
      %cst_45 = arith.constant 9.99999984E+17 : f32
      %163 = vector.broadcast %cst_45 : f32 to vector<128x128xf32>
      %164 = arith.select %162, %108, %163 : vector<128x128xi1>, vector<128x128xf32>
      %cst_46 = arith.constant dense<0x7F800000> : vector<128xf32>
      %165 = vector.multi_reduction <minimumf>, %164, %cst_46 [1] : vector<128x128xf32> to vector<128xf32>
      %166 = vector.shape_cast %165 : vector<128xf32> to vector<128x1xf32>
      %c2_i32 = arith.constant 2 : i32
      %167 = vector.broadcast %c2_i32 : i32 to vector<128x128xi32>
      %168 = arith.cmpi eq, %76, %167 : vector<128x128xi32>
      %169 = vector.shape_cast %160 : vector<128x1xf32> to vector<128x1xf32>
      %170 = vector.broadcast %169 : vector<128x1xf32> to vector<128x128xf32>
      %171 = arith.select %168, %170, %153 : vector<128x128xi1>, vector<128x128xf32>
      %c2_i32_47 = arith.constant 2 : i32
      %172 = vector.broadcast %c2_i32_47 : i32 to vector<128x128xi32>
      %173 = arith.cmpi eq, %76, %172 : vector<128x128xi32>
      %174 = vector.shape_cast %166 : vector<128x1xf32> to vector<128x1xf32>
      %175 = vector.broadcast %174 : vector<128x1xf32> to vector<128x128xf32>
      %176 = arith.select %173, %175, %158 : vector<128x128xi1>, vector<128x128xf32>
      %c0_48 = arith.constant 0 : index
      %c0_49 = arith.constant 0 : index
      %177 = vector.load %arg16[%c0_48, %c0_49] : memref<128x128xf32, #tpu.memory_space<vmem>>, vector<128x128xf32>
      tpu.vector_store %arg16[%c0_48, %c0_49], %171 {strides = array<i32>} : memref<128x128xf32, #tpu.memory_space<vmem>>, vector<128x128xf32>,
      %c0_50 = arith.constant 0 : index
      %c0_51 = arith.constant 0 : index
      %178 = vector.load %arg17[%c0_50, %c0_51] : memref<128x128xf32, #tpu.memory_space<vmem>>, vector<128x128xf32>
      tpu.vector_store %arg17[%c0_50, %c0_51], %176 {strides = array<i32>} : memref<128x128xf32, #tpu.memory_space<vmem>>, vector<128x128xf32>,
    } else {
    }
    %c1_i32_2 = arith.constant 1 : i32
    %6 = arith.cmpi eq, %arg1, %c1_i32_2 : i32
    %7 = arith.extui %6 : i1 to i32
    %c0_i32_3 = arith.constant 0 : i32
    %8 = arith.cmpi ne, %7, %c0_i32_3 : i32
    scf.if %8 {
      %15 = tpu.iota {dimensions = array<i32: 1>} : vector<128x128xi32>
      %c0 = arith.constant 0 : index
      %c0_8 = arith.constant 0 : index
      %16 = vector.load %arg16[%c0, %c0_8] : memref<128x128xf32, #tpu.memory_space<vmem>>, vector<128x128xf32>
      %c3_i32 = arith.constant 3 : i32
      %17 = vector.broadcast %c3_i32 : i32 to vector<128x128xi32>
      %18 = arith.cmpi slt, %15, %17 : vector<128x128xi32>
      %cst = arith.constant 9.99999993E-9 : f32
      %19 = vector.broadcast %cst : f32 to vector<128x128xf32>
      %20 = arith.addf %16, %19 : vector<128x128xf32>
      %cst_9 = arith.constant 1.000000e+00 : f32
      %21 = vector.broadcast %cst_9 : f32 to vector<128x128xf32>
      %22 = arith.divf %21, %20 : vector<128x128xf32>
      %cst_10 = arith.constant 0.000000e+00 : f32
      %23 = vector.broadcast %cst_10 : f32 to vector<128x128xf32>
      %24 = arith.select %18, %22, %23 : vector<128x128xi1>, vector<128x128xf32>
      %cst_11 = arith.constant dense<0.000000e+00> : vector<128xf32>
      %25 = vector.multi_reduction <add>, %24, %cst_11 [1] : vector<128x128xf32> to vector<128xf32>
      %26 = vector.shape_cast %25 : vector<128xf32> to vector<128x1xf32>
      %27 = vector.broadcast %26 : vector<128x1xf32> to vector<128x128xf32>
      %28 = arith.divf %24, %27 : vector<128x128xf32>
      %c0_12 = arith.constant 0 : index
      %c0_13 = arith.constant 0 : index
      %29 = vector.load %arg16[%c0_12, %c0_13] : memref<128x128xf32, #tpu.memory_space<vmem>>, vector<128x128xf32>
      tpu.vector_store %arg16[%c0_12, %c0_13], %28 {strides = array<i32>} : memref<128x128xf32, #tpu.memory_space<vmem>>, vector<128x128xf32>,
    } else {
    }
    %c1_i32_4 = arith.constant 1 : i32
    %9 = arith.cmpi sge, %arg1, %c1_i32_4 : i32
    %10 = arith.extui %9 : i1 to i32
    %c0_i32_5 = arith.constant 0 : i32
    %11 = arith.cmpi ne, %10, %c0_i32_5 : i32
    scf.if %11 {
      %c1_i32_8 = arith.constant 1 : i32
      %15 = arith.subi %arg1, %c1_i32_8 : i32
      %c128_i32 = arith.constant 128 : i32
      %16 = arith.muli %15, %c128_i32 : i32
      %17 = arith.sitofp %16 : i32 to f32
      %c0 = arith.constant 0 : index
      %c0_9 = arith.constant 0 : index
      %18 = vector.load %arg17[%c0, %c0_9] : memref<128x128xf32, #tpu.memory_space<vmem>>, vector<128x128xf32>
      %19 = vector.broadcast %17 : f32 to vector<128x128xf32>
      %20 = arith.cmpf oge, %18, %19 : vector<128x128xf32>
      %cst = arith.constant 1.280000e+02 : f32
      %21 = arith.addf %17, %cst : f32
      %22 = vector.broadcast %21 : f32 to vector<128x128xf32>
      %23 = arith.cmpf olt, %18, %22 : vector<128x128xf32>
      %24 = arith.andi %20, %23 : vector<128x128xi1>
      %cst_10 = arith.constant 1.000000e+00 : f32
      %cst_11 = arith.constant 0.000000e+00 : f32
      %25 = vector.broadcast %cst_10 : f32 to vector<128x128xf32>
      %26 = vector.broadcast %cst_11 : f32 to vector<128x128xf32>
      %27 = arith.select %24, %25, %26 : vector<128x128xi1>, vector<128x128xf32>
      %cst_12 = arith.constant dense<0xFF800000> : vector<128xf32>
      %28 = vector.multi_reduction <maximumf>, %27, %cst_12 [1] : vector<128x128xf32> to vector<128xf32>
      %29 = vector.shape_cast %28 : vector<128xf32> to vector<128x1xf32>
      %cst_13 = arith.constant dense<0xFF800000> : vector<1xf32>
      %30 = vector.multi_reduction <maximumf>, %29, %cst_13 [0] : vector<128x1xf32> to vector<1xf32>
      %31 = vector.shape_cast %30 : vector<1xf32> to vector<1x1xf32>
      %c0_14 = arith.constant 0 : index
      %c0_15 = arith.constant 0 : index
      %32 = vector.load %arg19[%c0_14, %c0_15] : memref<1x1xf32, #tpu.memory_space<vmem>>, vector<1x1xf32>
      tpu.vector_store %arg19[%c0_14, %c0_15], %31 {strides = array<i32>} : memref<1x1xf32, #tpu.memory_space<vmem>>, vector<1x1xf32>,
      %c0_16 = arith.constant 0 : index
      %c0_17 = arith.constant 0 : index
      %33 = vector.load %arg19[%c0_16, %c0_17] : memref<1x1xf32, #tpu.memory_space<vmem>>, vector<1x1xf32>
      %34 = vector.extract %33[0, 0] : f32 from vector<1x1xf32>
      %cst_18 = arith.constant 5.000000e-01 : f32
      %35 = arith.cmpf ogt, %34, %cst_18 : f32
      %36 = arith.extui %35 : i1 to i32
      %c0_i32_19 = arith.constant 0 : i32
      %37 = arith.cmpi ne, %36, %c0_i32_19 : i32
      scf.if %37 {
        %c0_20 = arith.constant 0 : index
        %c0_21 = arith.constant 0 : index
        %38 = vector.load %arg4[%c0_20, %c0_21] : memref<128x32xf32, #tpu.memory_space<vmem>>, vector<128x32xf32>
        %c0_22 = arith.constant 0 : index
        %c0_23 = arith.constant 0 : index
        %39 = vector.load %arg6[%c0_22, %c0_23] : memref<1x32xf32, #tpu.memory_space<vmem>>, vector<1x32xf32>
        %c0_24 = arith.constant 0 : index
        %c0_25 = arith.constant 0 : index
        %40 = vector.load %arg7[%c0_24, %c0_25] : memref<1x32xf32, #tpu.memory_space<vmem>>, vector<1x32xf32>
        %cst_26 = arith.constant dense<0.000000e+00> : vector<128xf32>
        %41 = vector.multi_reduction <add>, %38, %cst_26 [1] : vector<128x32xf32> to vector<128xf32>
        %42 = vector.shape_cast %41 : vector<128xf32> to vector<128x1xf32>
        %cst_27 = arith.constant 3.200000e+01 : f32
        %43 = vector.broadcast %cst_27 : f32 to vector<128x1xf32>
        %44 = arith.divf %42, %43 : vector<128x1xf32>
        %45 = vector.broadcast %44 : vector<128x1xf32> to vector<128x32xf32>
        %46 = arith.subf %38, %45 : vector<128x32xf32>
        %47 = arith.mulf %46, %46 : vector<128x32xf32>
        %cst_28 = arith.constant dense<0.000000e+00> : vector<128xf32>
        %48 = vector.multi_reduction <add>, %47, %cst_28 [1] : vector<128x32xf32> to vector<128xf32>
        %49 = vector.shape_cast %48 : vector<128xf32> to vector<128x1xf32>
        %cst_29 = arith.constant 3.200000e+01 : f32
        %50 = vector.broadcast %cst_29 : f32 to vector<128x1xf32>
        %51 = arith.divf %49, %50 : vector<128x1xf32>
        %cst_30 = arith.constant 9.99999974E-6 : f32
        %52 = vector.broadcast %cst_30 : f32 to vector<128x1xf32>
        %53 = arith.addf %51, %52 : vector<128x1xf32>
        %54 = math.rsqrt %53 : vector<128x1xf32>
        %55 = vector.broadcast %54 : vector<128x1xf32> to vector<128x32xf32>
        %56 = arith.mulf %46, %55 : vector<128x32xf32>
        %57 = vector.broadcast %39 : vector<1x32xf32> to vector<128x32xf32>
        %58 = arith.mulf %56, %57 : vector<128x32xf32>
        %59 = vector.broadcast %40 : vector<1x32xf32> to vector<128x32xf32>
        %60 = arith.addf %58, %59 : vector<128x32xf32>
        %c0_31 = arith.constant 0 : index
        %c0_32 = arith.constant 0 : index
        %61 = vector.load %arg8[%c0_31, %c0_32] : memref<32x16xf32, #tpu.memory_space<vmem>>, vector<32x16xf32>
        %62 = arith.truncf %60 : vector<128x32xf32> to vector<128x32xbf16>
        %63 = arith.extf %62 : vector<128x32xbf16> to vector<128x32xf32>
        %64 = arith.subf %60, %63 : vector<128x32xf32>
        %65 = arith.truncf %64 : vector<128x32xf32> to vector<128x32xbf16>
        %66 = arith.truncf %61 : vector<32x16xf32> to vector<32x16xbf16>
        %67 = arith.extf %66 : vector<32x16xbf16> to vector<32x16xf32>
        %68 = arith.subf %61, %67 : vector<32x16xf32>
        %69 = arith.truncf %68 : vector<32x16xf32> to vector<32x16xbf16>
        %cst_33 = arith.constant dense<0.000000e+00> : vector<128x16xf32>
        %70 = tpu.matmul %62, %66, %cst_33 {dimension_numbers = #tpu.dot_dimension_numbers<[1], [0], [0], [1], [0, 0, 1, 1], [], []>} : vector<128x32xbf16>, vector<32x16xbf16>, vector<128x16xf32> -> vector<128x16xf32>
        %cst_34 = arith.constant dense<0.000000e+00> : vector<128x16xf32>
        %71 = tpu.matmul %62, %69, %cst_34 {dimension_numbers = #tpu.dot_dimension_numbers<[1], [0], [0], [1], [0, 0, 1, 1], [], []>} : vector<128x32xbf16>, vector<32x16xbf16>, vector<128x16xf32> -> vector<128x16xf32>
        %72 = arith.addf %70, %71 : vector<128x16xf32>
        %cst_35 = arith.constant dense<0.000000e+00> : vector<128x16xf32>
        %73 = tpu.matmul %65, %66, %cst_35 {dimension_numbers = #tpu.dot_dimension_numbers<[1], [0], [0], [1], [0, 0, 1, 1], [], []>} : vector<128x32xbf16>, vector<32x16xbf16>, vector<128x16xf32> -> vector<128x16xf32>
        %74 = arith.addf %72, %73 : vector<128x16xf32>
        %c0_36 = arith.constant 0 : index
        %c0_37 = arith.constant 0 : index
        %75 = vector.load %arg9[%c0_36, %c0_37] : memref<1x16xf32, #tpu.memory_space<vmem>>, vector<1x16xf32>
        %76 = vector.broadcast %75 : vector<1x16xf32> to vector<128x16xf32>
        %77 = arith.addf %74, %76 : vector<128x16xf32>
        %c0_38 = arith.constant 0 : index
        %c0_39 = arith.constant 0 : index
        %78 = vector.load %arg16[%c0_38, %c0_39] : memref<128x128xf32, #tpu.memory_space<vmem>>, vector<128x3xf32>
        %c0_40 = arith.constant 0 : index
        %c0_41 = arith.constant 0 : index
        %79 = vector.load %arg17[%c0_40, %c0_41] : memref<128x128xf32, #tpu.memory_space<vmem>>, vector<128x3xf32>
        %80 = tpu.iota {dimensions = array<i32: 1>} : vector<128x128xi32>
        %81 = arith.sitofp %80 : vector<128x128xi32> to vector<128x128xf32>
        %82 = vector.broadcast %17 : f32 to vector<128x128xf32>
        %83 = arith.addf %81, %82 : vector<128x128xf32>
        %cst_42 = arith.constant 0.000000e+00 : f32
        %84 = vector.broadcast %cst_42 : f32 to vector<128x128xf32>
        %85 = vector.extract_strided_slice %79 {offsets = [0, 0], sizes = [128, 1], strides = [1, 1]} : vector<128x3xf32> to vector<128x1xf32>
        %86 = vector.broadcast %85 : vector<128x1xf32> to vector<128x128xf32>
        %87 = arith.cmpf oeq, %83, %86 : vector<128x128xf32>
        %88 = vector.extract_strided_slice %78 {offsets = [0, 0], sizes = [128, 1], strides = [1, 1]} : vector<128x3xf32> to vector<128x1xf32>
        %cst_43 = arith.constant 0.000000e+00 : f32
        %89 = vector.shape_cast %88 : vector<128x1xf32> to vector<128x1xf32>
        %90 = vector.broadcast %89 : vector<128x1xf32> to vector<128x128xf32>
        %91 = vector.broadcast %cst_43 : f32 to vector<128x128xf32>
        %92 = arith.select %87, %90, %91 : vector<128x128xi1>, vector<128x128xf32>
        %93 = arith.addf %84, %92 : vector<128x128xf32>
        %94 = vector.extract_strided_slice %79 {offsets = [0, 1], sizes = [128, 1], strides = [1, 1]} : vector<128x3xf32> to vector<128x1xf32>
        %95 = vector.broadcast %94 : vector<128x1xf32> to vector<128x128xf32>
        %96 = arith.cmpf oeq, %83, %95 : vector<128x128xf32>
        %97 = vector.extract_strided_slice %78 {offsets = [0, 1], sizes = [128, 1], strides = [1, 1]} : vector<128x3xf32> to vector<128x1xf32>
        %cst_44 = arith.constant 0.000000e+00 : f32
        %98 = vector.shape_cast %97 : vector<128x1xf32> to vector<128x1xf32>
        %99 = vector.broadcast %98 : vector<128x1xf32> to vector<128x128xf32>
        %100 = vector.broadcast %cst_44 : f32 to vector<128x128xf32>
        %101 = arith.select %96, %99, %100 : vector<128x128xi1>, vector<128x128xf32>
        %102 = arith.addf %93, %101 : vector<128x128xf32>
        %103 = vector.extract_strided_slice %79 {offsets = [0, 2], sizes = [128, 1], strides = [1, 1]} : vector<128x3xf32> to vector<128x1xf32>
        %104 = vector.broadcast %103 : vector<128x1xf32> to vector<128x128xf32>
        %105 = arith.cmpf oeq, %83, %104 : vector<128x128xf32>
        %106 = vector.extract_strided_slice %78 {offsets = [0, 2], sizes = [128, 1], strides = [1, 1]} : vector<128x3xf32> to vector<128x1xf32>
        %cst_45 = arith.constant 0.000000e+00 : f32
        %107 = vector.shape_cast %106 : vector<128x1xf32> to vector<128x1xf32>
        %108 = vector.broadcast %107 : vector<128x1xf32> to vector<128x128xf32>
        %109 = vector.broadcast %cst_45 : f32 to vector<128x128xf32>
        %110 = arith.select %105, %108, %109 : vector<128x128xi1>, vector<128x128xf32>
        %111 = arith.addf %102, %110 : vector<128x128xf32>
        %c0_46 = arith.constant 0 : index
        %c0_47 = arith.constant 0 : index
        %112 = vector.load %arg18[%c0_46, %c0_47] : memref<128x16xf32, #tpu.memory_space<vmem>>, vector<128x16xf32>
        %113 = arith.truncf %111 : vector<128x128xf32> to vector<128x128xbf16>
        %114 = arith.extf %113 : vector<128x128xbf16> to vector<128x128xf32>
        %115 = arith.subf %111, %114 : vector<128x128xf32>
        %116 = arith.truncf %115 : vector<128x128xf32> to vector<128x128xbf16>
        %117 = arith.truncf %77 : vector<128x16xf32> to vector<128x16xbf16>
        %118 = arith.extf %117 : vector<128x16xbf16> to vector<128x16xf32>
        %119 = arith.subf %77, %118 : vector<128x16xf32>
        %120 = arith.truncf %119 : vector<128x16xf32> to vector<128x16xbf16>
        %cst_48 = arith.constant dense<0.000000e+00> : vector<128x16xf32>
        %121 = tpu.matmul %113, %117, %cst_48 {dimension_numbers = #tpu.dot_dimension_numbers<[1], [0], [0], [1], [0, 0, 1, 1], [], []>} : vector<128x128xbf16>, vector<128x16xbf16>, vector<128x16xf32> -> vector<128x16xf32>
        %cst_49 = arith.constant dense<0.000000e+00> : vector<128x16xf32>
        %122 = tpu.matmul %113, %120, %cst_49 {dimension_numbers = #tpu.dot_dimension_numbers<[1], [0], [0], [1], [0, 0, 1, 1], [], []>} : vector<128x128xbf16>, vector<128x16xbf16>, vector<128x16xf32> -> vector<128x16xf32>
        %123 = arith.addf %121, %122 : vector<128x16xf32>
        %cst_50 = arith.constant dense<0.000000e+00> : vector<128x16xf32>
        %124 = tpu.matmul %116, %117, %cst_50 {dimension_numbers = #tpu.dot_dimension_numbers<[1], [0], [0], [1], [0, 0, 1, 1], [], []>} : vector<128x128xbf16>, vector<128x16xbf16>, vector<128x16xf32> -> vector<128x16xf32>
        %125 = arith.addf %123, %124 : vector<128x16xf32>
        %126 = arith.addf %112, %125 : vector<128x16xf32>
        %c0_51 = arith.constant 0 : index
        %c0_52 = arith.constant 0 : index
        %127 = vector.load %arg18[%c0_51, %c0_52] : memref<128x16xf32, #tpu.memory_space<vmem>>, vector<128x16xf32>
        tpu.vector_store %arg18[%c0_51, %c0_52], %126 {strides = array<i32>} : memref<128x16xf32, #tpu.memory_space<vmem>>, vector<128x16xf32>,
      } else {
      }
    } else {
    }
    %c1_i32_6 = arith.constant 1 : i32
    %12 = arith.cmpi eq, %arg1, %c1_i32_6 : i32
    %13 = arith.extui %12 : i1 to i32
    %c0_i32_7 = arith.constant 0 : i32
    %14 = arith.cmpi ne, %13, %c0_i32_7 : i32
    scf.if %14 {
      %c0 = arith.constant 0 : index
      %c0_8 = arith.constant 0 : index
      %15 = vector.load %arg5[%c0, %c0_8] : memref<128x16xf32, #tpu.memory_space<vmem>>, vector<128x16xf32>
      %c0_9 = arith.constant 0 : index
      %c0_10 = arith.constant 0 : index
      %16 = vector.load %arg10[%c0_9, %c0_10] : memref<1x16xf32, #tpu.memory_space<vmem>>, vector<1x16xf32>
      %c0_11 = arith.constant 0 : index
      %c0_12 = arith.constant 0 : index
      %17 = vector.load %arg11[%c0_11, %c0_12] : memref<1x16xf32, #tpu.memory_space<vmem>>, vector<1x16xf32>
      %cst = arith.constant dense<0.000000e+00> : vector<128xf32>
      %18 = vector.multi_reduction <add>, %15, %cst [1] : vector<128x16xf32> to vector<128xf32>
      %19 = vector.shape_cast %18 : vector<128xf32> to vector<128x1xf32>
      %cst_13 = arith.constant 1.600000e+01 : f32
      %20 = vector.broadcast %cst_13 : f32 to vector<128x1xf32>
      %21 = arith.divf %19, %20 : vector<128x1xf32>
      %22 = vector.broadcast %21 : vector<128x1xf32> to vector<128x16xf32>
      %23 = arith.subf %15, %22 : vector<128x16xf32>
      %24 = arith.mulf %23, %23 : vector<128x16xf32>
      %cst_14 = arith.constant dense<0.000000e+00> : vector<128xf32>
      %25 = vector.multi_reduction <add>, %24, %cst_14 [1] : vector<128x16xf32> to vector<128xf32>
      %26 = vector.shape_cast %25 : vector<128xf32> to vector<128x1xf32>
      %cst_15 = arith.constant 1.600000e+01 : f32
      %27 = vector.broadcast %cst_15 : f32 to vector<128x1xf32>
      %28 = arith.divf %26, %27 : vector<128x1xf32>
      %cst_16 = arith.constant 9.99999974E-6 : f32
      %29 = vector.broadcast %cst_16 : f32 to vector<128x1xf32>
      %30 = arith.addf %28, %29 : vector<128x1xf32>
      %31 = math.rsqrt %30 : vector<128x1xf32>
      %32 = vector.broadcast %31 : vector<128x1xf32> to vector<128x16xf32>
      %33 = arith.mulf %23, %32 : vector<128x16xf32>
      %34 = vector.broadcast %16 : vector<1x16xf32> to vector<128x16xf32>
      %35 = arith.mulf %33, %34 : vector<128x16xf32>
      %36 = vector.broadcast %17 : vector<1x16xf32> to vector<128x16xf32>
      %37 = arith.addf %35, %36 : vector<128x16xf32>
      %c0_17 = arith.constant 0 : index
      %c0_18 = arith.constant 0 : index
      %38 = vector.load %arg12[%c0_17, %c0_18] : memref<16x128xf32, #tpu.memory_space<vmem>>, vector<16x128xf32>
      %39 = arith.truncf %37 : vector<128x16xf32> to vector<128x16xbf16>
      %40 = arith.extf %39 : vector<128x16xbf16> to vector<128x16xf32>
      %41 = arith.subf %37, %40 : vector<128x16xf32>
      %42 = arith.truncf %41 : vector<128x16xf32> to vector<128x16xbf16>
      %43 = arith.truncf %38 : vector<16x128xf32> to vector<16x128xbf16>
      %44 = arith.extf %43 : vector<16x128xbf16> to vector<16x128xf32>
      %45 = arith.subf %38, %44 : vector<16x128xf32>
      %46 = arith.truncf %45 : vector<16x128xf32> to vector<16x128xbf16>
      %cst_19 = arith.constant dense<0.000000e+00> : vector<128x128xf32>
      %47 = tpu.matmul %39, %43, %cst_19 {dimension_numbers = #tpu.dot_dimension_numbers<[1], [0], [0], [1], [0, 0, 1, 1], [], []>} : vector<128x16xbf16>, vector<16x128xbf16>, vector<128x128xf32> -> vector<128x128xf32>
      %cst_20 = arith.constant dense<0.000000e+00> : vector<128x128xf32>
      %48 = tpu.matmul %39, %46, %cst_20 {dimension_numbers = #tpu.dot_dimension_numbers<[1], [0], [0], [1], [0, 0, 1, 1], [], []>} : vector<128x16xbf16>, vector<16x128xbf16>, vector<128x128xf32> -> vector<128x128xf32>
      %49 = arith.addf %47, %48 : vector<128x128xf32>
      %cst_21 = arith.constant dense<0.000000e+00> : vector<128x128xf32>
      %50 = tpu.matmul %42, %43, %cst_21 {dimension_numbers = #tpu.dot_dimension_numbers<[1], [0], [0], [1], [0, 0, 1, 1], [], []>} : vector<128x16xbf16>, vector<16x128xbf16>, vector<128x128xf32> -> vector<128x128xf32>
      %51 = arith.addf %49, %50 : vector<128x128xf32>
      %c0_22 = arith.constant 0 : index
      %c0_23 = arith.constant 0 : index
      %52 = vector.load %arg13[%c0_22, %c0_23] : memref<1x128xf32, #tpu.memory_space<vmem>>, vector<1x128xf32>
      %53 = vector.broadcast %52 : vector<1x128xf32> to vector<128x128xf32>
      %54 = arith.addf %51, %53 : vector<128x128xf32>
      %c0_24 = arith.constant 0 : index
      %c0_25 = arith.constant 0 : index
      %55 = vector.load %arg18[%c0_24, %c0_25] : memref<128x16xf32, #tpu.memory_space<vmem>>, vector<128x16xf32>
      %c0_26 = arith.constant 0 : index
      %c0_27 = arith.constant 0 : index
      %56 = vector.load %arg14[%c0_26, %c0_27] : memref<16x128xf32, #tpu.memory_space<vmem>>, vector<16x128xf32>
      %57 = arith.truncf %55 : vector<128x16xf32> to vector<128x16xbf16>
      %58 = arith.extf %57 : vector<128x16xbf16> to vector<128x16xf32>
      %59 = arith.subf %55, %58 : vector<128x16xf32>
      %60 = arith.truncf %59 : vector<128x16xf32> to vector<128x16xbf16>
      %61 = arith.truncf %56 : vector<16x128xf32> to vector<16x128xbf16>
      %62 = arith.extf %61 : vector<16x128xbf16> to vector<16x128xf32>
      %63 = arith.subf %56, %62 : vector<16x128xf32>
      %64 = arith.truncf %63 : vector<16x128xf32> to vector<16x128xbf16>
      %cst_28 = arith.constant dense<0.000000e+00> : vector<128x128xf32>
      %65 = tpu.matmul %57, %61, %cst_28 {dimension_numbers = #tpu.dot_dimension_numbers<[1], [0], [0], [1], [0, 0, 1, 1], [], []>} : vector<128x16xbf16>, vector<16x128xbf16>, vector<128x128xf32> -> vector<128x128xf32>
      %cst_29 = arith.constant dense<0.000000e+00> : vector<128x128xf32>
      %66 = tpu.matmul %57, %64, %cst_29 {dimension_numbers = #tpu.dot_dimension_numbers<[1], [0], [0], [1], [0, 0, 1, 1], [], []>} : vector<128x16xbf16>, vector<16x128xbf16>, vector<128x128xf32> -> vector<128x128xf32>
      %67 = arith.addf %65, %66 : vector<128x128xf32>
      %cst_30 = arith.constant dense<0.000000e+00> : vector<128x128xf32>
      %68 = tpu.matmul %60, %61, %cst_30 {dimension_numbers = #tpu.dot_dimension_numbers<[1], [0], [0], [1], [0, 0, 1, 1], [], []>} : vector<128x16xbf16>, vector<16x128xbf16>, vector<128x128xf32> -> vector<128x128xf32>
      %69 = arith.addf %67, %68 : vector<128x128xf32>
      %70 = arith.addf %54, %69 : vector<128x128xf32>
      %c0_31 = arith.constant 0 : index
      %c0_32 = arith.constant 0 : index
      %71 = vector.load %arg15[%c0_31, %c0_32] : memref<128x128xf32, #tpu.memory_space<vmem>>, vector<128x128xf32>
      tpu.vector_store %arg15[%c0_31, %c0_32], %70 {strides = array<i32>} : memref<128x128xf32, #tpu.memory_space<vmem>>, vector<128x128xf32>,
    } else {
    }
    return
  }
  func.func @transform_0(%arg0: i32, %arg1: i32) -> (i32, i32) {
    %c0_i32 = arith.constant 0 : i32
    %c0_i32_0 = arith.constant 0 : i32
    return %arg0, %c0_i32 : i32, i32
  }
  func.func @transform_1(%arg0: i32, %arg1: i32) -> (i32, i32) {
    %c0_i32 = arith.constant 0 : i32
    %0 = arith.minsi %arg1, %c0_i32 : i32
    %c0_i32_0 = arith.constant 0 : i32
    %c0_i32_1 = arith.constant 0 : i32
    return %c0_i32_0, %0 : i32, i32
  }
  func.func @transform_2(%arg0: i32, %arg1: i32) -> (i32, i32) {
    %c1_i32 = arith.constant 1 : i32
    %0 = arith.subi %arg1, %c1_i32 : i32
    %c0_i32 = arith.constant 0 : i32
    %1 = arith.maxsi %0, %c0_i32 : i32
    %c0_i32_0 = arith.constant 0 : i32
    %c0_i32_1 = arith.constant 0 : i32
    return %1, %c0_i32_0 : i32, i32
  }
  func.func @transform_3(%arg0: i32, %arg1: i32) -> (i32, i32) {
    %c0_i32 = arith.constant 0 : i32
    %c0_i32_0 = arith.constant 0 : i32
    return %arg0, %c0_i32 : i32, i32
  }
  func.func @transform_4(%arg0: i32, %arg1: i32) -> (i32, i32) {
    %c0_i32 = arith.constant 0 : i32
    %c0_i32_0 = arith.constant 0 : i32
    %c0_i32_1 = arith.constant 0 : i32
    return %c0_i32, %c0_i32_0 : i32, i32
  }
  func.func @transform_5(%arg0: i32, %arg1: i32) -> (i32, i32) {
    %c0_i32 = arith.constant 0 : i32
    %c0_i32_0 = arith.constant 0 : i32
    %c0_i32_1 = arith.constant 0 : i32
    return %c0_i32, %c0_i32_0 : i32, i32
  }
  func.func @transform_6(%arg0: i32, %arg1: i32) -> (i32, i32) {
    %c0_i32 = arith.constant 0 : i32
    %c0_i32_0 = arith.constant 0 : i32
    %c0_i32_1 = arith.constant 0 : i32
    return %c0_i32, %c0_i32_0 : i32, i32
  }
  func.func @transform_7(%arg0: i32, %arg1: i32) -> (i32, i32) {
    %c0_i32 = arith.constant 0 : i32
    %c0_i32_0 = arith.constant 0 : i32
    %c0_i32_1 = arith.constant 0 : i32
    return %c0_i32, %c0_i32_0 : i32, i32
  }
  func.func @transform_8(%arg0: i32, %arg1: i32) -> (i32, i32) {
    %c0_i32 = arith.constant 0 : i32
    %c0_i32_0 = arith.constant 0 : i32
    %c0_i32_1 = arith.constant 0 : i32
    return %c0_i32, %c0_i32_0 : i32, i32
  }
  func.func @transform_9(%arg0: i32, %arg1: i32) -> (i32, i32) {
    %c0_i32 = arith.constant 0 : i32
    %c0_i32_0 = arith.constant 0 : i32
    %c0_i32_1 = arith.constant 0 : i32
    return %c0_i32, %c0_i32_0 : i32, i32
  }
  func.func @transform_10(%arg0: i32, %arg1: i32) -> (i32, i32) {
    %c0_i32 = arith.constant 0 : i32
    %c0_i32_0 = arith.constant 0 : i32
    %c0_i32_1 = arith.constant 0 : i32
    return %c0_i32, %c0_i32_0 : i32, i32
  }
  func.func @transform_11(%arg0: i32, %arg1: i32) -> (i32, i32) {
    %c0_i32 = arith.constant 0 : i32
    %c0_i32_0 = arith.constant 0 : i32
    %c0_i32_1 = arith.constant 0 : i32
    return %c0_i32, %c0_i32_0 : i32, i32
  }
  func.func @transform_12(%arg0: i32, %arg1: i32) -> (i32, i32) {
    %c0_i32 = arith.constant 0 : i32
    %c0_i32_0 = arith.constant 0 : i32
    %c0_i32_1 = arith.constant 0 : i32
    return %c0_i32, %c0_i32_0 : i32, i32
  }
  func.func @transform_13(%arg0: i32, %arg1: i32) -> (i32, i32) {
    %c0_i32 = arith.constant 0 : i32
    %c0_i32_0 = arith.constant 0 : i32
    return %arg0, %c0_i32 : i32, i32
  }
}

</mosaic_0001>

<llo_original>
// kernel: tpu_custom_call.1
$region0: #{tpu_custom_call.1}
  #allocation0 [shape = 'u32[]', space=smem, size = 0x4, offset = 0x4, fixed_abs, tag = 'smem constant byte address 0x4 - core index']
  #allocation1 [shape = 'u32[144,128]{1,0:T(1,128)}', space=vmem, size = 0x12000, scoped, tag = 'internal scratch']
  #allocation2 [shape = 'f32[128,128]{1,0:T(8,128)}', space=vmem, size = 0x10000, scoped, tag = 'scratch operand']
  #allocation3 [shape = 'f32[128,128]{1,0:T(8,128)}', space=vmem, size = 0x10000, scoped, tag = 'scratch operand']
  #allocation4 [shape = 'f32[128,16]{1,0:T(8,128)}', space=vmem, size = 0x10000, scoped, tag = 'scratch operand']
  #allocation5 [shape = 'f32[1,1]{1,0:T(1,128)}', space=vmem, size = 0x200, scoped, tag = 'scratch operand']
  %s0 = inlined_call_operand.vmem [shape: f32[256,3], index: 0, kind: input, shape index: {}]
  %s1 = inlined_call_operand.vmem [shape: f32[3,128], index: 1, kind: input, shape index: {}]
  %s2 = inlined_call_operand.vmem [shape: f32[128,32], index: 2, kind: input, shape index: {}]
  %s3 = inlined_call_operand.vmem [shape: f32[256,16], index: 3, kind: input, shape index: {}]
  %s4 = inlined_call_operand.vmem [shape: f32[1,32], index: 4, kind: input, shape index: {}]
  %s5 = inlined_call_operand.vmem [shape: f32[1,32], index: 5, kind: input, shape index: {}]
  %s6 = inlined_call_operand.vmem [shape: f32[32,16], index: 6, kind: input, shape index: {}]
  %s7 = inlined_call_operand.vmem [shape: f32[1,16], index: 7, kind: input, shape index: {}]
  %s8 = inlined_call_operand.vmem [shape: f32[1,16], index: 8, kind: input, shape index: {}]
  %s9 = inlined_call_operand.vmem [shape: f32[1,16], index: 9, kind: input, shape index: {}]
  %s10 = inlined_call_operand.vmem [shape: f32[16,128], index: 10, kind: input, shape index: {}]
  %s11 = inlined_call_operand.vmem [shape: f32[1,128], index: 11, kind: input, shape index: {}]
  %s12 = inlined_call_operand.vmem [shape: f32[16,128], index: 12, kind: input, shape index: {}]
  %s13 = inlined_call_operand.hbm [shape: f32[256,128], index: 13, kind: output, shape index: {}]
  %s14 = sld [smem:[#allocation0]]
  $region109: #{tpu_custom_call.1} parent=0
    _
  %s16 = ssub.s32 1, %s14
  %s17 = scalar_select 0, %s16, %s14
  $region1: #{tpu_custom_call.1} parent=0
    #allocation6 [shape = 'u8[131072]{0}', space=vmem, size = 0x20000, scoped, tag = 'output window, operand 0']
    #allocation7 [shape = 's32[2]{0}', space=sflag, size = 0x8, scoped, tag = 'scoped memory for tpu_custom_call.1']
    %18 = vsyncpa [#allocation7], 0
    %s19 = scalar_lea.sflag [#allocation7], 1
    %20 = vsyncpa %s19, 0
    loop: start=0, step=1, limit=6
    $region2: #{tpu_custom_call.1} parent=1 // loop_pre_header
      _
    $region3: #{tpu_custom_call.1} parent=1 // loop_header
      %s22 = sphi 0, %s26
      %p23 = scmp.ge.s32.totalorder %s22, 6
      %s29 = sphi 0, %s41
      %s30 = sphi 0, %s37
      %s31 = sphi 0, %s29
      %s32 = sphi 0, %s30
      %s33 = sphi 0, %s31
      %s34 = sphi 0, %s32
      %s44 = sphi 0, %s46
      %s47 = sphi 0, %s44
      %s48 = sphi 0, %s47
      %s64 = sphi 0, %s48
      %s74 = sphi 0, %s76
      %s77 = sphi 0, %s74
      %s78 = sphi 0, %s77
      %s94 = sphi 0, %s78
      %s106 = sphi 0, %s108
      %s109 = sphi 0, %s106
      %s110 = sphi 0, %s109
      %s126 = sphi 0, %s110
      %s132 = sphi 0, %s134
      %s135 = sphi 0, %s132
      %s136 = sphi 0, %s135
      %s152 = sphi 0, %s136
      %s156 = sphi 0, %s156
      %s158 = sphi 0, %s156
      %s159 = sphi 0, %s158
      %s173 = sphi 0, %s159
      %s177 = sphi 0, %s177
      %s179 = sphi 0, %s177
      %s180 = sphi 0, %s179
      %s194 = sphi 0, %s180
      %s198 = sphi 0, %s198
      %s200 = sphi 0, %s198
      %s201 = sphi 0, %s200
      %s215 = sphi 0, %s201
      %s219 = sphi 0, %s219
      %s221 = sphi 0, %s219
      %s222 = sphi 0, %s221
      %s236 = sphi 0, %s222
      %s240 = sphi 0, %s240
      %s242 = sphi 0, %s240
      %s243 = sphi 0, %s242
      %s257 = sphi 0, %s243
      %s261 = sphi 0, %s261
      %s263 = sphi 0, %s261
      %s264 = sphi 0, %s263
      %s278 = sphi 0, %s264
      %s282 = sphi 0, %s282
      %s284 = sphi 0, %s282
      %s285 = sphi 0, %s284
      %s299 = sphi 0, %s285
      %s303 = sphi 0, %s303
      %s305 = sphi 0, %s303
      %s306 = sphi 0, %s305
      %s320 = sphi 0, %s306
      %s324 = sphi 0, %s324
      %s326 = sphi 0, %s324
      %s327 = sphi 0, %s326
      %s341 = sphi 0, %s327
      %s347 = sphi 0, %s349
      %s350 = sphi 0, %s347
      %s351 = sphi 0, %s350
      %s367 = sphi 0, %s351
    $region4: #{tpu_custom_call.1} parent=1 // loop_header_branch
      %25 = sbr.rel (%p23) target = $region8
    $region5: #{tpu_custom_call.1} parent=1 // loop_body
      %s27 = ssub.s32 %s22, 1
      %s28 = ssub.s32 %s22, 2
      %s35 = sadd.s32 1, %s30
      %p36 = scmp.ge.s32.totalorder %s35, 2
      %s37 = scalar_select %p36, 0, %s35
      %s38 = sadd.s32 1, %s29
      %s39 = scalar_select %p36, %s38, %s29
      %p40 = scmp.ge.s32.totalorder %s39, 2
      %s41 = scalar_select %p40, 0, %s39
      %s42 = ssub.s32 %s29, %s41
      %p43 = scmp.eq.s32.totalorder %s42, 0
      %s45 = sadd.s32 %s44, 1
      %s46 = scalar_select %p43, %s44, %s45
      %p49 = pneg %p43
      %p50 = scmp.eq.s32.totalorder %s22, 3
      %p51 = por %p49, %p50
      %p52 = scmp.ne.s32.totalorder %s44, %s47
      %p53 = scmp.eq.s32.totalorder %s22, 0
      %p54 = por %p52, %p53
      %p55 = scmp.ne.s32.totalorder %s44, %s47
      %p56 = scmp.eq.s32.totalorder %s27, 3
      %p57 = por %p55, %p56
      %p58 = scmp.ne.s32.totalorder %s47, %s48
      %p59 = scmp.eq.s32.totalorder %s27, 0
      %p60 = por %p58, %p59
      %p61 = scmp.ne.s32.totalorder %s47, %s48
      %p62 = scmp.eq.s32.totalorder %s28, 3
      %p63 = por %p61, %p62
      %p65 = scmp.ne.s32.totalorder %s48, %s64
      %p66 = scmp.eq.s32.totalorder %s28, 0
      %p67 = por %p65, %p66
      %p68 = scmp.lt.s32.totalorder %s30, 0
      %s69 = scalar_select %p68, %s30, 0
      %p70 = scmp.lt.s32.totalorder %s37, 0
      %s71 = scalar_select %p70, %s37, 0
      %s72 = ssub.s32 %s69, %s71
      %p73 = scmp.eq.s32.totalorder %s72, 0
      %s75 = sadd.s32 %s74, 1
      %s76 = scalar_select %p73, %s74, %s75
      %p79 = pneg %p73
      %p80 = scmp.eq.s32.totalorder %s22, 3
      %p81 = por %p79, %p80
      %p82 = scmp.ne.s32.totalorder %s74, %s77
      %p83 = scmp.eq.s32.totalorder %s22, 0
      %p84 = por %p82, %p83
      %p85 = scmp.ne.s32.totalorder %s74, %s77
      %p86 = scmp.eq.s32.totalorder %s27, 3
      %p87 = por %p85, %p86
      %p88 = scmp.ne.s32.totalorder %s77, %s78
      %p89 = scmp.eq.s32.totalorder %s27, 0
      %p90 = por %p88, %p89
      %p91 = scmp.ne.s32.totalorder %s77, %s78
      %p92 = scmp.eq.s32.totalorder %s28, 3
      %p93 = por %p91, %p92
      %p95 = scmp.ne.s32.totalorder %s78, %s94
      %p96 = scmp.eq.s32.totalorder %s28, 0
      %p97 = por %p95, %p96
      %s98 = ssub.s32 %s30, 1
      %p99 = scmp.gt.s32.totalorder %s98, 0
      %s100 = scalar_select %p99, %s98, 0
      %s101 = ssub.s32 %s37, 1
      %p102 = scmp.gt.s32.totalorder %s101, 0
      %s103 = scalar_select %p102, %s101, 0
      %s104 = ssub.s32 %s100, %s103
      %p105 = scmp.eq.s32.totalorder %s104, 0
      %s107 = sadd.s32 %s106, 1
      %s108 = scalar_select %p105, %s106, %s107
      %p111 = pneg %p105
      %p112 = scmp.eq.s32.totalorder %s22, 3
      %p113 = por %p111, %p112
      %p114 = scmp.ne.s32.totalorder %s106, %s109
      %p115 = scmp.eq.s32.totalorder %s22, 0
      %p116 = por %p114, %p115
      %p117 = scmp.ne.s32.totalorder %s106, %s109
      %p118 = scmp.eq.s32.totalorder %s27, 3
      %p119 = por %p117, %p118
      %p120 = scmp.ne.s32.totalorder %s109, %s110
      %p121 = scmp.eq.s32.totalorder %s27, 0
      %p122 = por %p120, %p121
      %p123 = scmp.ne.s32.totalorder %s109, %s110
      %p124 = scmp.eq.s32.totalorder %s28, 3
      %p125 = por %p123, %p124
      %p127 = scmp.ne.s32.totalorder %s110, %s126
      %p128 = scmp.eq.s32.totalorder %s28, 0
      %p129 = por %p127, %p128
      %s130 = ssub.s32 %s29, %s41
      %p131 = scmp.eq.s32.totalorder %s130, 0
      %s133 = sadd.s32 %s132, 1
      %s134 = scalar_select %p131, %s132, %s133
      %p137 = pneg %p131
      %p138 = scmp.eq.s32.totalorder %s22, 3
      %p139 = por %p137, %p138
      %p140 = scmp.ne.s32.totalorder %s132, %s135
      %p141 = scmp.eq.s32.totalorder %s22, 0
      %p142 = por %p140, %p141
      %p143 = scmp.ne.s32.totalorder %s132, %s135
      %p144 = scmp.eq.s32.totalorder %s27, 3
      %p145 = por %p143, %p144
      %p146 = scmp.ne.s32.totalorder %s135, %s136
      %p147 = scmp.eq.s32.totalorder %s27, 0
      %p148 = por %p146, %p147
      %p149 = scmp.ne.s32.totalorder %s135, %s136
      %p150 = scmp.eq.s32.totalorder %s28, 3
      %p151 = por %p149, %p150
      %p153 = scmp.ne.s32.totalorder %s136, %s152
      %p154 = scmp.eq.s32.totalorder %s28, 0
      %p155 = por %p153, %p154
      %s157 = sadd.s32 %s156, 1
      %p160 = scmp.eq.s32.totalorder %s22, 3
      %p161 = scmp.ne.s32.totalorder %s156, %s158
      %p162 = scmp.eq.s32.totalorder %s22, 0
      %p163 = por %p161, %p162
      %p164 = scmp.ne.s32.totalorder %s156, %s158
      %p165 = scmp.eq.s32.totalorder %s27, 3
      %p166 = por %p164, %p165
      %p167 = scmp.ne.s32.totalorder %s158, %s159
      %p168 = scmp.eq.s32.totalorder %s27, 0
      %p169 = por %p167, %p168
      %p170 = scmp.ne.s32.totalorder %s158, %s159
      %p171 = scmp.eq.s32.totalorder %s28, 3
      %p172 = por %p170, %p171
      %p174 = scmp.ne.s32.totalorder %s159, %s173
      %p175 = scmp.eq.s32.totalorder %s28, 0
      %p176 = por %p174, %p175
      %s178 = sadd.s32 %s177, 1
      %p181 = scmp.eq.s32.totalorder %s22, 3
      %p182 = scmp.ne.s32.totalorder %s177, %s179
      %p183 = scmp.eq.s32.totalorder %s22, 0
      %p184 = por %p182, %p183
      %p185 = scmp.ne.s32.totalorder %s177, %s179
      %p186 = scmp.eq.s32.totalorder %s27, 3
      %p187 = por %p185, %p186
      %p188 = scmp.ne.s32.totalorder %s179, %s180
      %p189 = scmp.eq.s32.totalorder %s27, 0
      %p190 = por %p188, %p189
      %p191 = scmp.ne.s32.totalorder %s179, %s180
      %p192 = scmp.eq.s32.totalorder %s28, 3
      %p193 = por %p191, %p192
      %p195 = scmp.ne.s32.totalorder %s180, %s194
      %p196 = scmp.eq.s32.totalorder %s28, 0
      %p197 = por %p195, %p196
      %s199 = sadd.s32 %s198, 1
      %p202 = scmp.eq.s32.totalorder %s22, 3
      %p203 = scmp.ne.s32.totalorder %s198, %s200
      %p204 = scmp.eq.s32.totalorder %s22, 0
      %p205 = por %p203, %p204
      %p206 = scmp.ne.s32.totalorder %s198, %s200
      %p207 = scmp.eq.s32.totalorder %s27, 3
      %p208 = por %p206, %p207
      %p209 = scmp.ne.s32.totalorder %s200, %s201
      %p210 = scmp.eq.s32.totalorder %s27, 0
      %p211 = por %p209, %p210
      %p212 = scmp.ne.s32.totalorder %s200, %s201
      %p213 = scmp.eq.s32.totalorder %s28, 3
      %p214 = por %p212, %p213
      %p216 = scmp.ne.s32.totalorder %s201, %s215
      %p217 = scmp.eq.s32.totalorder %s28, 0
      %p218 = por %p216, %p217
      %s220 = sadd.s32 %s219, 1
      %p223 = scmp.eq.s32.totalorder %s22, 3
      %p224 = scmp.ne.s32.totalorder %s219, %s221
      %p225 = scmp.eq.s32.totalorder %s22, 0
      %p226 = por %p224, %p225
      %p227 = scmp.ne.s32.totalorder %s219, %s221
      %p228 = scmp.eq.s32.totalorder %s27, 3
      %p229 = por %p227, %p228
      %p230 = scmp.ne.s32.totalorder %s221, %s222
      %p231 = scmp.eq.s32.totalorder %s27, 0
      %p232 = por %p230, %p231
      %p233 = scmp.ne.s32.totalorder %s221, %s222
      %p234 = scmp.eq.s32.totalorder %s28, 3
      %p235 = por %p233, %p234
      %p237 = scmp.ne.s32.totalorder %s222, %s236
      %p238 = scmp.eq.s32.totalorder %s28, 0
      %p239 = por %p237, %p238
      %s241 = sadd.s32 %s240, 1
      %p244 = scmp.eq.s32.totalorder %s22, 3
      %p245 = scmp.ne.s32.totalorder %s240, %s242
      %p246 = scmp.eq.s32.totalorder %s22, 0
      %p247 = por %p245, %p246
      %p248 = scmp.ne.s32.totalorder %s240, %s242
      %p249 = scmp.eq.s32.totalorder %s27, 3
      %p250 = por %p248, %p249
      %p251 = scmp.ne.s32.totalorder %s242, %s243
      %p252 = scmp.eq.s32.totalorder %s27, 0
      %p253 = por %p251, %p252
      %p254 = scmp.ne.s32.totalorder %s242, %s243
      %p255 = scmp.eq.s32.totalorder %s28, 3
      %p256 = por %p254, %p255
      %p258 = scmp.ne.s32.totalorder %s243, %s257
      %p259 = scmp.eq.s32.totalorder %s28, 0
      %p260 = por %p258, %p259
      %s262 = sadd.s32 %s261, 1
      %p265 = scmp.eq.s32.totalorder %s22, 3
      %p266 = scmp.ne.s32.totalorder %s261, %s263
      %p267 = scmp.eq.s32.totalorder %s22, 0
      %p268 = por %p266, %p267
      %p269 = scmp.ne.s32.totalorder %s261, %s263
      %p270 = scmp.eq.s32.totalorder %s27, 3
      %p271 = por %p269, %p270
      %p272 = scmp.ne.s32.totalorder %s263, %s264
      %p273 = scmp.eq.s32.totalorder %s27, 0
      %p274 = por %p272, %p273
      %p275 = scmp.ne.s32.totalorder %s263, %s264
      %p276 = scmp.eq.s32.totalorder %s28, 3
      %p277 = por %p275, %p276
      %p279 = scmp.ne.s32.totalorder %s264, %s278
      %p280 = scmp.eq.s32.totalorder %s28, 0
      %p281 = por %p279, %p280
      %s283 = sadd.s32 %s282, 1
      %p286 = scmp.eq.s32.totalorder %s22, 3
      %p287 = scmp.ne.s32.totalorder %s282, %s284
      %p288 = scmp.eq.s32.totalorder %s22, 0
      %p289 = por %p287, %p288
      %p290 = scmp.ne.s32.totalorder %s282, %s284
      %p291 = scmp.eq.s32.totalorder %s27, 3
      %p292 = por %p290, %p291
      %p293 = scmp.ne.s32.totalorder %s284, %s285
      %p294 = scmp.eq.s32.totalorder %s27, 0
      %p295 = por %p293, %p294
      %p296 = scmp.ne.s32.totalorder %s284, %s285
      %p297 = scmp.eq.s32.totalorder %s28, 3
      %p298 = por %p296, %p297
      %p300 = scmp.ne.s32.totalorder %s285, %s299
      %p301 = scmp.eq.s32.totalorder %s28, 0
      %p302 = por %p300, %p301
      %s304 = sadd.s32 %s303, 1
      %p307 = scmp.eq.s32.totalorder %s22, 3
      %p308 = scmp.ne.s32.totalorder %s303, %s305
      %p309 = scmp.eq.s32.totalorder %s22, 0
      %p310 = por %p308, %p309
      %p311 = scmp.ne.s32.totalorder %s303, %s305
      %p312 = scmp.eq.s32.totalorder %s27, 3
      %p313 = por %p311, %p312
      %p314 = scmp.ne.s32.totalorder %s305, %s306
      %p315 = scmp.eq.s32.totalorder %s27, 0
      %p316 = por %p314, %p315
      %p317 = scmp.ne.s32.totalorder %s305, %s306
      %p318 = scmp.eq.s32.totalorder %s28, 3
      %p319 = por %p317, %p318
      %p321 = scmp.ne.s32.totalorder %s306, %s320
      %p322 = scmp.eq.s32.totalorder %s28, 0
      %p323 = por %p321, %p322
      %s325 = sadd.s32 %s324, 1
      %p328 = scmp.eq.s32.totalorder %s22, 3
      %p329 = scmp.ne.s32.totalorder %s324, %s326
      %p330 = scmp.eq.s32.totalorder %s22, 0
      %p331 = por %p329, %p330
      %p332 = scmp.ne.s32.totalorder %s324, %s326
      %p333 = scmp.eq.s32.totalorder %s27, 3
      %p334 = por %p332, %p333
      %p335 = scmp.ne.s32.totalorder %s326, %s327
      %p336 = scmp.eq.s32.totalorder %s27, 0
      %p337 = por %p335, %p336
      %p338 = scmp.ne.s32.totalorder %s326, %s327
      %p339 = scmp.eq.s32.totalorder %s28, 3
      %p340 = por %p338, %p339
      %p342 = scmp.ne.s32.totalorder %s327, %s341
      %p343 = scmp.eq.s32.totalorder %s28, 0
      %p344 = por %p342, %p343
      %s345 = ssub.s32 %s29, %s41
      %p346 = scmp.eq.s32.totalorder %s345, 0
      %s348 = sadd.s32 %s347, 1
      %s349 = scalar_select %p346, %s347, %s348
      %p352 = pneg %p346
      %p353 = scmp.eq.s32.totalorder %s22, 3
      %p354 = por %p352, %p353
      %p355 = scmp.ne.s32.totalorder %s347, %s350
      %p356 = scmp.eq.s32.totalorder %s22, 0
      %p357 = por %p355, %p356
      %p358 = scmp.ne.s32.totalorder %s347, %s350
      %p359 = scmp.eq.s32.totalorder %s27, 3
      %p360 = por %p358, %p359
      %p361 = scmp.ne.s32.totalorder %s350, %s351
      %p362 = scmp.eq.s32.totalorder %s27, 0
      %p363 = por %p361, %p362
      %p364 = scmp.ne.s32.totalorder %s350, %s351
      %p365 = scmp.eq.s32.totalorder %s28, 3
      %p366 = por %p364, %p365
      %p368 = scmp.ne.s32.totalorder %s351, %s367
      %p369 = scmp.eq.s32.totalorder %s28, 0
      %p370 = por %p368, %p369
      %p371 = scmp.le.s32.totalorder 1, %s22
      %p372 = scmp.lt.s32.totalorder %s22, 5
      %p373 = pnand %p371, %p372
      %p374 = pneg %p373
      // Predicated region
      $region9: #{tpu_custom_call.1} parent=5 // pred_check
        _
      $region10: #{tpu_custom_call.1} parent=5 // pred_check_branch
        %376 = sbr.rel (%p373) target = $region12
      $region11: #{tpu_custom_call.1} parent=5 // pred_region
        %s377 = ssub.s32 %s22, 1
        // Predicated region
        $region13: #{tpu_custom_call.1} parent=11 // pred_check
          %p378 = pneg %p169
        $region14: #{tpu_custom_call.1} parent=11 // pred_check_branch
          %380 = sbr.rel (%p378) target = $region16
        $region15: #{tpu_custom_call.1} parent=11 // pred_region
          _
        $region16: #{tpu_custom_call.1} parent=11 // pred_fallthru
          _
        // Predicated region
        $region17: #{tpu_custom_call.1} parent=11 // pred_check
          %p381 = pneg %p190
        $region18: #{tpu_custom_call.1} parent=11 // pred_check_branch
          %383 = sbr.rel (%p381) target = $region20
        $region19: #{tpu_custom_call.1} parent=11 // pred_region
          _
        $region20: #{tpu_custom_call.1} parent=11 // pred_fallthru
          _
        // Predicated region
        $region21: #{tpu_custom_call.1} parent=11 // pred_check
          %p384 = pneg %p211
        $region22: #{tpu_custom_call.1} parent=11 // pred_check_branch
          %386 = sbr.rel (%p384) target = $region24
        $region23: #{tpu_custom_call.1} parent=11 // pred_region
          _
        $region24: #{tpu_custom_call.1} parent=11 // pred_fallthru
          _
        // Predicated region
        $region25: #{tpu_custom_call.1} parent=11 // pred_check
          %p387 = pneg %p232
        $region26: #{tpu_custom_call.1} parent=11 // pred_check_branch
          %389 = sbr.rel (%p387) target = $region28
        $region27: #{tpu_custom_call.1} parent=11 // pred_region
          _
        $region28: #{tpu_custom_call.1} parent=11 // pred_fallthru
          _
        // Predicated region
        $region29: #{tpu_custom_call.1} parent=11 // pred_check
          %p390 = pneg %p253
        $region30: #{tpu_custom_call.1} parent=11 // pred_check_branch
          %392 = sbr.rel (%p390) target = $region32
        $region31: #{tpu_custom_call.1} parent=11 // pred_region
          _
        $region32: #{tpu_custom_call.1} parent=11 // pred_fallthru
          _
        // Predicated region
        $region33: #{tpu_custom_call.1} parent=11 // pred_check
          %p393 = pneg %p274
        $region34: #{tpu_custom_call.1} parent=11 // pred_check_branch
          %395 = sbr.rel (%p393) target = $region36
        $region35: #{tpu_custom_call.1} parent=11 // pred_region
          _
        $region36: #{tpu_custom_call.1} parent=11 // pred_fallthru
          _
        // Predicated region
        $region37: #{tpu_custom_call.1} parent=11 // pred_check
          %p396 = pneg %p295
        $region38: #{tpu_custom_call.1} parent=11 // pred_check_branch
          %398 = sbr.rel (%p396) target = $region40
        $region39: #{tpu_custom_call.1} parent=11 // pred_region
          _
        $region40: #{tpu_custom_call.1} parent=11 // pred_fallthru
          _
        // Predicated region
        $region41: #{tpu_custom_call.1} parent=11 // pred_check
          %p399 = pneg %p316
        $region42: #{tpu_custom_call.1} parent=11 // pred_check_branch
          %401 = sbr.rel (%p399) target = $region44
        $region43: #{tpu_custom_call.1} parent=11 // pred_region
          _
        $region44: #{tpu_custom_call.1} parent=11 // pred_fallthru
          _
        // Predicated region
        $region45: #{tpu_custom_call.1} parent=11 // pred_check
          %p402 = pneg %p337
        $region46: #{tpu_custom_call.1} parent=11 // pred_check_branch
          %404 = sbr.rel (%p402) target = $region48
        $region47: #{tpu_custom_call.1} parent=11 // pred_region
          _
        $region48: #{tpu_custom_call.1} parent=11 // pred_fallthru
          _
      $region12: #{tpu_custom_call.1} parent=5 // pred_fallthru
        _
      %p405 = scmp.lt.s32.totalorder %s22, 4
      // Predicated region
      $region49: #{tpu_custom_call.1} parent=5 // pred_check
        %p406 = pneg %p405
      $region50: #{tpu_custom_call.1} parent=5 // pred_check_branch
        %408 = sbr.rel (%p406) target = $region52
      $region51: #{tpu_custom_call.1} parent=5 // pred_region
        // Predicated region
        $region53: #{tpu_custom_call.1} parent=51 // pred_check
          %p409 = pneg %p54
        $region54: #{tpu_custom_call.1} parent=51 // pred_check_branch
          %411 = sbr.rel (%p409) target = $region56
        $region55: #{tpu_custom_call.1} parent=51 // pred_region
          %s412 = smul.u32 16, %s29
          %p413 = scmp.lt.s32.totalorder %s412, 31
          %s414 = scalar_select %p413, %s412, 31
          %s415 = smul.addr %s414, 8
          %s416 = scalar_lea.vmem %s0, %s415
          %s417 = smul.u32 16, %s29
        $region56: #{tpu_custom_call.1} parent=51 // pred_fallthru
          _
        // Predicated region
        $region57: #{tpu_custom_call.1} parent=51 // pred_check
          %p418 = pneg %p84
        $region58: #{tpu_custom_call.1} parent=51 // pred_check_branch
          %420 = sbr.rel (%p418) target = $region60
        $region59: #{tpu_custom_call.1} parent=51 // pred_region
          %p421 = scmp.lt.s32.totalorder %s30, 0
          %s422 = scalar_select %p421, %s30, 0
          %p423 = scmp.lt.s32.totalorder %s422, 0
          %s424 = scalar_select %p423, %s422, 0
          %s425 = smul.addr %s424, 4
          %s426 = scalar_lea.vmem %s1, %s425
          %p427 = scmp.lt.s32.totalorder %s30, 0
          %s428 = scalar_select %p427, %s30, 0
        $region60: #{tpu_custom_call.1} parent=51 // pred_fallthru
          _
        // Predicated region
        $region61: #{tpu_custom_call.1} parent=51 // pred_check
          %p429 = pneg %p116
        $region62: #{tpu_custom_call.1} parent=51 // pred_check_branch
          %431 = sbr.rel (%p429) target = $region64
        $region63: #{tpu_custom_call.1} parent=51 // pred_region
          %s432 = ssub.s32 %s30, 1
          %p433 = scmp.gt.s32.totalorder %s432, 0
          %s434 = scalar_select %p433, %s432, 0
          %s435 = smul.u32 16, %s434
          %p436 = scmp.lt.s32.totalorder %s435, 15
          %s437 = scalar_select %p436, %s435, 15
          %s438 = smul.addr %s437, 8
          %s439 = scalar_lea.vmem %s2, %s438
          %s440 = ssub.s32 %s30, 1
          %p441 = scmp.gt.s32.totalorder %s440, 0
          %s442 = scalar_select %p441, %s440, 0
          %s443 = smul.u32 16, %s442
        $region64: #{tpu_custom_call.1} parent=51 // pred_fallthru
          _
        // Predicated region
        $region65: #{tpu_custom_call.1} parent=51 // pred_check
          %p444 = pneg %p142
        $region66: #{tpu_custom_call.1} parent=51 // pred_check_branch
          %446 = sbr.rel (%p444) target = $region68
        $region67: #{tpu_custom_call.1} parent=51 // pred_region
          %s447 = smul.u32 16, %s29
          %p448 = scmp.lt.s32.totalorder %s447, 31
          %s449 = scalar_select %p448, %s447, 31
          %s450 = smul.addr %s449, 8
          %s451 = scalar_lea.vmem %s3, %s450
          %s452 = smul.u32 16, %s29
        $region68: #{tpu_custom_call.1} parent=51 // pred_fallthru
          _
      $region52: #{tpu_custom_call.1} parent=5 // pred_fallthru
        _
      %p453 = scmp.le.s32.totalorder 1, %s22
      %p454 = scmp.lt.s32.totalorder %s22, 5
      %p455 = pnand %p453, %p454
      %p456 = pneg %p455
      // Predicated region
      $region69: #{tpu_custom_call.1} parent=5 // pred_check
        _
      $region70: #{tpu_custom_call.1} parent=5 // pred_check_branch
        %458 = sbr.rel (%p455) target = $region72
      $region71: #{tpu_custom_call.1} parent=5 // pred_region
        %s459 = ssub.s32 %s22, 1
        %s460 = smul.u32 16, %s31
        %p461 = scmp.lt.s32.totalorder %s460, 31
        %s462 = scalar_select %p461, %s460, 31
        %s463 = smul.addr %s462, 8
        %s464 = scalar_lea.vmem %s0, %s463
        %p465 = pneg %p60
        %p466 = pneg %p57
        %p467 = scmp.lt.s32.totalorder %s32, 0
        %s468 = scalar_select %p467, %s32, 0
        %p469 = scmp.lt.s32.totalorder %s468, 0
        %s470 = scalar_select %p469, %s468, 0
        %s471 = smul.addr %s470, 4
        %s472 = scalar_lea.vmem %s1, %s471
        %p473 = pneg %p90
        %p474 = pneg %p87
        %s475 = ssub.s32 %s32, 1
        %p476 = scmp.gt.s32.totalorder %s475, 0
        %s477 = scalar_select %p476, %s475, 0
        %s478 = smul.u32 16, %s477
        %p479 = scmp.lt.s32.totalorder %s478, 15
        %s480 = scalar_select %p479, %s478, 15
        %s481 = smul.addr %s480, 8
        %s482 = scalar_lea.vmem %s2, %s481
        %p483 = pneg %p122
        %p484 = pneg %p119
        %s485 = smul.u32 16, %s31
        %p486 = scmp.lt.s32.totalorder %s485, 31
        %s487 = scalar_select %p486, %s485, 31
        %s488 = smul.addr %s487, 8
        %s489 = scalar_lea.vmem %s3, %s488
        %p490 = pneg %p148
        %p491 = pneg %p145
        %p492 = pneg %p169
        %p493 = pneg %p166
        %p494 = pneg %p190
        %p495 = pneg %p187
        %p496 = pneg %p211
        %p497 = pneg %p208
        %p498 = pneg %p232
        %p499 = pneg %p229
        %p500 = pneg %p253
        %p501 = pneg %p250
        %p502 = pneg %p274
        %p503 = pneg %p271
        %p504 = pneg %p295
        %p505 = pneg %p292
        %p506 = pneg %p316
        %p507 = pneg %p313
        %p508 = pneg %p337
        %p509 = pneg %p334
        %p510 = pneg %p363
        %p511 = pneg %p360
        %s512 = sand.u32 %s350, 1
        %s513 = scalar_lea.sflag [#allocation7], %s512
        %s514 = sand.u32 %s350, 1
        %s515 = smul.addr %s514, 128
        %s516 = scalar_lea.vmem [#allocation6], %s515
        %s517 = smul.u32 16, %s31
        %p518 = scmp.lt.s32.totalorder %s517, 31
        %s519 = scalar_select %p518, %s517, 31
        %s520 = smul.addr %s519, 8
        %s521 = scalar_lea.vmem %s0, %s520
        %s522 = smul.u32 16, %s31
        %p523 = scmp.lt.s32.totalorder %s32, 0
        %s524 = scalar_select %p523, %s32, 0
        %p525 = scmp.lt.s32.totalorder %s524, 0
        %s526 = scalar_select %p525, %s524, 0
        %s527 = smul.addr %s526, 4
        %s528 = scalar_lea.vmem %s1, %s527
        %p529 = scmp.lt.s32.totalorder %s32, 0
        %s530 = scalar_select %p529, %s32, 0
        %s531 = ssub.s32 %s32, 1
        %p532 = scmp.gt.s32.totalorder %s531, 0
        %s533 = scalar_select %p532, %s531, 0
        %s534 = smul.u32 16, %s533
        %p535 = scmp.lt.s32.totalorder %s534, 15
        %s536 = scalar_select %p535, %s534, 15
        %s537 = smul.addr %s536, 8
        %s538 = scalar_lea.vmem %s2, %s537
        %s539 = ssub.s32 %s32, 1
        %p540 = scmp.gt.s32.totalorder %s539, 0
        %s541 = scalar_select %p540, %s539, 0
        %s542 = smul.u32 16, %s541
        %s543 = smul.u32 16, %s31
        %p544 = scmp.lt.s32.totalorder %s543, 31
        %s545 = scalar_select %p544, %s543, 31
        %s546 = smul.addr %s545, 8
        %s547 = scalar_lea.vmem %s3, %s546
        %s548 = smul.u32 16, %s31
        %s549 = smul.u32 16, %s31
        %p551 = scmp.eq.s32.totalorder %s32, 0
        // Predicated region
        $region73: #{tpu_custom_call.1} parent=71 // pred_check
          %p552 = pneg %p551
        $region74: #{tpu_custom_call.1} parent=71 // pred_check_branch
          %554 = sbr.rel (%p552) target = $region76
        $region75: #{tpu_custom_call.1} parent=71 // pred_region
          %v555 = vlaneseq
          %v556 = vand.u32 %v555, 127
          %557 = vst [vmem:[#allocation2] sm:$0xff] 1e+30
          %558 = vst [vmem:[#allocation2 + $0x8] sm:$0xff] 1e+30
          %559 = vst [vmem:[#allocation2 + $0x10] sm:$0xff] 1e+30
          %560 = vst [vmem:[#allocation2 + $0x18] sm:$0xff] 1e+30
          %561 = vst [vmem:[#allocation2 + $0x20] sm:$0xff] 1e+30
          %562 = vst [vmem:[#allocation2 + $0x28] sm:$0xff] 1e+30
          %563 = vst [vmem:[#allocation2 + $0x30] sm:$0xff] 1e+30
          %564 = vst [vmem:[#allocation2 + $0x38] sm:$0xff] 1e+30
          %565 = vst [vmem:[#allocation2 + $0x40] sm:$0xff] 1e+30
          %566 = vst [vmem:[#allocation2 + $0x48] sm:$0xff] 1e+30
          %567 = vst [vmem:[#allocation2 + $0x50] sm:$0xff] 1e+30
          %568 = vst [vmem:[#allocation2 + $0x58] sm:$0xff] 1e+30
          %569 = vst [vmem:[#allocation2 + $0x60] sm:$0xff] 1e+30
          %570 = vst [vmem:[#allocation2 + $0x68] sm:$0xff] 1e+30
          %571 = vst [vmem:[#allocation2 + $0x70] sm:$0xff] 1e+30
          %572 = vst [vmem:[#allocation2 + $0x78] sm:$0xff] 1e+30
          %v573 = vcvt.s32.f32 %v556
          %v574 = vadd.f32 %v573, 1.0
          %v575 = vsub.f32 0.0, %v574
          %576 = vst [vmem:[#allocation3] sm:$0xff] %v575
          %577 = vst [vmem:[#allocation3 + $0x8] sm:$0xff] %v575
          %578 = vst [vmem:[#allocation3 + $0x10] sm:$0xff] %v575
          %579 = vst [vmem:[#allocation3 + $0x18] sm:$0xff] %v575
          %580 = vst [vmem:[#allocation3 + $0x20] sm:$0xff] %v575
          %581 = vst [vmem:[#allocation3 + $0x28] sm:$0xff] %v575
          %582 = vst [vmem:[#allocation3 + $0x30] sm:$0xff] %v575
          %583 = vst [vmem:[#allocation3 + $0x38] sm:$0xff] %v575
          %584 = vst [vmem:[#allocation3 + $0x40] sm:$0xff] %v575
          %585 = vst [vmem:[#allocation3 + $0x48] sm:$0xff] %v575
          %586 = vst [vmem:[#allocation3 + $0x50] sm:$0xff] %v575
          %587 = vst [vmem:[#allocation3 + $0x58] sm:$0xff] %v575
          %588 = vst [vmem:[#allocation3 + $0x60] sm:$0xff] %v575
          %589 = vst [vmem:[#allocation3 + $0x68] sm:$0xff] %v575
          %590 = vst [vmem:[#allocation3 + $0x70] sm:$0xff] %v575
          %591 = vst [vmem:[#allocation3 + $0x78] sm:$0xff] %v575
          %vm592 = vcmask 130048
          %593 = vst.msk [vmem:[#allocation4] sm:$0xff] %vm592, 0.0
          %594 = vst.msk [vmem:[#allocation4 + $0x8] sm:$0xff] %vm592, 0.0
          %595 = vst.msk [vmem:[#allocation4 + $0x10] sm:$0xff] %vm592, 0.0
          %596 = vst.msk [vmem:[#allocation4 + $0x18] sm:$0xff] %vm592, 0.0
          %597 = vst.msk [vmem:[#allocation4 + $0x20] sm:$0xff] %vm592, 0.0
          %598 = vst.msk [vmem:[#allocation4 + $0x28] sm:$0xff] %vm592, 0.0
          %599 = vst.msk [vmem:[#allocation4 + $0x30] sm:$0xff] %vm592, 0.0
          %600 = vst.msk [vmem:[#allocation4 + $0x38] sm:$0xff] %vm592, 0.0
          %601 = vst.msk [vmem:[#allocation4 + $0x40] sm:$0xff] %vm592, 0.0
          %602 = vst.msk [vmem:[#allocation4 + $0x48] sm:$0xff] %vm592, 0.0
          %603 = vst.msk [vmem:[#allocation4 + $0x50] sm:$0xff] %vm592, 0.0
          %604 = vst.msk [vmem:[#allocation4 + $0x58] sm:$0xff] %vm592, 0.0
          %605 = vst.msk [vmem:[#allocation4 + $0x60] sm:$0xff] %vm592, 0.0
          %606 = vst.msk [vmem:[#allocation4 + $0x68] sm:$0xff] %vm592, 0.0
          %607 = vst.msk [vmem:[#allocation4 + $0x70] sm:$0xff] %vm592, 0.0
          %608 = vst.msk [vmem:[#allocation4 + $0x78] sm:$0xff] %vm592, 0.0
        $region76: #{tpu_custom_call.1} parent=71 // pred_fallthru
          _
        %p609 = scmp.lt.s32.totalorder %s32, 1
        // Predicated region
        $region77: #{tpu_custom_call.1} parent=71 // pred_check
          %p610 = pneg %p609
        $region78: #{tpu_custom_call.1} parent=71 // pred_check_branch
          %612 = sbr.rel (%p610) target = $region80
        $region79: #{tpu_custom_call.1} parent=71 // pred_region
          %v613 = vld [vmem:[%s521] sm:$0xff]
          %v614 = vld [vmem:[%s521 + $0x8] sm:$0xff]
          %v615 = vld [vmem:[%s521 + $0x10] sm:$0xff]
          %v616 = vld [vmem:[%s521 + $0x18] sm:$0xff]
          %v617 = vld [vmem:[%s521 + $0x20] sm:$0xff]
          %v618 = vld [vmem:[%s521 + $0x28] sm:$0xff]
          %v619 = vld [vmem:[%s521 + $0x30] sm:$0xff]
          %v620 = vld [vmem:[%s521 + $0x38] sm:$0xff]
          %v621 = vld [vmem:[%s521 + $0x40] sm:$0xff]
          %v622 = vld [vmem:[%s521 + $0x48] sm:$0xff]
          %v623 = vld [vmem:[%s521 + $0x50] sm:$0xff]
          %v624 = vld [vmem:[%s521 + $0x58] sm:$0xff]
          %v625 = vld [vmem:[%s521 + $0x60] sm:$0xff]
          %v626 = vld [vmem:[%s521 + $0x68] sm:$0xff]
          %v627 = vld [vmem:[%s521 + $0x70] sm:$0xff]
          %v628 = vld [vmem:[%s521 + $0x78] sm:$0xff]
          %v629 = vld [vmem:[%s528] sm:$0x7]
          %631 = vset.pattern.permute.xlu0 0
          %632 = vperm.xlu0 %631, %v613
          %v633 = vpop.permute.xlu0 %632
          %636 = vset.pattern.permute.xlu0 0
          %637 = vperm.xlu0 %636, %v614
          %v638 = vpop.permute.xlu0 %637
          %641 = vset.pattern.permute.xlu0 0
          %642 = vperm.xlu0 %641, %v615
          %v643 = vpop.permute.xlu0 %642
          %646 = vset.pattern.permute.xlu0 0
          %647 = vperm.xlu0 %646, %v616
          %v648 = vpop.permute.xlu0 %647
          %651 = vset.pattern.permute.xlu0 0
          %652 = vperm.xlu0 %651, %v617
          %v653 = vpop.permute.xlu0 %652
          %656 = vset.pattern.permute.xlu0 0
          %657 = vperm.xlu0 %656, %v618
          %v658 = vpop.permute.xlu0 %657
          %661 = vset.pattern.permute.xlu0 0
          %662 = vperm.xlu0 %661, %v619
          %v663 = vpop.permute.xlu0 %662
          %666 = vset.pattern.permute.xlu0 0
          %667 = vperm.xlu0 %666, %v620
          %v668 = vpop.permute.xlu0 %667
          %671 = vset.pattern.permute.xlu0 0
          %672 = vperm.xlu0 %671, %v621
          %v673 = vpop.permute.xlu0 %672
          %676 = vset.pattern.permute.xlu0 0
          %677 = vperm.xlu0 %676, %v622
          %v678 = vpop.permute.xlu0 %677
          %681 = vset.pattern.permute.xlu0 0
          %682 = vperm.xlu0 %681, %v623
          %v683 = vpop.permute.xlu0 %682
          %686 = vset.pattern.permute.xlu0 0
          %687 = vperm.xlu0 %686, %v624
          %v688 = vpop.permute.xlu0 %687
          %691 = vset.pattern.permute.xlu0 0
          %692 = vperm.xlu0 %691, %v625
          %v693 = vpop.permute.xlu0 %692
          %696 = vset.pattern.permute.xlu0 0
          %697 = vperm.xlu0 %696, %v626
          %v698 = vpop.permute.xlu0 %697
          %701 = vset.pattern.permute.xlu0 0
          %702 = vperm.xlu0 %701, %v627
          %v703 = vpop.permute.xlu0 %702
          %706 = vset.pattern.permute.xlu0 0
          %707 = vperm.xlu0 %706, %v628
          %v708 = vpop.permute.xlu0 %707
          %v710 = vlaneseq
          %v711 = vshrl.u32 %v710, 7
          %v712 = vsub.s32 0, %v711
          %v713 = vrot.slane %v629, %v712
          %v714 = vsub.f32 %v633, %v713
          %v715 = vsub.f32 %v638, %v713
          %v716 = vsub.f32 %v643, %v713
          %v717 = vsub.f32 %v648, %v713
          %v718 = vsub.f32 %v653, %v713
          %v719 = vsub.f32 %v658, %v713
          %v720 = vsub.f32 %v663, %v713
          %v721 = vsub.f32 %v668, %v713
          %v722 = vsub.f32 %v673, %v713
          %v723 = vsub.f32 %v678, %v713
          %v724 = vsub.f32 %v683, %v713
          %v725 = vsub.f32 %v688, %v713
          %v726 = vsub.f32 %v693, %v713
          %v727 = vsub.f32 %v698, %v713
          %v728 = vsub.f32 %v703, %v713
          %v729 = vsub.f32 %v708, %v713
          %v730 = vmul.f32 %v714, %v714
          %v731 = vmul.f32 %v715, %v715
          %v732 = vmul.f32 %v716, %v716
          %v733 = vmul.f32 %v717, %v717
          %v734 = vmul.f32 %v718, %v718
          %v735 = vmul.f32 %v719, %v719
          %v736 = vmul.f32 %v720, %v720
          %v737 = vmul.f32 %v721, %v721
          %v738 = vmul.f32 %v722, %v722
          %v739 = vmul.f32 %v723, %v723
          %v740 = vmul.f32 %v724, %v724
          %v741 = vmul.f32 %v725, %v725
          %v742 = vmul.f32 %v726, %v726
          %v743 = vmul.f32 %v727, %v727
          %v744 = vmul.f32 %v728, %v728
          %v745 = vmul.f32 %v729, %v729
          %v746 = vadd.f32 %v730, 0.0
          %v747 = vadd.f32 %v731, 0.0
          %v748 = vadd.f32 %v732, 0.0
          %v749 = vadd.f32 %v733, 0.0
          %v750 = vadd.f32 %v734, 0.0
          %v751 = vadd.f32 %v735, 0.0
          %v752 = vadd.f32 %v736, 0.0
          %v753 = vadd.f32 %v737, 0.0
          %v754 = vadd.f32 %v738, 0.0
          %v755 = vadd.f32 %v739, 0.0
          %v756 = vadd.f32 %v740, 0.0
          %v757 = vadd.f32 %v741, 0.0
          %v758 = vadd.f32 %v742, 0.0
          %v759 = vadd.f32 %v743, 0.0
          %v760 = vadd.f32 %v744, 0.0
          %v761 = vadd.f32 %v745, 0.0
          %762 = vset.pattern.permute.xlu0 1
          %763 = vperm.xlu0 %762, %v613
          %v764 = vpop.permute.xlu0 %763
          %766 = vset.pattern.permute.xlu0 1
          %767 = vperm.xlu0 %766, %v614
          %v768 = vpop.permute.xlu0 %767
          %770 = vset.pattern.permute.xlu0 1
          %771 = vperm.xlu0 %770, %v615
          %v772 = vpop.permute.xlu0 %771
          %774 = vset.pattern.permute.xlu0 1
          %775 = vperm.xlu0 %774, %v616
          %v776 = vpop.permute.xlu0 %775
          %778 = vset.pattern.permute.xlu0 1
          %779 = vperm.xlu0 %778, %v617
          %v780 = vpop.permute.xlu0 %779
          %782 = vset.pattern.permute.xlu0 1
          %783 = vperm.xlu0 %782, %v618
          %v784 = vpop.permute.xlu0 %783
          %786 = vset.pattern.permute.xlu0 1
          %787 = vperm.xlu0 %786, %v619
          %v788 = vpop.permute.xlu0 %787
          %790 = vset.pattern.permute.xlu0 1
          %791 = vperm.xlu0 %790, %v620
          %v792 = vpop.permute.xlu0 %791
          %794 = vset.pattern.permute.xlu0 1
          %795 = vperm.xlu0 %794, %v621
          %v796 = vpop.permute.xlu0 %795
          %798 = vset.pattern.permute.xlu0 1
          %799 = vperm.xlu0 %798, %v622
          %v800 = vpop.permute.xlu0 %799
          %802 = vset.pattern.permute.xlu0 1
          %803 = vperm.xlu0 %802, %v623
          %v804 = vpop.permute.xlu0 %803
          %806 = vset.pattern.permute.xlu0 1
          %807 = vperm.xlu0 %806, %v624
          %v808 = vpop.permute.xlu0 %807
          %810 = vset.pattern.permute.xlu0 1
          %811 = vperm.xlu0 %810, %v625
          %v812 = vpop.permute.xlu0 %811
          %814 = vset.pattern.permute.xlu0 1
          %815 = vperm.xlu0 %814, %v626
          %v816 = vpop.permute.xlu0 %815
          %818 = vset.pattern.permute.xlu0 1
          %819 = vperm.xlu0 %818, %v627
          %v820 = vpop.permute.xlu0 %819
          %822 = vset.pattern.permute.xlu0 1
          %823 = vperm.xlu0 %822, %v628
          %v824 = vpop.permute.xlu0 %823
          %v826 = vlaneseq
          %v827 = vshrl.u32 %v826, 7
          %v828 = vsub.s32 1, %v827
          %v829 = vrot.slane %v629, %v828
          %v830 = vsub.f32 %v764, %v829
          %v831 = vsub.f32 %v768, %v829
          %v832 = vsub.f32 %v772, %v829
          %v833 = vsub.f32 %v776, %v829
          %v834 = vsub.f32 %v780, %v829
          %v835 = vsub.f32 %v784, %v829
          %v836 = vsub.f32 %v788, %v829
          %v837 = vsub.f32 %v792, %v829
          %v838 = vsub.f32 %v796, %v829
          %v839 = vsub.f32 %v800, %v829
          %v840 = vsub.f32 %v804, %v829
          %v841 = vsub.f32 %v808, %v829
          %v842 = vsub.f32 %v812, %v829
          %v843 = vsub.f32 %v816, %v829
          %v844 = vsub.f32 %v820, %v829
          %v845 = vsub.f32 %v824, %v829
          %v846 = vmul.f32 %v830, %v830
          %v847 = vmul.f32 %v831, %v831
          %v848 = vmul.f32 %v832, %v832
          %v849 = vmul.f32 %v833, %v833
          %v850 = vmul.f32 %v834, %v834
          %v851 = vmul.f32 %v835, %v835
          %v852 = vmul.f32 %v836, %v836
          %v853 = vmul.f32 %v837, %v837
          %v854 = vmul.f32 %v838, %v838
          %v855 = vmul.f32 %v839, %v839
          %v856 = vmul.f32 %v840, %v840
          %v857 = vmul.f32 %v841, %v841
          %v858 = vmul.f32 %v842, %v842
          %v859 = vmul.f32 %v843, %v843
          %v860 = vmul.f32 %v844, %v844
          %v861 = vmul.f32 %v845, %v845
          %v862 = vadd.f32 %v746, %v846
          %v863 = vadd.f32 %v747, %v847
          %v864 = vadd.f32 %v748, %v848
          %v865 = vadd.f32 %v749, %v849
          %v866 = vadd.f32 %v750, %v850
          %v867 = vadd.f32 %v751, %v851
          %v868 = vadd.f32 %v752, %v852
          %v869 = vadd.f32 %v753, %v853
          %v870 = vadd.f32 %v754, %v854
          %v871 = vadd.f32 %v755, %v855
          %v872 = vadd.f32 %v756, %v856
          %v873 = vadd.f32 %v757, %v857
          %v874 = vadd.f32 %v758, %v858
          %v875 = vadd.f32 %v759, %v859
          %v876 = vadd.f32 %v760, %v860
          %v877 = vadd.f32 %v761, %v861
          %878 = vset.pattern.permute.xlu0 2
          %879 = vperm.xlu0 %878, %v613
          %v880 = vpop.permute.xlu0 %879
          %882 = vset.pattern.permute.xlu0 2
          %883 = vperm.xlu0 %882, %v614
          %v884 = vpop.permute.xlu0 %883
          %886 = vset.pattern.permute.xlu0 2
          %887 = vperm.xlu0 %886, %v615
          %v888 = vpop.permute.xlu0 %887
          %890 = vset.pattern.permute.xlu0 2
          %891 = vperm.xlu0 %890, %v616
          %v892 = vpop.permute.xlu0 %891
          %894 = vset.pattern.permute.xlu0 2
          %895 = vperm.xlu0 %894, %v617
          %v896 = vpop.permute.xlu0 %895
          %898 = vset.pattern.permute.xlu0 2
          %899 = vperm.xlu0 %898, %v618
          %v900 = vpop.permute.xlu0 %899
          %902 = vset.pattern.permute.xlu0 2
          %903 = vperm.xlu0 %902, %v619
          %v904 = vpop.permute.xlu0 %903
          %906 = vset.pattern.permute.xlu0 2
          %907 = vperm.xlu0 %906, %v620
          %v908 = vpop.permute.xlu0 %907
          %910 = vset.pattern.permute.xlu0 2
          %911 = vperm.xlu0 %910, %v621
          %v912 = vpop.permute.xlu0 %911
          %914 = vset.pattern.permute.xlu0 2
          %915 = vperm.xlu0 %914, %v622
          %v916 = vpop.permute.xlu0 %915
          %918 = vset.pattern.permute.xlu0 2
          %919 = vperm.xlu0 %918, %v623
          %v920 = vpop.permute.xlu0 %919
          %922 = vset.pattern.permute.xlu0 2
          %923 = vperm.xlu0 %922, %v624
          %v924 = vpop.permute.xlu0 %923
          %926 = vset.pattern.permute.xlu0 2
          %927 = vperm.xlu0 %926, %v625
          %v928 = vpop.permute.xlu0 %927
          %930 = vset.pattern.permute.xlu0 2
          %931 = vperm.xlu0 %930, %v626
          %v932 = vpop.permute.xlu0 %931
          %934 = vset.pattern.permute.xlu0 2
          %935 = vperm.xlu0 %934, %v627
          %v936 = vpop.permute.xlu0 %935
          %938 = vset.pattern.permute.xlu0 2
          %939 = vperm.xlu0 %938, %v628
          %v940 = vpop.permute.xlu0 %939
          %v942 = vlaneseq
          %v943 = vshrl.u32 %v942, 7
          %v944 = vsub.s32 2, %v943
          %v945 = vrot.slane %v629, %v944
          %v946 = vsub.f32 %v880, %v945
          %v947 = vsub.f32 %v884, %v945
          %v948 = vsub.f32 %v888, %v945
          %v949 = vsub.f32 %v892, %v945
          %v950 = vsub.f32 %v896, %v945
          %v951 = vsub.f32 %v900, %v945
          %v952 = vsub.f32 %v904, %v945
          %v953 = vsub.f32 %v908, %v945
          %v954 = vsub.f32 %v912, %v945
          %v955 = vsub.f32 %v916, %v945
          %v956 = vsub.f32 %v920, %v945
          %v957 = vsub.f32 %v924, %v945
          %v958 = vsub.f32 %v928, %v945
          %v959 = vsub.f32 %v932, %v945
          %v960 = vsub.f32 %v936, %v945
          %v961 = vsub.f32 %v940, %v945
          %v962 = vmul.f32 %v946, %v946
          %v963 = vmul.f32 %v947, %v947
          %v964 = vmul.f32 %v948, %v948
          %v965 = vmul.f32 %v949, %v949
          %v966 = vmul.f32 %v950, %v950
          %v967 = vmul.f32 %v951, %v951
          %v968 = vmul.f32 %v952, %v952
          %v969 = vmul.f32 %v953, %v953
          %v970 = vmul.f32 %v954, %v954
          %v971 = vmul.f32 %v955, %v955
          %v972 = vmul.f32 %v956, %v956
          %v973 = vmul.f32 %v957, %v957
          %v974 = vmul.f32 %v958, %v958
          %v975 = vmul.f32 %v959, %v959
          %v976 = vmul.f32 %v960, %v960
          %v977 = vmul.f32 %v961, %v961
          %v978 = vadd.f32 %v862, %v962
          %v979 = vadd.f32 %v863, %v963
          %v980 = vadd.f32 %v864, %v964
          %v981 = vadd.f32 %v865, %v965
          %v982 = vadd.f32 %v866, %v966
          %v983 = vadd.f32 %v867, %v967
          %v984 = vadd.f32 %v868, %v968
          %v985 = vadd.f32 %v869, %v969
          %v986 = vadd.f32 %v870, %v970
          %v987 = vadd.f32 %v871, %v971
          %v988 = vadd.f32 %v872, %v972
          %v989 = vadd.f32 %v873, %v973
          %v990 = vadd.f32 %v874, %v974
          %v991 = vadd.f32 %v875, %v975
          %v992 = vadd.f32 %v876, %v976
          %v993 = vadd.f32 %v877, %v977
          %v994 = vlaneseq
          %v995 = vand.u32 %v994, 127
          %s996 = smul.u32 %s32, 128
          %v997 = vstv %s996
          %v998 = vadd.s32 %v995, %v997
          %v999 = vcvt.s32.f32 %v998
          %1000 = vmin.xlane.f32.xlu0 %v978
          %v1001 = vpop.xlane.xlu0 %1000
          %1002 = vmin.xlane.f32.xlu0 %v979
          %v1003 = vpop.xlane.xlu0 %1002
          %1004 = vmin.xlane.f32.xlu0 %v980
          %v1005 = vpop.xlane.xlu0 %1004
          %1006 = vmin.xlane.f32.xlu0 %v981
          %v1007 = vpop.xlane.xlu0 %1006
          %1008 = vmin.xlane.f32.xlu0 %v982
          %v1009 = vpop.xlane.xlu0 %1008
          %1010 = vmin.xlane.f32.xlu0 %v983
          %v1011 = vpop.xlane.xlu0 %1010
          %1012 = vmin.xlane.f32.xlu0 %v984
          %v1013 = vpop.xlane.xlu0 %1012
          %1014 = vmin.xlane.f32.xlu0 %v985
          %v1015 = vpop.xlane.xlu0 %1014
          %1016 = vmin.xlane.f32.xlu0 %v986
          %v1017 = vpop.xlane.xlu0 %1016
          %1018 = vmin.xlane.f32.xlu0 %v987
          %v1019 = vpop.xlane.xlu0 %1018
          %1020 = vmin.xlane.f32.xlu0 %v988
          %v1021 = vpop.xlane.xlu0 %1020
          %1022 = vmin.xlane.f32.xlu0 %v989
          %v1023 = vpop.xlane.xlu0 %1022
          %1024 = vmin.xlane.f32.xlu0 %v990
          %v1025 = vpop.xlane.xlu0 %1024
          %1026 = vmin.xlane.f32.xlu0 %v991
          %v1027 = vpop.xlane.xlu0 %1026
          %1028 = vmin.xlane.f32.xlu0 %v992
          %v1029 = vpop.xlane.xlu0 %1028
          %1030 = vmin.xlane.f32.xlu0 %v993
          %v1031 = vpop.xlane.xlu0 %1030
          %vm1032 = vcmp.le.f32.partialorder %v978, %v1001
          %vm1033 = vcmp.le.f32.partialorder %v979, %v1003
          %vm1034 = vcmp.le.f32.partialorder %v980, %v1005
          %vm1035 = vcmp.le.f32.partialorder %v981, %v1007
          %vm1036 = vcmp.le.f32.partialorder %v982, %v1009
          %vm1037 = vcmp.le.f32.partialorder %v983, %v1011
          %vm1038 = vcmp.le.f32.partialorder %v984, %v1013
          %vm1039 = vcmp.le.f32.partialorder %v985, %v1015
          %vm1040 = vcmp.le.f32.partialorder %v986, %v1017
          %vm1041 = vcmp.le.f32.partialorder %v987, %v1019
          %vm1042 = vcmp.le.f32.partialorder %v988, %v1021
          %vm1043 = vcmp.le.f32.partialorder %v989, %v1023
          %vm1044 = vcmp.le.f32.partialorder %v990, %v1025
          %vm1045 = vcmp.le.f32.partialorder %v991, %v1027
          %vm1046 = vcmp.le.f32.partialorder %v992, %v1029
          %vm1047 = vcmp.le.f32.partialorder %v993, %v1031
          %v1048 = vsel %vm1032, %v999, 1e+18
          %v1049 = vsel %vm1033, %v999, 1e+18
          %v1050 = vsel %vm1034, %v999, 1e+18
          %v1051 = vsel %vm1035, %v999, 1e+18
          %v1052 = vsel %vm1036, %v999, 1e+18
          %v1053 = vsel %vm1037, %v999, 1e+18
          %v1054 = vsel %vm1038, %v999, 1e+18
          %v1055 = vsel %vm1039, %v999, 1e+18
          %v1056 = vsel %vm1040, %v999, 1e+18
          %v1057 = vsel %vm1041, %v999, 1e+18
          %v1058 = vsel %vm1042, %v999, 1e+18
          %v1059 = vsel %vm1043, %v999, 1e+18
          %v1060 = vsel %vm1044, %v999, 1e+18
          %v1061 = vsel %vm1045, %v999, 1e+18
          %v1062 = vsel %vm1046, %v999, 1e+18
          %v1063 = vsel %vm1047, %v999, 1e+18
          %1064 = vmin.xlane.f32.xlu0 %v1048
          %v1065 = vpop.xlane.xlu0 %1064
          %1066 = vmin.xlane.f32.xlu0 %v1049
          %v1067 = vpop.xlane.xlu0 %1066
          %1068 = vmin.xlane.f32.xlu0 %v1050
          %v1069 = vpop.xlane.xlu0 %1068
          %1070 = vmin.xlane.f32.xlu0 %v1051
          %v1071 = vpop.xlane.xlu0 %1070
          %1072 = vmin.xlane.f32.xlu0 %v1052
          %v1073 = vpop.xlane.xlu0 %1072
          %1074 = vmin.xlane.f32.xlu0 %v1053
          %v1075 = vpop.xlane.xlu0 %1074
          %1076 = vmin.xlane.f32.xlu0 %v1054
          %v1077 = vpop.xlane.xlu0 %1076
          %1078 = vmin.xlane.f32.xlu0 %v1055
          %v1079 = vpop.xlane.xlu0 %1078
          %1080 = vmin.xlane.f32.xlu0 %v1056
          %v1081 = vpop.xlane.xlu0 %1080
          %1082 = vmin.xlane.f32.xlu0 %v1057
          %v1083 = vpop.xlane.xlu0 %1082
          %1084 = vmin.xlane.f32.xlu0 %v1058
          %v1085 = vpop.xlane.xlu0 %1084
          %1086 = vmin.xlane.f32.xlu0 %v1059
          %v1087 = vpop.xlane.xlu0 %1086
          %1088 = vmin.xlane.f32.xlu0 %v1060
          %v1089 = vpop.xlane.xlu0 %1088
          %1090 = vmin.xlane.f32.xlu0 %v1061
          %v1091 = vpop.xlane.xlu0 %1090
          %1092 = vmin.xlane.f32.xlu0 %v1062
          %v1093 = vpop.xlane.xlu0 %1092
          %1094 = vmin.xlane.f32.xlu0 %v1063
          %v1095 = vpop.xlane.xlu0 %1094
          %vm1096 = vcmp.eq.f32.partialorder %v999, %v1065
          %vm1097 = vcmp.eq.f32.partialorder %v999, %v1067
          %vm1098 = vcmp.eq.f32.partialorder %v999, %v1069
          %vm1099 = vcmp.eq.f32.partialorder %v999, %v1071
          %vm1100 = vcmp.eq.f32.partialorder %v999, %v1073
          %vm1101 = vcmp.eq.f32.partialorder %v999, %v1075
          %vm1102 = vcmp.eq.f32.partialorder %v999, %v1077
          %vm1103 = vcmp.eq.f32.partialorder %v999, %v1079
          %vm1104 = vcmp.eq.f32.partialorder %v999, %v1081
          %vm1105 = vcmp.eq.f32.partialorder %v999, %v1083
          %vm1106 = vcmp.eq.f32.partialorder %v999, %v1085
          %vm1107 = vcmp.eq.f32.partialorder %v999, %v1087
          %vm1108 = vcmp.eq.f32.partialorder %v999, %v1089
          %vm1109 = vcmp.eq.f32.partialorder %v999, %v1091
          %vm1110 = vcmp.eq.f32.partialorder %v999, %v1093
          %vm1111 = vcmp.eq.f32.partialorder %v999, %v1095
          %v1112 = vsel %vm1096, 1e+30, %v978
          %v1113 = vsel %vm1097, 1e+30, %v979
          %v1114 = vsel %vm1098, 1e+30, %v980
          %v1115 = vsel %vm1099, 1e+30, %v981
          %v1116 = vsel %vm1100, 1e+30, %v982
          %v1117 = vsel %vm1101, 1e+30, %v983
          %v1118 = vsel %vm1102, 1e+30, %v984
          %v1119 = vsel %vm1103, 1e+30, %v985
          %v1120 = vsel %vm1104, 1e+30, %v986
          %v1121 = vsel %vm1105, 1e+30, %v987
          %v1122 = vsel %vm1106, 1e+30, %v988
          %v1123 = vsel %vm1107, 1e+30, %v989
          %v1124 = vsel %vm1108, 1e+30, %v990
          %v1125 = vsel %vm1109, 1e+30, %v991
          %v1126 = vsel %vm1110, 1e+30, %v992
          %v1127 = vsel %vm1111, 1e+30, %v993
          %1128 = vmin.xlane.f32.xlu0 %v1112
          %v1129 = vpop.xlane.xlu0 %1128
          %1130 = vmin.xlane.f32.xlu0 %v1113
          %v1131 = vpop.xlane.xlu0 %1130
          %1132 = vmin.xlane.f32.xlu0 %v1114
          %v1133 = vpop.xlane.xlu0 %1132
          %1134 = vmin.xlane.f32.xlu0 %v1115
          %v1135 = vpop.xlane.xlu0 %1134
          %1136 = vmin.xlane.f32.xlu0 %v1116
          %v1137 = vpop.xlane.xlu0 %1136
          %1138 = vmin.xlane.f32.xlu0 %v1117
          %v1139 = vpop.xlane.xlu0 %1138
          %1140 = vmin.xlane.f32.xlu0 %v1118
          %v1141 = vpop.xlane.xlu0 %1140
          %1142 = vmin.xlane.f32.xlu0 %v1119
          %v1143 = vpop.xlane.xlu0 %1142
          %1144 = vmin.xlane.f32.xlu0 %v1120
          %v1145 = vpop.xlane.xlu0 %1144
          %1146 = vmin.xlane.f32.xlu0 %v1121
          %v1147 = vpop.xlane.xlu0 %1146
          %1148 = vmin.xlane.f32.xlu0 %v1122
          %v1149 = vpop.xlane.xlu0 %1148
          %1150 = vmin.xlane.f32.xlu0 %v1123
          %v1151 = vpop.xlane.xlu0 %1150
          %1152 = vmin.xlane.f32.xlu0 %v1124
          %v1153 = vpop.xlane.xlu0 %1152
          %1154 = vmin.xlane.f32.xlu0 %v1125
          %v1155 = vpop.xlane.xlu0 %1154
          %1156 = vmin.xlane.f32.xlu0 %v1126
          %v1157 = vpop.xlane.xlu0 %1156
          %1158 = vmin.xlane.f32.xlu0 %v1127
          %v1159 = vpop.xlane.xlu0 %1158
          %vm1160 = vcmp.le.f32.partialorder %v1112, %v1129
          %vm1161 = vcmp.le.f32.partialorder %v1113, %v1131
          %vm1162 = vcmp.le.f32.partialorder %v1114, %v1133
          %vm1163 = vcmp.le.f32.partialorder %v1115, %v1135
          %vm1164 = vcmp.le.f32.partialorder %v1116, %v1137
          %vm1165 = vcmp.le.f32.partialorder %v1117, %v1139
          %vm1166 = vcmp.le.f32.partialorder %v1118, %v1141
          %vm1167 = vcmp.le.f32.partialorder %v1119, %v1143
          %vm1168 = vcmp.le.f32.partialorder %v1120, %v1145
          %vm1169 = vcmp.le.f32.partialorder %v1121, %v1147
          %vm1170 = vcmp.le.f32.partialorder %v1122, %v1149
          %vm1171 = vcmp.le.f32.partialorder %v1123, %v1151
          %vm1172 = vcmp.le.f32.partialorder %v1124, %v1153
          %vm1173 = vcmp.le.f32.partialorder %v1125, %v1155
          %vm1174 = vcmp.le.f32.partialorder %v1126, %v1157
          %vm1175 = vcmp.le.f32.partialorder %v1127, %v1159
          %v1176 = vsel %vm1160, %v999, 1e+18
          %v1177 = vsel %vm1161, %v999, 1e+18
          %v1178 = vsel %vm1162, %v999, 1e+18
          %v1179 = vsel %vm1163, %v999, 1e+18
          %v1180 = vsel %vm1164, %v999, 1e+18
          %v1181 = vsel %vm1165, %v999, 1e+18
          %v1182 = vsel %vm1166, %v999, 1e+18
          %v1183 = vsel %vm1167, %v999, 1e+18
          %v1184 = vsel %vm1168, %v999, 1e+18
          %v1185 = vsel %vm1169, %v999, 1e+18
          %v1186 = vsel %vm1170, %v999, 1e+18
          %v1187 = vsel %vm1171, %v999, 1e+18
          %v1188 = vsel %vm1172, %v999, 1e+18
          %v1189 = vsel %vm1173, %v999, 1e+18
          %v1190 = vsel %vm1174, %v999, 1e+18
          %v1191 = vsel %vm1175, %v999, 1e+18
          %1192 = vmin.xlane.f32.xlu0 %v1176
          %v1193 = vpop.xlane.xlu0 %1192
          %1194 = vmin.xlane.f32.xlu0 %v1177
          %v1195 = vpop.xlane.xlu0 %1194
          %1196 = vmin.xlane.f32.xlu0 %v1178
          %v1197 = vpop.xlane.xlu0 %1196
          %1198 = vmin.xlane.f32.xlu0 %v1179
          %v1199 = vpop.xlane.xlu0 %1198
          %1200 = vmin.xlane.f32.xlu0 %v1180
          %v1201 = vpop.xlane.xlu0 %1200
          %1202 = vmin.xlane.f32.xlu0 %v1181
          %v1203 = vpop.xlane.xlu0 %1202
          %1204 = vmin.xlane.f32.xlu0 %v1182
          %v1205 = vpop.xlane.xlu0 %1204
          %1206 = vmin.xlane.f32.xlu0 %v1183
          %v1207 = vpop.xlane.xlu0 %1206
          %1208 = vmin.xlane.f32.xlu0 %v1184
          %v1209 = vpop.xlane.xlu0 %1208
          %1210 = vmin.xlane.f32.xlu0 %v1185
          %v1211 = vpop.xlane.xlu0 %1210
          %1212 = vmin.xlane.f32.xlu0 %v1186
          %v1213 = vpop.xlane.xlu0 %1212
          %1214 = vmin.xlane.f32.xlu0 %v1187
          %v1215 = vpop.xlane.xlu0 %1214
          %1216 = vmin.xlane.f32.xlu0 %v1188
          %v1217 = vpop.xlane.xlu0 %1216
          %1218 = vmin.xlane.f32.xlu0 %v1189
          %v1219 = vpop.xlane.xlu0 %1218
          %1220 = vmin.xlane.f32.xlu0 %v1190
          %v1221 = vpop.xlane.xlu0 %1220
          %1222 = vmin.xlane.f32.xlu0 %v1191
          %v1223 = vpop.xlane.xlu0 %1222
          %vm1224 = vcmp.eq.f32.partialorder %v999, %v1193
          %vm1225 = vcmp.eq.f32.partialorder %v999, %v1195
          %vm1226 = vcmp.eq.f32.partialorder %v999, %v1197
          %vm1227 = vcmp.eq.f32.partialorder %v999, %v1199
          %vm1228 = vcmp.eq.f32.partialorder %v999, %v1201
          %vm1229 = vcmp.eq.f32.partialorder %v999, %v1203
          %vm1230 = vcmp.eq.f32.partialorder %v999, %v1205
          %vm1231 = vcmp.eq.f32.partialorder %v999, %v1207
          %vm1232 = vcmp.eq.f32.partialorder %v999, %v1209
          %vm1233 = vcmp.eq.f32.partialorder %v999, %v1211
          %vm1234 = vcmp.eq.f32.partialorder %v999, %v1213
          %vm1235 = vcmp.eq.f32.partialorder %v999, %v1215
          %vm1236 = vcmp.eq.f32.partialorder %v999, %v1217
          %vm1237 = vcmp.eq.f32.partialorder %v999, %v1219
          %vm1238 = vcmp.eq.f32.partialorder %v999, %v1221
          %vm1239 = vcmp.eq.f32.partialorder %v999, %v1223
          %v1240 = vsel %vm1224, 1e+30, %v1112
          %v1241 = vsel %vm1225, 1e+30, %v1113
          %v1242 = vsel %vm1226, 1e+30, %v1114
          %v1243 = vsel %vm1227, 1e+30, %v1115
          %v1244 = vsel %vm1228, 1e+30, %v1116
          %v1245 = vsel %vm1229, 1e+30, %v1117
          %v1246 = vsel %vm1230, 1e+30, %v1118
          %v1247 = vsel %vm1231, 1e+30, %v1119
          %v1248 = vsel %vm1232, 1e+30, %v1120
          %v1249 = vsel %vm1233, 1e+30, %v1121
          %v1250 = vsel %vm1234, 1e+30, %v1122
          %v1251 = vsel %vm1235, 1e+30, %v1123
          %v1252 = vsel %vm1236, 1e+30, %v1124
          %v1253 = vsel %vm1237, 1e+30, %v1125
          %v1254 = vsel %vm1238, 1e+30, %v1126
          %v1255 = vsel %vm1239, 1e+30, %v1127
          %1256 = vmin.xlane.f32.xlu0 %v1240
          %v1257 = vpop.xlane.xlu0 %1256
          %1258 = vmin.xlane.f32.xlu0 %v1241
          %v1259 = vpop.xlane.xlu0 %1258
          %1260 = vmin.xlane.f32.xlu0 %v1242
          %v1261 = vpop.xlane.xlu0 %1260
          %1262 = vmin.xlane.f32.xlu0 %v1243
          %v1263 = vpop.xlane.xlu0 %1262
          %1264 = vmin.xlane.f32.xlu0 %v1244
          %v1265 = vpop.xlane.xlu0 %1264
          %1266 = vmin.xlane.f32.xlu0 %v1245
          %v1267 = vpop.xlane.xlu0 %1266
          %1268 = vmin.xlane.f32.xlu0 %v1246
          %v1269 = vpop.xlane.xlu0 %1268
          %1270 = vmin.xlane.f32.xlu0 %v1247
          %v1271 = vpop.xlane.xlu0 %1270
          %1272 = vmin.xlane.f32.xlu0 %v1248
          %v1273 = vpop.xlane.xlu0 %1272
          %1274 = vmin.xlane.f32.xlu0 %v1249
          %v1275 = vpop.xlane.xlu0 %1274
          %1276 = vmin.xlane.f32.xlu0 %v1250
          %v1277 = vpop.xlane.xlu0 %1276
          %1278 = vmin.xlane.f32.xlu0 %v1251
          %v1279 = vpop.xlane.xlu0 %1278
          %1280 = vmin.xlane.f32.xlu0 %v1252
          %v1281 = vpop.xlane.xlu0 %1280
          %1282 = vmin.xlane.f32.xlu0 %v1253
          %v1283 = vpop.xlane.xlu0 %1282
          %1284 = vmin.xlane.f32.xlu0 %v1254
          %v1285 = vpop.xlane.xlu0 %1284
          %1286 = vmin.xlane.f32.xlu0 %v1255
          %v1287 = vpop.xlane.xlu0 %1286
          %vm1288 = vcmp.le.f32.partialorder %v1240, %v1257
          %vm1289 = vcmp.le.f32.partialorder %v1241, %v1259
          %vm1290 = vcmp.le.f32.partialorder %v1242, %v1261
          %vm1291 = vcmp.le.f32.partialorder %v1243, %v1263
          %vm1292 = vcmp.le.f32.partialorder %v1244, %v1265
          %vm1293 = vcmp.le.f32.partialorder %v1245, %v1267
          %vm1294 = vcmp.le.f32.partialorder %v1246, %v1269
          %vm1295 = vcmp.le.f32.partialorder %v1247, %v1271
          %vm1296 = vcmp.le.f32.partialorder %v1248, %v1273
          %vm1297 = vcmp.le.f32.partialorder %v1249, %v1275
          %vm1298 = vcmp.le.f32.partialorder %v1250, %v1277
          %vm1299 = vcmp.le.f32.partialorder %v1251, %v1279
          %vm1300 = vcmp.le.f32.partialorder %v1252, %v1281
          %vm1301 = vcmp.le.f32.partialorder %v1253, %v1283
          %vm1302 = vcmp.le.f32.partialorder %v1254, %v1285
          %vm1303 = vcmp.le.f32.partialorder %v1255, %v1287
          %v1304 = vsel %vm1288, %v999, 1e+18
          %v1305 = vsel %vm1289, %v999, 1e+18
          %v1306 = vsel %vm1290, %v999, 1e+18
          %v1307 = vsel %vm1291, %v999, 1e+18
          %v1308 = vsel %vm1292, %v999, 1e+18
          %v1309 = vsel %vm1293, %v999, 1e+18
          %v1310 = vsel %vm1294, %v999, 1e+18
          %v1311 = vsel %vm1295, %v999, 1e+18
          %v1312 = vsel %vm1296, %v999, 1e+18
          %v1313 = vsel %vm1297, %v999, 1e+18
          %v1314 = vsel %vm1298, %v999, 1e+18
          %v1315 = vsel %vm1299, %v999, 1e+18
          %v1316 = vsel %vm1300, %v999, 1e+18
          %v1317 = vsel %vm1301, %v999, 1e+18
          %v1318 = vsel %vm1302, %v999, 1e+18
          %v1319 = vsel %vm1303, %v999, 1e+18
          %1320 = vmin.xlane.f32.xlu0 %v1304
          %v1321 = vpop.xlane.xlu0 %1320
          %1322 = vmin.xlane.f32.xlu0 %v1305
          %v1323 = vpop.xlane.xlu0 %1322
          %1324 = vmin.xlane.f32.xlu0 %v1306
          %v1325 = vpop.xlane.xlu0 %1324
          %1326 = vmin.xlane.f32.xlu0 %v1307
          %v1327 = vpop.xlane.xlu0 %1326
          %1328 = vmin.xlane.f32.xlu0 %v1308
          %v1329 = vpop.xlane.xlu0 %1328
          %1330 = vmin.xlane.f32.xlu0 %v1309
          %v1331 = vpop.xlane.xlu0 %1330
          %1332 = vmin.xlane.f32.xlu0 %v1310
          %v1333 = vpop.xlane.xlu0 %1332
          %1334 = vmin.xlane.f32.xlu0 %v1311
          %v1335 = vpop.xlane.xlu0 %1334
          %1336 = vmin.xlane.f32.xlu0 %v1312
          %v1337 = vpop.xlane.xlu0 %1336
          %1338 = vmin.xlane.f32.xlu0 %v1313
          %v1339 = vpop.xlane.xlu0 %1338
          %1340 = vmin.xlane.f32.xlu0 %v1314
          %v1341 = vpop.xlane.xlu0 %1340
          %1342 = vmin.xlane.f32.xlu0 %v1315
          %v1343 = vpop.xlane.xlu0 %1342
          %1344 = vmin.xlane.f32.xlu0 %v1316
          %v1345 = vpop.xlane.xlu0 %1344
          %1346 = vmin.xlane.f32.xlu0 %v1317
          %v1347 = vpop.xlane.xlu0 %1346
          %1348 = vmin.xlane.f32.xlu0 %v1318
          %v1349 = vpop.xlane.xlu0 %1348
          %1350 = vmin.xlane.f32.xlu0 %v1319
          %v1351 = vpop.xlane.xlu0 %1350
          %v1352 = vld [vmem:[#allocation2] sm:$0xff]
          %v1353 = vld [vmem:[#allocation2 + $0x8] sm:$0xff]
          %v1354 = vld [vmem:[#allocation2 + $0x10] sm:$0xff]
          %v1355 = vld [vmem:[#allocation2 + $0x18] sm:$0xff]
          %v1356 = vld [vmem:[#allocation2 + $0x20] sm:$0xff]
          %v1357 = vld [vmem:[#allocation2 + $0x28] sm:$0xff]
          %v1358 = vld [vmem:[#allocation2 + $0x30] sm:$0xff]
          %v1359 = vld [vmem:[#allocation2 + $0x38] sm:$0xff]
          %v1360 = vld [vmem:[#allocation2 + $0x40] sm:$0xff]
          %v1361 = vld [vmem:[#allocation2 + $0x48] sm:$0xff]
          %v1362 = vld [vmem:[#allocation2 + $0x50] sm:$0xff]
          %v1363 = vld [vmem:[#allocation2 + $0x58] sm:$0xff]
          %v1364 = vld [vmem:[#allocation2 + $0x60] sm:$0xff]
          %v1365 = vld [vmem:[#allocation2 + $0x68] sm:$0xff]
          %v1366 = vld [vmem:[#allocation2 + $0x70] sm:$0xff]
          %v1367 = vld [vmem:[#allocation2 + $0x78] sm:$0xff]
          %v1368 = vld [vmem:[#allocation3] sm:$0xff]
          %v1369 = vld [vmem:[#allocation3 + $0x8] sm:$0xff]
          %v1370 = vld [vmem:[#allocation3 + $0x10] sm:$0xff]
          %v1371 = vld [vmem:[#allocation3 + $0x18] sm:$0xff]
          %v1372 = vld [vmem:[#allocation3 + $0x20] sm:$0xff]
          %v1373 = vld [vmem:[#allocation3 + $0x28] sm:$0xff]
          %v1374 = vld [vmem:[#allocation3 + $0x30] sm:$0xff]
          %v1375 = vld [vmem:[#allocation3 + $0x38] sm:$0xff]
          %v1376 = vld [vmem:[#allocation3 + $0x40] sm:$0xff]
          %v1377 = vld [vmem:[#allocation3 + $0x48] sm:$0xff]
          %v1378 = vld [vmem:[#allocation3 + $0x50] sm:$0xff]
          %v1379 = vld [vmem:[#allocation3 + $0x58] sm:$0xff]
          %v1380 = vld [vmem:[#allocation3 + $0x60] sm:$0xff]
          %v1381 = vld [vmem:[#allocation3 + $0x68] sm:$0xff]
          %v1382 = vld [vmem:[#allocation3 + $0x70] sm:$0xff]
          %v1383 = vld [vmem:[#allocation3 + $0x78] sm:$0xff]
          %vm1384 = vcmp.eq.s32.totalorder %v995, 3
          %v1385 = vsel %vm1384, %v1001, %v1352
          %v1386 = vsel %vm1384, %v1003, %v1353
          %v1387 = vsel %vm1384, %v1005, %v1354
          %v1388 = vsel %vm1384, %v1007, %v1355
          %v1389 = vsel %vm1384, %v1009, %v1356
          %v1390 = vsel %vm1384, %v1011, %v1357
          %v1391 = vsel %vm1384, %v1013, %v1358
          %v1392 = vsel %vm1384, %v1015, %v1359
          %v1393 = vsel %vm1384, %v1017, %v1360
          %v1394 = vsel %vm1384, %v1019, %v1361
          %v1395 = vsel %vm1384, %v1021, %v1362
          %v1396 = vsel %vm1384, %v1023, %v1363
          %v1397 = vsel %vm1384, %v1025, %v1364
          %v1398 = vsel %vm1384, %v1027, %v1365
          %v1399 = vsel %vm1384, %v1029, %v1366
          %v1400 = vsel %vm1384, %v1031, %v1367
          %v1401 = vsel %vm1384, %v1065, %v1368
          %v1402 = vsel %vm1384, %v1067, %v1369
          %v1403 = vsel %vm1384, %v1069, %v1370
          %v1404 = vsel %vm1384, %v1071, %v1371
          %v1405 = vsel %vm1384, %v1073, %v1372
          %v1406 = vsel %vm1384, %v1075, %v1373
          %v1407 = vsel %vm1384, %v1077, %v1374
          %v1408 = vsel %vm1384, %v1079, %v1375
          %v1409 = vsel %vm1384, %v1081, %v1376
          %v1410 = vsel %vm1384, %v1083, %v1377
          %v1411 = vsel %vm1384, %v1085, %v1378
          %v1412 = vsel %vm1384, %v1087, %v1379
          %v1413 = vsel %vm1384, %v1089, %v1380
          %v1414 = vsel %vm1384, %v1091, %v1381
          %v1415 = vsel %vm1384, %v1093, %v1382
          %v1416 = vsel %vm1384, %v1095, %v1383
          %vm1417 = vcmp.eq.s32.totalorder %v995, 4
          %v1418 = vsel %vm1417, %v1129, %v1385
          %v1419 = vsel %vm1417, %v1131, %v1386
          %v1420 = vsel %vm1417, %v1133, %v1387
          %v1421 = vsel %vm1417, %v1135, %v1388
          %v1422 = vsel %vm1417, %v1137, %v1389
          %v1423 = vsel %vm1417, %v1139, %v1390
          %v1424 = vsel %vm1417, %v1141, %v1391
          %v1425 = vsel %vm1417, %v1143, %v1392
          %v1426 = vsel %vm1417, %v1145, %v1393
          %v1427 = vsel %vm1417, %v1147, %v1394
          %v1428 = vsel %vm1417, %v1149, %v1395
          %v1429 = vsel %vm1417, %v1151, %v1396
          %v1430 = vsel %vm1417, %v1153, %v1397
          %v1431 = vsel %vm1417, %v1155, %v1398
          %v1432 = vsel %vm1417, %v1157, %v1399
          %v1433 = vsel %vm1417, %v1159, %v1400
          %v1434 = vsel %vm1417, %v1193, %v1401
          %v1435 = vsel %vm1417, %v1195, %v1402
          %v1436 = vsel %vm1417, %v1197, %v1403
          %v1437 = vsel %vm1417, %v1199, %v1404
          %v1438 = vsel %vm1417, %v1201, %v1405
          %v1439 = vsel %vm1417, %v1203, %v1406
          %v1440 = vsel %vm1417, %v1205, %v1407
          %v1441 = vsel %vm1417, %v1207, %v1408
          %v1442 = vsel %vm1417, %v1209, %v1409
          %v1443 = vsel %vm1417, %v1211, %v1410
          %v1444 = vsel %vm1417, %v1213, %v1411
          %v1445 = vsel %vm1417, %v1215, %v1412
          %v1446 = vsel %vm1417, %v1217, %v1413
          %v1447 = vsel %vm1417, %v1219, %v1414
          %v1448 = vsel %vm1417, %v1221, %v1415
          %v1449 = vsel %vm1417, %v1223, %v1416
          %vm1450 = vcmp.eq.s32.totalorder %v995, 5
          %v1451 = vsel %vm1450, %v1257, %v1418
          %v1452 = vsel %vm1450, %v1259, %v1419
          %v1453 = vsel %vm1450, %v1261, %v1420
          %v1454 = vsel %vm1450, %v1263, %v1421
          %v1455 = vsel %vm1450, %v1265, %v1422
          %v1456 = vsel %vm1450, %v1267, %v1423
          %v1457 = vsel %vm1450, %v1269, %v1424
          %v1458 = vsel %vm1450, %v1271, %v1425
          %v1459 = vsel %vm1450, %v1273, %v1426
          %v1460 = vsel %vm1450, %v1275, %v1427
          %v1461 = vsel %vm1450, %v1277, %v1428
          %v1462 = vsel %vm1450, %v1279, %v1429
          %v1463 = vsel %vm1450, %v1281, %v1430
          %v1464 = vsel %vm1450, %v1283, %v1431
          %v1465 = vsel %vm1450, %v1285, %v1432
          %v1466 = vsel %vm1450, %v1287, %v1433
          %v1467 = vsel %vm1450, %v1321, %v1434
          %v1468 = vsel %vm1450, %v1323, %v1435
          %v1469 = vsel %vm1450, %v1325, %v1436
          %v1470 = vsel %vm1450, %v1327, %v1437
          %v1471 = vsel %vm1450, %v1329, %v1438
          %v1472 = vsel %vm1450, %v1331, %v1439
          %v1473 = vsel %vm1450, %v1333, %v1440
          %v1474 = vsel %vm1450, %v1335, %v1441
          %v1475 = vsel %vm1450, %v1337, %v1442
          %v1476 = vsel %vm1450, %v1339, %v1443
          %v1477 = vsel %vm1450, %v1341, %v1444
          %v1478 = vsel %vm1450, %v1343, %v1445
          %v1479 = vsel %vm1450, %v1345, %v1446
          %v1480 = vsel %vm1450, %v1347, %v1447
          %v1481 = vsel %vm1450, %v1349, %v1448
          %v1482 = vsel %vm1450, %v1351, %v1449
          %v1483 = vcvt.s32.f32 %v995
          %v1484 = vadd.f32 %v1483, 1.0
          %v1485 = vsub.f32 0.0, %v1484
          %1486 = vmin.xlane.f32.xlu0 %v1451
          %v1487 = vpop.xlane.xlu0 %1486
          %1488 = vmin.xlane.f32.xlu0 %v1452
          %v1489 = vpop.xlane.xlu0 %1488
          %1490 = vmin.xlane.f32.xlu0 %v1453
          %v1491 = vpop.xlane.xlu0 %1490
          %1492 = vmin.xlane.f32.xlu0 %v1454
          %v1493 = vpop.xlane.xlu0 %1492
          %1494 = vmin.xlane.f32.xlu0 %v1455
          %v1495 = vpop.xlane.xlu0 %1494
          %1496 = vmin.xlane.f32.xlu0 %v1456
          %v1497 = vpop.xlane.xlu0 %1496
          %1498 = vmin.xlane.f32.xlu0 %v1457
          %v1499 = vpop.xlane.xlu0 %1498
          %1500 = vmin.xlane.f32.xlu0 %v1458
          %v1501 = vpop.xlane.xlu0 %1500
          %1502 = vmin.xlane.f32.xlu0 %v1459
          %v1503 = vpop.xlane.xlu0 %1502
          %1504 = vmin.xlane.f32.xlu0 %v1460
          %v1505 = vpop.xlane.xlu0 %1504
          %1506 = vmin.xlane.f32.xlu0 %v1461
          %v1507 = vpop.xlane.xlu0 %1506
          %1508 = vmin.xlane.f32.xlu0 %v1462
          %v1509 = vpop.xlane.xlu0 %1508
          %1510 = vmin.xlane.f32.xlu0 %v1463
          %v1511 = vpop.xlane.xlu0 %1510
          %1512 = vmin.xlane.f32.xlu0 %v1464
          %v1513 = vpop.xlane.xlu0 %1512
          %1514 = vmin.xlane.f32.xlu0 %v1465
          %v1515 = vpop.xlane.xlu0 %1514
          %1516 = vmin.xlane.f32.xlu0 %v1466
          %v1517 = vpop.xlane.xlu0 %1516
          %vm1518 = vcmp.le.f32.partialorder %v1451, %v1487
          %vm1519 = vcmp.le.f32.partialorder %v1452, %v1489
          %vm1520 = vcmp.le.f32.partialorder %v1453, %v1491
          %vm1521 = vcmp.le.f32.partialorder %v1454, %v1493
          %vm1522 = vcmp.le.f32.partialorder %v1455, %v1495
          %vm1523 = vcmp.le.f32.partialorder %v1456, %v1497
          %vm1524 = vcmp.le.f32.partialorder %v1457, %v1499
          %vm1525 = vcmp.le.f32.partialorder %v1458, %v1501
          %vm1526 = vcmp.le.f32.partialorder %v1459, %v1503
          %vm1527 = vcmp.le.f32.partialorder %v1460, %v1505
          %vm1528 = vcmp.le.f32.partialorder %v1461, %v1507
          %vm1529 = vcmp.le.f32.partialorder %v1462, %v1509
          %vm1530 = vcmp.le.f32.partialorder %v1463, %v1511
          %vm1531 = vcmp.le.f32.partialorder %v1464, %v1513
          %vm1532 = vcmp.le.f32.partialorder %v1465, %v1515
          %vm1533 = vcmp.le.f32.partialorder %v1466, %v1517
          %v1534 = vsel %vm1518, %v1467, 1e+18
          %v1535 = vsel %vm1519, %v1468, 1e+18
          %v1536 = vsel %vm1520, %v1469, 1e+18
          %v1537 = vsel %vm1521, %v1470, 1e+18
          %v1538 = vsel %vm1522, %v1471, 1e+18
          %v1539 = vsel %vm1523, %v1472, 1e+18
          %v1540 = vsel %vm1524, %v1473, 1e+18
          %v1541 = vsel %vm1525, %v1474, 1e+18
          %v1542 = vsel %vm1526, %v1475, 1e+18
          %v1543 = vsel %vm1527, %v1476, 1e+18
          %v1544 = vsel %vm1528, %v1477, 1e+18
          %v1545 = vsel %vm1529, %v1478, 1e+18
          %v1546 = vsel %vm1530, %v1479, 1e+18
          %v1547 = vsel %vm1531, %v1480, 1e+18
          %v1548 = vsel %vm1532, %v1481, 1e+18
          %v1549 = vsel %vm1533, %v1482, 1e+18
          %1550 = vmin.xlane.f32.xlu0 %v1534
          %v1551 = vpop.xlane.xlu0 %1550
          %1552 = vmin.xlane.f32.xlu0 %v1535
          %v1553 = vpop.xlane.xlu0 %1552
          %1554 = vmin.xlane.f32.xlu0 %v1536
          %v1555 = vpop.xlane.xlu0 %1554
          %1556 = vmin.xlane.f32.xlu0 %v1537
          %v1557 = vpop.xlane.xlu0 %1556
          %1558 = vmin.xlane.f32.xlu0 %v1538
          %v1559 = vpop.xlane.xlu0 %1558
          %1560 = vmin.xlane.f32.xlu0 %v1539
          %v1561 = vpop.xlane.xlu0 %1560
          %1562 = vmin.xlane.f32.xlu0 %v1540
          %v1563 = vpop.xlane.xlu0 %1562
          %1564 = vmin.xlane.f32.xlu0 %v1541
          %v1565 = vpop.xlane.xlu0 %1564
          %1566 = vmin.xlane.f32.xlu0 %v1542
          %v1567 = vpop.xlane.xlu0 %1566
          %1568 = vmin.xlane.f32.xlu0 %v1543
          %v1569 = vpop.xlane.xlu0 %1568
          %1570 = vmin.xlane.f32.xlu0 %v1544
          %v1571 = vpop.xlane.xlu0 %1570
          %1572 = vmin.xlane.f32.xlu0 %v1545
          %v1573 = vpop.xlane.xlu0 %1572
          %1574 = vmin.xlane.f32.xlu0 %v1546
          %v1575 = vpop.xlane.xlu0 %1574
          %1576 = vmin.xlane.f32.xlu0 %v1547
          %v1577 = vpop.xlane.xlu0 %1576
          %1578 = vmin.xlane.f32.xlu0 %v1548
          %v1579 = vpop.xlane.xlu0 %1578
          %1580 = vmin.xlane.f32.xlu0 %v1549
          %v1581 = vpop.xlane.xlu0 %1580
          %vm1582 = vcmp.eq.f32.partialorder %v1467, %v1551
          %vm1583 = vcmp.eq.f32.partialorder %v1468, %v1553
          %vm1584 = vcmp.eq.f32.partialorder %v1469, %v1555
          %vm1585 = vcmp.eq.f32.partialorder %v1470, %v1557
          %vm1586 = vcmp.eq.f32.partialorder %v1471, %v1559
          %vm1587 = vcmp.eq.f32.partialorder %v1472, %v1561
          %vm1588 = vcmp.eq.f32.partialorder %v1473, %v1563
          %vm1589 = vcmp.eq.f32.partialorder %v1474, %v1565
          %vm1590 = vcmp.eq.f32.partialorder %v1475, %v1567
          %vm1591 = vcmp.eq.f32.partialorder %v1476, %v1569
          %vm1592 = vcmp.eq.f32.partialorder %v1477, %v1571
          %vm1593 = vcmp.eq.f32.partialorder %v1478, %v1573
          %vm1594 = vcmp.eq.f32.partialorder %v1479, %v1575
          %vm1595 = vcmp.eq.f32.partialorder %v1480, %v1577
          %vm1596 = vcmp.eq.f32.partialorder %v1481, %v1579
          %vm1597 = vcmp.eq.f32.partialorder %v1482, %v1581
          %v1598 = vsel %vm1582, 1e+30, %v1451
          %v1599 = vsel %vm1583, 1e+30, %v1452
          %v1600 = vsel %vm1584, 1e+30, %v1453
          %v1601 = vsel %vm1585, 1e+30, %v1454
          %v1602 = vsel %vm1586, 1e+30, %v1455
          %v1603 = vsel %vm1587, 1e+30, %v1456
          %v1604 = vsel %vm1588, 1e+30, %v1457
          %v1605 = vsel %vm1589, 1e+30, %v1458
          %v1606 = vsel %vm1590, 1e+30, %v1459
          %v1607 = vsel %vm1591, 1e+30, %v1460
          %v1608 = vsel %vm1592, 1e+30, %v1461
          %v1609 = vsel %vm1593, 1e+30, %v1462
          %v1610 = vsel %vm1594, 1e+30, %v1463
          %v1611 = vsel %vm1595, 1e+30, %v1464
          %v1612 = vsel %vm1596, 1e+30, %v1465
          %v1613 = vsel %vm1597, 1e+30, %v1466
          %vm1614 = vcmp.eq.s32.totalorder %v995, 0
          %v1615 = vsel %vm1614, %v1487, 1e+30
          %v1616 = vsel %vm1614, %v1489, 1e+30
          %v1617 = vsel %vm1614, %v1491, 1e+30
          %v1618 = vsel %vm1614, %v1493, 1e+30
          %v1619 = vsel %vm1614, %v1495, 1e+30
          %v1620 = vsel %vm1614, %v1497, 1e+30
          %v1621 = vsel %vm1614, %v1499, 1e+30
          %v1622 = vsel %vm1614, %v1501, 1e+30
          %v1623 = vsel %vm1614, %v1503, 1e+30
          %v1624 = vsel %vm1614, %v1505, 1e+30
          %v1625 = vsel %vm1614, %v1507, 1e+30
          %v1626 = vsel %vm1614, %v1509, 1e+30
          %v1627 = vsel %vm1614, %v1511, 1e+30
          %v1628 = vsel %vm1614, %v1513, 1e+30
          %v1629 = vsel %vm1614, %v1515, 1e+30
          %v1630 = vsel %vm1614, %v1517, 1e+30
          %v1631 = vsel %vm1614, %v1551, %v1485
          %v1632 = vsel %vm1614, %v1553, %v1485
          %v1633 = vsel %vm1614, %v1555, %v1485
          %v1634 = vsel %vm1614, %v1557, %v1485
          %v1635 = vsel %vm1614, %v1559, %v1485
          %v1636 = vsel %vm1614, %v1561, %v1485
          %v1637 = vsel %vm1614, %v1563, %v1485
          %v1638 = vsel %vm1614, %v1565, %v1485
          %v1639 = vsel %vm1614, %v1567, %v1485
          %v1640 = vsel %vm1614, %v1569, %v1485
          %v1641 = vsel %vm1614, %v1571, %v1485
          %v1642 = vsel %vm1614, %v1573, %v1485
          %v1643 = vsel %vm1614, %v1575, %v1485
          %v1644 = vsel %vm1614, %v1577, %v1485
          %v1645 = vsel %vm1614, %v1579, %v1485
          %v1646 = vsel %vm1614, %v1581, %v1485
          %1647 = vmin.xlane.f32.xlu0 %v1598
          %v1648 = vpop.xlane.xlu0 %1647
          %1649 = vmin.xlane.f32.xlu0 %v1599
          %v1650 = vpop.xlane.xlu0 %1649
          %1651 = vmin.xlane.f32.xlu0 %v1600
          %v1652 = vpop.xlane.xlu0 %1651
          %1653 = vmin.xlane.f32.xlu0 %v1601
          %v1654 = vpop.xlane.xlu0 %1653
          %1655 = vmin.xlane.f32.xlu0 %v1602
          %v1656 = vpop.xlane.xlu0 %1655
          %1657 = vmin.xlane.f32.xlu0 %v1603
          %v1658 = vpop.xlane.xlu0 %1657
          %1659 = vmin.xlane.f32.xlu0 %v1604
          %v1660 = vpop.xlane.xlu0 %1659
          %1661 = vmin.xlane.f32.xlu0 %v1605
          %v1662 = vpop.xlane.xlu0 %1661
          %1663 = vmin.xlane.f32.xlu0 %v1606
          %v1664 = vpop.xlane.xlu0 %1663
          %1665 = vmin.xlane.f32.xlu0 %v1607
          %v1666 = vpop.xlane.xlu0 %1665
          %1667 = vmin.xlane.f32.xlu0 %v1608
          %v1668 = vpop.xlane.xlu0 %1667
          %1669 = vmin.xlane.f32.xlu0 %v1609
          %v1670 = vpop.xlane.xlu0 %1669
          %1671 = vmin.xlane.f32.xlu0 %v1610
          %v1672 = vpop.xlane.xlu0 %1671
          %1673 = vmin.xlane.f32.xlu0 %v1611
          %v1674 = vpop.xlane.xlu0 %1673
          %1675 = vmin.xlane.f32.xlu0 %v1612
          %v1676 = vpop.xlane.xlu0 %1675
          %1677 = vmin.xlane.f32.xlu0 %v1613
          %v1678 = vpop.xlane.xlu0 %1677
          %vm1679 = vcmp.le.f32.partialorder %v1598, %v1648
          %vm1680 = vcmp.le.f32.partialorder %v1599, %v1650
          %vm1681 = vcmp.le.f32.partialorder %v1600, %v1652
          %vm1682 = vcmp.le.f32.partialorder %v1601, %v1654
          %vm1683 = vcmp.le.f32.partialorder %v1602, %v1656
          %vm1684 = vcmp.le.f32.partialorder %v1603, %v1658
          %vm1685 = vcmp.le.f32.partialorder %v1604, %v1660
          %vm1686 = vcmp.le.f32.partialorder %v1605, %v1662
          %vm1687 = vcmp.le.f32.partialorder %v1606, %v1664
          %vm1688 = vcmp.le.f32.partialorder %v1607, %v1666
          %vm1689 = vcmp.le.f32.partialorder %v1608, %v1668
          %vm1690 = vcmp.le.f32.partialorder %v1609, %v1670
          %vm1691 = vcmp.le.f32.partialorder %v1610, %v1672
          %vm1692 = vcmp.le.f32.partialorder %v1611, %v1674
          %vm1693 = vcmp.le.f32.partialorder %v1612, %v1676
          %vm1694 = vcmp.le.f32.partialorder %v1613, %v1678
          %v1695 = vsel %vm1679, %v1467, 1e+18
          %v1696 = vsel %vm1680, %v1468, 1e+18
          %v1697 = vsel %vm1681, %v1469, 1e+18
          %v1698 = vsel %vm1682, %v1470, 1e+18
          %v1699 = vsel %vm1683, %v1471, 1e+18
          %v1700 = vsel %vm1684, %v1472, 1e+18
          %v1701 = vsel %vm1685, %v1473, 1e+18
          %v1702 = vsel %vm1686, %v1474, 1e+18
          %v1703 = vsel %vm1687, %v1475, 1e+18
          %v1704 = vsel %vm1688, %v1476, 1e+18
          %v1705 = vsel %vm1689, %v1477, 1e+18
          %v1706 = vsel %vm1690, %v1478, 1e+18
          %v1707 = vsel %vm1691, %v1479, 1e+18
          %v1708 = vsel %vm1692, %v1480, 1e+18
          %v1709 = vsel %vm1693, %v1481, 1e+18
          %v1710 = vsel %vm1694, %v1482, 1e+18
          %1711 = vmin.xlane.f32.xlu0 %v1695
          %v1712 = vpop.xlane.xlu0 %1711
          %1713 = vmin.xlane.f32.xlu0 %v1696
          %v1714 = vpop.xlane.xlu0 %1713
          %1715 = vmin.xlane.f32.xlu0 %v1697
          %v1716 = vpop.xlane.xlu0 %1715
          %1717 = vmin.xlane.f32.xlu0 %v1698
          %v1718 = vpop.xlane.xlu0 %1717
          %1719 = vmin.xlane.f32.xlu0 %v1699
          %v1720 = vpop.xlane.xlu0 %1719
          %1721 = vmin.xlane.f32.xlu0 %v1700
          %v1722 = vpop.xlane.xlu0 %1721
          %1723 = vmin.xlane.f32.xlu0 %v1701
          %v1724 = vpop.xlane.xlu0 %1723
          %1725 = vmin.xlane.f32.xlu0 %v1702
          %v1726 = vpop.xlane.xlu0 %1725
          %1727 = vmin.xlane.f32.xlu0 %v1703
          %v1728 = vpop.xlane.xlu0 %1727
          %1729 = vmin.xlane.f32.xlu0 %v1704
          %v1730 = vpop.xlane.xlu0 %1729
          %1731 = vmin.xlane.f32.xlu0 %v1705
          %v1732 = vpop.xlane.xlu0 %1731
          %1733 = vmin.xlane.f32.xlu0 %v1706
          %v1734 = vpop.xlane.xlu0 %1733
          %1735 = vmin.xlane.f32.xlu0 %v1707
          %v1736 = vpop.xlane.xlu0 %1735
          %1737 = vmin.xlane.f32.xlu0 %v1708
          %v1738 = vpop.xlane.xlu0 %1737
          %1739 = vmin.xlane.f32.xlu0 %v1709
          %v1740 = vpop.xlane.xlu0 %1739
          %1741 = vmin.xlane.f32.xlu0 %v1710
          %v1742 = vpop.xlane.xlu0 %1741
          %vm1743 = vcmp.eq.f32.partialorder %v1467, %v1712
          %vm1744 = vcmp.eq.f32.partialorder %v1468, %v1714
          %vm1745 = vcmp.eq.f32.partialorder %v1469, %v1716
          %vm1746 = vcmp.eq.f32.partialorder %v1470, %v1718
          %vm1747 = vcmp.eq.f32.partialorder %v1471, %v1720
          %vm1748 = vcmp.eq.f32.partialorder %v1472, %v1722
          %vm1749 = vcmp.eq.f32.partialorder %v1473, %v1724
          %vm1750 = vcmp.eq.f32.partialorder %v1474, %v1726
          %vm1751 = vcmp.eq.f32.partialorder %v1475, %v1728
          %vm1752 = vcmp.eq.f32.partialorder %v1476, %v1730
          %vm1753 = vcmp.eq.f32.partialorder %v1477, %v1732
          %vm1754 = vcmp.eq.f32.partialorder %v1478, %v1734
          %vm1755 = vcmp.eq.f32.partialorder %v1479, %v1736
          %vm1756 = vcmp.eq.f32.partialorder %v1480, %v1738
          %vm1757 = vcmp.eq.f32.partialorder %v1481, %v1740
          %vm1758 = vcmp.eq.f32.partialorder %v1482, %v1742
          %v1759 = vsel %vm1743, 1e+30, %v1598
          %v1760 = vsel %vm1744, 1e+30, %v1599
          %v1761 = vsel %vm1745, 1e+30, %v1600
          %v1762 = vsel %vm1746, 1e+30, %v1601
          %v1763 = vsel %vm1747, 1e+30, %v1602
          %v1764 = vsel %vm1748, 1e+30, %v1603
          %v1765 = vsel %vm1749, 1e+30, %v1604
          %v1766 = vsel %vm1750, 1e+30, %v1605
          %v1767 = vsel %vm1751, 1e+30, %v1606
          %v1768 = vsel %vm1752, 1e+30, %v1607
          %v1769 = vsel %vm1753, 1e+30, %v1608
          %v1770 = vsel %vm1754, 1e+30, %v1609
          %v1771 = vsel %vm1755, 1e+30, %v1610
          %v1772 = vsel %vm1756, 1e+30, %v1611
          %v1773 = vsel %vm1757, 1e+30, %v1612
          %v1774 = vsel %vm1758, 1e+30, %v1613
          %vm1775 = vcmp.eq.s32.totalorder %v995, 1
          %v1776 = vsel %vm1775, %v1648, %v1615
          %v1777 = vsel %vm1775, %v1650, %v1616
          %v1778 = vsel %vm1775, %v1652, %v1617
          %v1779 = vsel %vm1775, %v1654, %v1618
          %v1780 = vsel %vm1775, %v1656, %v1619
          %v1781 = vsel %vm1775, %v1658, %v1620
          %v1782 = vsel %vm1775, %v1660, %v1621
          %v1783 = vsel %vm1775, %v1662, %v1622
          %v1784 = vsel %vm1775, %v1664, %v1623
          %v1785 = vsel %vm1775, %v1666, %v1624
          %v1786 = vsel %vm1775, %v1668, %v1625
          %v1787 = vsel %vm1775, %v1670, %v1626
          %v1788 = vsel %vm1775, %v1672, %v1627
          %v1789 = vsel %vm1775, %v1674, %v1628
          %v1790 = vsel %vm1775, %v1676, %v1629
          %v1791 = vsel %vm1775, %v1678, %v1630
          %v1792 = vsel %vm1775, %v1712, %v1631
          %v1793 = vsel %vm1775, %v1714, %v1632
          %v1794 = vsel %vm1775, %v1716, %v1633
          %v1795 = vsel %vm1775, %v1718, %v1634
          %v1796 = vsel %vm1775, %v1720, %v1635
          %v1797 = vsel %vm1775, %v1722, %v1636
          %v1798 = vsel %vm1775, %v1724, %v1637
          %v1799 = vsel %vm1775, %v1726, %v1638
          %v1800 = vsel %vm1775, %v1728, %v1639
          %v1801 = vsel %vm1775, %v1730, %v1640
          %v1802 = vsel %vm1775, %v1732, %v1641
          %v1803 = vsel %vm1775, %v1734, %v1642
          %v1804 = vsel %vm1775, %v1736, %v1643
          %v1805 = vsel %vm1775, %v1738, %v1644
          %v1806 = vsel %vm1775, %v1740, %v1645
          %v1807 = vsel %vm1775, %v1742, %v1646
          %1808 = vmin.xlane.f32.xlu0 %v1759
          %v1809 = vpop.xlane.xlu0 %1808
          %1810 = vmin.xlane.f32.xlu0 %v1760
          %v1811 = vpop.xlane.xlu0 %1810
          %1812 = vmin.xlane.f32.xlu0 %v1761
          %v1813 = vpop.xlane.xlu0 %1812
          %1814 = vmin.xlane.f32.xlu0 %v1762
          %v1815 = vpop.xlane.xlu0 %1814
          %1816 = vmin.xlane.f32.xlu0 %v1763
          %v1817 = vpop.xlane.xlu0 %1816
          %1818 = vmin.xlane.f32.xlu0 %v1764
          %v1819 = vpop.xlane.xlu0 %1818
          %1820 = vmin.xlane.f32.xlu0 %v1765
          %v1821 = vpop.xlane.xlu0 %1820
          %1822 = vmin.xlane.f32.xlu0 %v1766
          %v1823 = vpop.xlane.xlu0 %1822
          %1824 = vmin.xlane.f32.xlu0 %v1767
          %v1825 = vpop.xlane.xlu0 %1824
          %1826 = vmin.xlane.f32.xlu0 %v1768
          %v1827 = vpop.xlane.xlu0 %1826
          %1828 = vmin.xlane.f32.xlu0 %v1769
          %v1829 = vpop.xlane.xlu0 %1828
          %1830 = vmin.xlane.f32.xlu0 %v1770
          %v1831 = vpop.xlane.xlu0 %1830
          %1832 = vmin.xlane.f32.xlu0 %v1771
          %v1833 = vpop.xlane.xlu0 %1832
          %1834 = vmin.xlane.f32.xlu0 %v1772
          %v1835 = vpop.xlane.xlu0 %1834
          %1836 = vmin.xlane.f32.xlu0 %v1773
          %v1837 = vpop.xlane.xlu0 %1836
          %1838 = vmin.xlane.f32.xlu0 %v1774
          %v1839 = vpop.xlane.xlu0 %1838
          %vm1840 = vcmp.le.f32.partialorder %v1759, %v1809
          %vm1841 = vcmp.le.f32.partialorder %v1760, %v1811
          %vm1842 = vcmp.le.f32.partialorder %v1761, %v1813
          %vm1843 = vcmp.le.f32.partialorder %v1762, %v1815
          %vm1844 = vcmp.le.f32.partialorder %v1763, %v1817
          %vm1845 = vcmp.le.f32.partialorder %v1764, %v1819
          %vm1846 = vcmp.le.f32.partialorder %v1765, %v1821
          %vm1847 = vcmp.le.f32.partialorder %v1766, %v1823
          %vm1848 = vcmp.le.f32.partialorder %v1767, %v1825
          %vm1849 = vcmp.le.f32.partialorder %v1768, %v1827
          %vm1850 = vcmp.le.f32.partialorder %v1769, %v1829
          %vm1851 = vcmp.le.f32.partialorder %v1770, %v1831
          %vm1852 = vcmp.le.f32.partialorder %v1771, %v1833
          %vm1853 = vcmp.le.f32.partialorder %v1772, %v1835
          %vm1854 = vcmp.le.f32.partialorder %v1773, %v1837
          %vm1855 = vcmp.le.f32.partialorder %v1774, %v1839
          %v1856 = vsel %vm1840, %v1467, 1e+18
          %v1857 = vsel %vm1841, %v1468, 1e+18
          %v1858 = vsel %vm1842, %v1469, 1e+18
          %v1859 = vsel %vm1843, %v1470, 1e+18
          %v1860 = vsel %vm1844, %v1471, 1e+18
          %v1861 = vsel %vm1845, %v1472, 1e+18
          %v1862 = vsel %vm1846, %v1473, 1e+18
          %v1863 = vsel %vm1847, %v1474, 1e+18
          %v1864 = vsel %vm1848, %v1475, 1e+18
          %v1865 = vsel %vm1849, %v1476, 1e+18
          %v1866 = vsel %vm1850, %v1477, 1e+18
          %v1867 = vsel %vm1851, %v1478, 1e+18
          %v1868 = vsel %vm1852, %v1479, 1e+18
          %v1869 = vsel %vm1853, %v1480, 1e+18
          %v1870 = vsel %vm1854, %v1481, 1e+18
          %v1871 = vsel %vm1855, %v1482, 1e+18
          %1872 = vmin.xlane.f32.xlu0 %v1856
          %v1873 = vpop.xlane.xlu0 %1872
          %1874 = vmin.xlane.f32.xlu0 %v1857
          %v1875 = vpop.xlane.xlu0 %1874
          %1876 = vmin.xlane.f32.xlu0 %v1858
          %v1877 = vpop.xlane.xlu0 %1876
          %1878 = vmin.xlane.f32.xlu0 %v1859
          %v1879 = vpop.xlane.xlu0 %1878
          %1880 = vmin.xlane.f32.xlu0 %v1860
          %v1881 = vpop.xlane.xlu0 %1880
          %1882 = vmin.xlane.f32.xlu0 %v1861
          %v1883 = vpop.xlane.xlu0 %1882
          %1884 = vmin.xlane.f32.xlu0 %v1862
          %v1885 = vpop.xlane.xlu0 %1884
          %1886 = vmin.xlane.f32.xlu0 %v1863
          %v1887 = vpop.xlane.xlu0 %1886
          %1888 = vmin.xlane.f32.xlu0 %v1864
          %v1889 = vpop.xlane.xlu0 %1888
          %1890 = vmin.xlane.f32.xlu0 %v1865
          %v1891 = vpop.xlane.xlu0 %1890
          %1892 = vmin.xlane.f32.xlu0 %v1866
          %v1893 = vpop.xlane.xlu0 %1892
          %1894 = vmin.xlane.f32.xlu0 %v1867
          %v1895 = vpop.xlane.xlu0 %1894
          %1896 = vmin.xlane.f32.xlu0 %v1868
          %v1897 = vpop.xlane.xlu0 %1896
          %1898 = vmin.xlane.f32.xlu0 %v1869
          %v1899 = vpop.xlane.xlu0 %1898
          %1900 = vmin.xlane.f32.xlu0 %v1870
          %v1901 = vpop.xlane.xlu0 %1900
          %1902 = vmin.xlane.f32.xlu0 %v1871
          %v1903 = vpop.xlane.xlu0 %1902
          %vm1904 = vcmp.eq.s32.totalorder %v995, 2
          %v1905 = vsel %vm1904, %v1809, %v1776
          %v1906 = vsel %vm1904, %v1811, %v1777
          %v1907 = vsel %vm1904, %v1813, %v1778
          %v1908 = vsel %vm1904, %v1815, %v1779
          %v1909 = vsel %vm1904, %v1817, %v1780
          %v1910 = vsel %vm1904, %v1819, %v1781
          %v1911 = vsel %vm1904, %v1821, %v1782
          %v1912 = vsel %vm1904, %v1823, %v1783
          %v1913 = vsel %vm1904, %v1825, %v1784
          %v1914 = vsel %vm1904, %v1827, %v1785
          %v1915 = vsel %vm1904, %v1829, %v1786
          %v1916 = vsel %vm1904, %v1831, %v1787
          %v1917 = vsel %vm1904, %v1833, %v1788
          %v1918 = vsel %vm1904, %v1835, %v1789
          %v1919 = vsel %vm1904, %v1837, %v1790
          %v1920 = vsel %vm1904, %v1839, %v1791
          %v1921 = vsel %vm1904, %v1873, %v1792
          %v1922 = vsel %vm1904, %v1875, %v1793
          %v1923 = vsel %vm1904, %v1877, %v1794
          %v1924 = vsel %vm1904, %v1879, %v1795
          %v1925 = vsel %vm1904, %v1881, %v1796
          %v1926 = vsel %vm1904, %v1883, %v1797
          %v1927 = vsel %vm1904, %v1885, %v1798
          %v1928 = vsel %vm1904, %v1887, %v1799
          %v1929 = vsel %vm1904, %v1889, %v1800
          %v1930 = vsel %vm1904, %v1891, %v1801
          %v1931 = vsel %vm1904, %v1893, %v1802
          %v1932 = vsel %vm1904, %v1895, %v1803
          %v1933 = vsel %vm1904, %v1897, %v1804
          %v1934 = vsel %vm1904, %v1899, %v1805
          %v1935 = vsel %vm1904, %v1901, %v1806
          %v1936 = vsel %vm1904, %v1903, %v1807
          %1937 = vst [vmem:[#allocation2] sm:$0xff] %v1905
          %1938 = vst [vmem:[#allocation2 + $0x8] sm:$0xff] %v1906
          %1939 = vst [vmem:[#allocation2 + $0x10] sm:$0xff] %v1907
          %1940 = vst [vmem:[#allocation2 + $0x18] sm:$0xff] %v1908
          %1941 = vst [vmem:[#allocation2 + $0x20] sm:$0xff] %v1909
          %1942 = vst [vmem:[#allocation2 + $0x28] sm:$0xff] %v1910
          %1943 = vst [vmem:[#allocation2 + $0x30] sm:$0xff] %v1911
          %1944 = vst [vmem:[#allocation2 + $0x38] sm:$0xff] %v1912
          %1945 = vst [vmem:[#allocation2 + $0x40] sm:$0xff] %v1913
          %1946 = vst [vmem:[#allocation2 + $0x48] sm:$0xff] %v1914
          %1947 = vst [vmem:[#allocation2 + $0x50] sm:$0xff] %v1915
          %1948 = vst [vmem:[#allocation2 + $0x58] sm:$0xff] %v1916
          %1949 = vst [vmem:[#allocation2 + $0x60] sm:$0xff] %v1917
          %1950 = vst [vmem:[#allocation2 + $0x68] sm:$0xff] %v1918
          %1951 = vst [vmem:[#allocation2 + $0x70] sm:$0xff] %v1919
          %1952 = vst [vmem:[#allocation2 + $0x78] sm:$0xff] %v1920
          %1953 = vst [vmem:[#allocation3] sm:$0xff] %v1921
          %1954 = vst [vmem:[#allocation3 + $0x8] sm:$0xff] %v1922
          %1955 = vst [vmem:[#allocation3 + $0x10] sm:$0xff] %v1923
          %1956 = vst [vmem:[#allocation3 + $0x18] sm:$0xff] %v1924
          %1957 = vst [vmem:[#allocation3 + $0x20] sm:$0xff] %v1925
          %1958 = vst [vmem:[#allocation3 + $0x28] sm:$0xff] %v1926
          %1959 = vst [vmem:[#allocation3 + $0x30] sm:$0xff] %v1927
          %1960 = vst [vmem:[#allocation3 + $0x38] sm:$0xff] %v1928
          %1961 = vst [vmem:[#allocation3 + $0x40] sm:$0xff] %v1929
          %1962 = vst [vmem:[#allocation3 + $0x48] sm:$0xff] %v1930
          %1963 = vst [vmem:[#allocation3 + $0x50] sm:$0xff] %v1931
          %1964 = vst [vmem:[#allocation3 + $0x58] sm:$0xff] %v1932
          %1965 = vst [vmem:[#allocation3 + $0x60] sm:$0xff] %v1933
          %1966 = vst [vmem:[#allocation3 + $0x68] sm:$0xff] %v1934
          %1967 = vst [vmem:[#allocation3 + $0x70] sm:$0xff] %v1935
          %1968 = vst [vmem:[#allocation3 + $0x78] sm:$0xff] %v1936
        $region80: #{tpu_custom_call.1} parent=71 // pred_fallthru
          _
        %p1969 = scmp.eq.s32.totalorder %s32, 1
        // Predicated region
        $region81: #{tpu_custom_call.1} parent=71 // pred_check
          %p1970 = pneg %p1969
        $region82: #{tpu_custom_call.1} parent=71 // pred_check_branch
          %1972 = sbr.rel (%p1970) target = $region84
        $region83: #{tpu_custom_call.1} parent=71 // pred_region
          %v1973 = vlaneseq
          %v1974 = vand.u32 %v1973, 127
          %v1975 = vld [vmem:[#allocation2] sm:$0xff]
          %v1976 = vld [vmem:[#allocation2 + $0x8] sm:$0xff]
          %v1977 = vld [vmem:[#allocation2 + $0x10] sm:$0xff]
          %v1978 = vld [vmem:[#allocation2 + $0x18] sm:$0xff]
          %v1979 = vld [vmem:[#allocation2 + $0x20] sm:$0xff]
          %v1980 = vld [vmem:[#allocation2 + $0x28] sm:$0xff]
          %v1981 = vld [vmem:[#allocation2 + $0x30] sm:$0xff]
          %v1982 = vld [vmem:[#allocation2 + $0x38] sm:$0xff]
          %v1983 = vld [vmem:[#allocation2 + $0x40] sm:$0xff]
          %v1984 = vld [vmem:[#allocation2 + $0x48] sm:$0xff]
          %v1985 = vld [vmem:[#allocation2 + $0x50] sm:$0xff]
          %v1986 = vld [vmem:[#allocation2 + $0x58] sm:$0xff]
          %v1987 = vld [vmem:[#allocation2 + $0x60] sm:$0xff]
          %v1988 = vld [vmem:[#allocation2 + $0x68] sm:$0xff]
          %v1989 = vld [vmem:[#allocation2 + $0x70] sm:$0xff]
          %v1990 = vld [vmem:[#allocation2 + $0x78] sm:$0xff]
          %vm1991 = vcmp.lt.s32.totalorder %v1974, 3
          %v1992 = vadd.f32 %v1975, 1e-08
          %v1993 = vadd.f32 %v1976, 1e-08
          %v1994 = vadd.f32 %v1977, 1e-08
          %v1995 = vadd.f32 %v1978, 1e-08
          %v1996 = vadd.f32 %v1979, 1e-08
          %v1997 = vadd.f32 %v1980, 1e-08
          %v1998 = vadd.f32 %v1981, 1e-08
          %v1999 = vadd.f32 %v1982, 1e-08
          %v2000 = vadd.f32 %v1983, 1e-08
          %v2001 = vadd.f32 %v1984, 1e-08
          %v2002 = vadd.f32 %v1985, 1e-08
          %v2003 = vadd.f32 %v1986, 1e-08
          %v2004 = vadd.f32 %v1987, 1e-08
          %v2005 = vadd.f32 %v1988, 1e-08
          %v2006 = vadd.f32 %v1989, 1e-08
          %v2007 = vadd.f32 %v1990, 1e-08
          %v2008 = vrcp.pop %v1992
          %v2009 = vmul.f32 1.0, %v2008
          %v2010 = vrcp.pop %v1993
          %v2011 = vmul.f32 1.0, %v2010
          %v2012 = vrcp.pop %v1994
          %v2013 = vmul.f32 1.0, %v2012
          %v2014 = vrcp.pop %v1995
          %v2015 = vmul.f32 1.0, %v2014
          %v2016 = vrcp.pop %v1996
          %v2017 = vmul.f32 1.0, %v2016
          %v2018 = vrcp.pop %v1997
          %v2019 = vmul.f32 1.0, %v2018
          %v2020 = vrcp.pop %v1998
          %v2021 = vmul.f32 1.0, %v2020
          %v2022 = vrcp.pop %v1999
          %v2023 = vmul.f32 1.0, %v2022
          %v2024 = vrcp.pop %v2000
          %v2025 = vmul.f32 1.0, %v2024
          %v2026 = vrcp.pop %v2001
          %v2027 = vmul.f32 1.0, %v2026
          %v2028 = vrcp.pop %v2002
          %v2029 = vmul.f32 1.0, %v2028
          %v2030 = vrcp.pop %v2003
          %v2031 = vmul.f32 1.0, %v2030
          %v2032 = vrcp.pop %v2004
          %v2033 = vmul.f32 1.0, %v2032
          %v2034 = vrcp.pop %v2005
          %v2035 = vmul.f32 1.0, %v2034
          %v2036 = vrcp.pop %v2006
          %v2037 = vmul.f32 1.0, %v2036
          %v2038 = vrcp.pop %v2007
          %v2039 = vmul.f32 1.0, %v2038
          %v2040 = vsel %vm1991, %v2009, 0.0
          %v2041 = vsel %vm1991, %v2011, 0.0
          %v2042 = vsel %vm1991, %v2013, 0.0
          %v2043 = vsel %vm1991, %v2015, 0.0
          %v2044 = vsel %vm1991, %v2017, 0.0
          %v2045 = vsel %vm1991, %v2019, 0.0
          %v2046 = vsel %vm1991, %v2021, 0.0
          %v2047 = vsel %vm1991, %v2023, 0.0
          %v2048 = vsel %vm1991, %v2025, 0.0
          %v2049 = vsel %vm1991, %v2027, 0.0
          %v2050 = vsel %vm1991, %v2029, 0.0
          %v2051 = vsel %vm1991, %v2031, 0.0
          %v2052 = vsel %vm1991, %v2033, 0.0
          %v2053 = vsel %vm1991, %v2035, 0.0
          %v2054 = vsel %vm1991, %v2037, 0.0
          %v2055 = vsel %vm1991, %v2039, 0.0
          %2056 = vadd.xlane.f32.xlu0 %v2040
          %v2057 = vpop.xlane.xlu0 %2056
          %2058 = vadd.xlane.f32.xlu0 %v2041
          %v2059 = vpop.xlane.xlu0 %2058
          %2060 = vadd.xlane.f32.xlu0 %v2042
          %v2061 = vpop.xlane.xlu0 %2060
          %2062 = vadd.xlane.f32.xlu0 %v2043
          %v2063 = vpop.xlane.xlu0 %2062
          %2064 = vadd.xlane.f32.xlu0 %v2044
          %v2065 = vpop.xlane.xlu0 %2064
          %2066 = vadd.xlane.f32.xlu0 %v2045
          %v2067 = vpop.xlane.xlu0 %2066
          %2068 = vadd.xlane.f32.xlu0 %v2046
          %v2069 = vpop.xlane.xlu0 %2068
          %2070 = vadd.xlane.f32.xlu0 %v2047
          %v2071 = vpop.xlane.xlu0 %2070
          %2072 = vadd.xlane.f32.xlu0 %v2048
          %v2073 = vpop.xlane.xlu0 %2072
          %2074 = vadd.xlane.f32.xlu0 %v2049
          %v2075 = vpop.xlane.xlu0 %2074
          %2076 = vadd.xlane.f32.xlu0 %v2050
          %v2077 = vpop.xlane.xlu0 %2076
          %2078 = vadd.xlane.f32.xlu0 %v2051
          %v2079 = vpop.xlane.xlu0 %2078
          %2080 = vadd.xlane.f32.xlu0 %v2052
          %v2081 = vpop.xlane.xlu0 %2080
          %2082 = vadd.xlane.f32.xlu0 %v2053
          %v2083 = vpop.xlane.xlu0 %2082
          %2084 = vadd.xlane.f32.xlu0 %v2054
          %v2085 = vpop.xlane.xlu0 %2084
          %2086 = vadd.xlane.f32.xlu0 %v2055
          %v2087 = vpop.xlane.xlu0 %2086
          %v2088 = vrcp.pop %v2057
          %v2089 = vmul.f32 %v2040, %v2088
          %v2090 = vrcp.pop %v2059
          %v2091 = vmul.f32 %v2041, %v2090
          %v2092 = vrcp.pop %v2061
          %v2093 = vmul.f32 %v2042, %v2092
          %v2094 = vrcp.pop %v2063
          %v2095 = vmul.f32 %v2043, %v2094
          %v2096 = vrcp.pop %v2065
          %v2097 = vmul.f32 %v2044, %v2096
          %v2098 = vrcp.pop %v2067
          %v2099 = vmul.f32 %v2045, %v2098
          %v2100 = vrcp.pop %v2069
          %v2101 = vmul.f32 %v2046, %v2100
          %v2102 = vrcp.pop %v2071
          %v2103 = vmul.f32 %v2047, %v2102
          %v2104 = vrcp.pop %v2073
          %v2105 = vmul.f32 %v2048, %v2104
          %v2106 = vrcp.pop %v2075
          %v2107 = vmul.f32 %v2049, %v2106
          %v2108 = vrcp.pop %v2077
          %v2109 = vmul.f32 %v2050, %v2108
          %v2110 = vrcp.pop %v2079
          %v2111 = vmul.f32 %v2051, %v2110
          %v2112 = vrcp.pop %v2081
          %v2113 = vmul.f32 %v2052, %v2112
          %v2114 = vrcp.pop %v2083
          %v2115 = vmul.f32 %v2053, %v2114
          %v2116 = vrcp.pop %v2085
          %v2117 = vmul.f32 %v2054, %v2116
          %v2118 = vrcp.pop %v2087
          %v2119 = vmul.f32 %v2055, %v2118
          %2120 = vst [vmem:[#allocation2] sm:$0xff] %v2089
          %2121 = vst [vmem:[#allocation2 + $0x8] sm:$0xff] %v2091
          %2122 = vst [vmem:[#allocation2 + $0x10] sm:$0xff] %v2093
          %2123 = vst [vmem:[#allocation2 + $0x18] sm:$0xff] %v2095
          %2124 = vst [vmem:[#allocation2 + $0x20] sm:$0xff] %v2097
          %2125 = vst [vmem:[#allocation2 + $0x28] sm:$0xff] %v2099
          %2126 = vst [vmem:[#allocation2 + $0x30] sm:$0xff] %v2101
          %2127 = vst [vmem:[#allocation2 + $0x38] sm:$0xff] %v2103
          %2128 = vst [vmem:[#allocation2 + $0x40] sm:$0xff] %v2105
          %2129 = vst [vmem:[#allocation2 + $0x48] sm:$0xff] %v2107
          %2130 = vst [vmem:[#allocation2 + $0x50] sm:$0xff] %v2109
          %2131 = vst [vmem:[#allocation2 + $0x58] sm:$0xff] %v2111
          %2132 = vst [vmem:[#allocation2 + $0x60] sm:$0xff] %v2113
          %2133 = vst [vmem:[#allocation2 + $0x68] sm:$0xff] %v2115
          %2134 = vst [vmem:[#allocation2 + $0x70] sm:$0xff] %v2117
          %2135 = vst [vmem:[#allocation2 + $0x78] sm:$0xff] %v2119
        $region84: #{tpu_custom_call.1} parent=71 // pred_fallthru
          _
        %p2136 = scmp.ge.s32.totalorder %s32, 1
        // Predicated region
        $region85: #{tpu_custom_call.1} parent=71 // pred_check
          %p2137 = pneg %p2136
        $region86: #{tpu_custom_call.1} parent=71 // pred_check_branch
          %2139 = sbr.rel (%p2137) target = $region88
        $region87: #{tpu_custom_call.1} parent=71 // pred_region
          %s2140 = ssub.s32 %s32, 1
          %s2141 = smul.u32 %s2140, 128
          %s2142 = scvt.s32.f32 %s2141
          %v2143 = vld [vmem:[#allocation3] sm:$0xff]
          %v2144 = vld [vmem:[#allocation3 + $0x8] sm:$0xff]
          %v2145 = vld [vmem:[#allocation3 + $0x10] sm:$0xff]
          %v2146 = vld [vmem:[#allocation3 + $0x18] sm:$0xff]
          %v2147 = vld [vmem:[#allocation3 + $0x20] sm:$0xff]
          %v2148 = vld [vmem:[#allocation3 + $0x28] sm:$0xff]
          %v2149 = vld [vmem:[#allocation3 + $0x30] sm:$0xff]
          %v2150 = vld [vmem:[#allocation3 + $0x38] sm:$0xff]
          %v2151 = vld [vmem:[#allocation3 + $0x40] sm:$0xff]
          %v2152 = vld [vmem:[#allocation3 + $0x48] sm:$0xff]
          %v2153 = vld [vmem:[#allocation3 + $0x50] sm:$0xff]
          %v2154 = vld [vmem:[#allocation3 + $0x58] sm:$0xff]
          %v2155 = vld [vmem:[#allocation3 + $0x60] sm:$0xff]
          %v2156 = vld [vmem:[#allocation3 + $0x68] sm:$0xff]
          %v2157 = vld [vmem:[#allocation3 + $0x70] sm:$0xff]
          %v2158 = vld [vmem:[#allocation3 + $0x78] sm:$0xff]
          %v2159 = vstv %s2142
          %vm2160 = vcmp.ge.f32.partialorder %v2143, %v2159
          %vm2161 = vcmp.ge.f32.partialorder %v2144, %v2159
          %vm2162 = vcmp.ge.f32.partialorder %v2145, %v2159
          %vm2163 = vcmp.ge.f32.partialorder %v2146, %v2159
          %vm2164 = vcmp.ge.f32.partialorder %v2147, %v2159
          %vm2165 = vcmp.ge.f32.partialorder %v2148, %v2159
          %vm2166 = vcmp.ge.f32.partialorder %v2149, %v2159
          %vm2167 = vcmp.ge.f32.partialorder %v2150, %v2159
          %vm2168 = vcmp.ge.f32.partialorder %v2151, %v2159
          %vm2169 = vcmp.ge.f32.partialorder %v2152, %v2159
          %vm2170 = vcmp.ge.f32.partialorder %v2153, %v2159
          %vm2171 = vcmp.ge.f32.partialorder %v2154, %v2159
          %vm2172 = vcmp.ge.f32.partialorder %v2155, %v2159
          %vm2173 = vcmp.ge.f32.partialorder %v2156, %v2159
          %vm2174 = vcmp.ge.f32.partialorder %v2157, %v2159
          %vm2175 = vcmp.ge.f32.partialorder %v2158, %v2159
          %s2176 = sadd.f32 %s2142, 128.0
          %v2177 = vstv %s2176
          %vm2178 = vcmp.lt.f32.partialorder %v2143, %v2177
          %vm2179 = vcmp.lt.f32.partialorder %v2144, %v2177
          %vm2180 = vcmp.lt.f32.partialorder %v2145, %v2177
          %vm2181 = vcmp.lt.f32.partialorder %v2146, %v2177
          %vm2182 = vcmp.lt.f32.partialorder %v2147, %v2177
          %vm2183 = vcmp.lt.f32.partialorder %v2148, %v2177
          %vm2184 = vcmp.lt.f32.partialorder %v2149, %v2177
          %vm2185 = vcmp.lt.f32.partialorder %v2150, %v2177
          %vm2186 = vcmp.lt.f32.partialorder %v2151, %v2177
          %vm2187 = vcmp.lt.f32.partialorder %v2152, %v2177
          %vm2188 = vcmp.lt.f32.partialorder %v2153, %v2177
          %vm2189 = vcmp.lt.f32.partialorder %v2154, %v2177
          %vm2190 = vcmp.lt.f32.partialorder %v2155, %v2177
          %vm2191 = vcmp.lt.f32.partialorder %v2156, %v2177
          %vm2192 = vcmp.lt.f32.partialorder %v2157, %v2177
          %vm2193 = vcmp.lt.f32.partialorder %v2158, %v2177
          %vm2194 = vmand %vm2160, %vm2178
          %vm2195 = vmand %vm2161, %vm2179
          %vm2196 = vmand %vm2162, %vm2180
          %vm2197 = vmand %vm2163, %vm2181
          %vm2198 = vmand %vm2164, %vm2182
          %vm2199 = vmand %vm2165, %vm2183
          %vm2200 = vmand %vm2166, %vm2184
          %vm2201 = vmand %vm2167, %vm2185
          %vm2202 = vmand %vm2168, %vm2186
          %vm2203 = vmand %vm2169, %vm2187
          %vm2204 = vmand %vm2170, %vm2188
          %vm2205 = vmand %vm2171, %vm2189
          %vm2206 = vmand %vm2172, %vm2190
          %vm2207 = vmand %vm2173, %vm2191
          %vm2208 = vmand %vm2174, %vm2192
          %vm2209 = vmand %vm2175, %vm2193
          %v2210 = vsel %vm2194, 1.0, 0.0
          %v2211 = vsel %vm2195, 1.0, 0.0
          %v2212 = vsel %vm2196, 1.0, 0.0
          %v2213 = vsel %vm2197, 1.0, 0.0
          %v2214 = vsel %vm2198, 1.0, 0.0
          %v2215 = vsel %vm2199, 1.0, 0.0
          %v2216 = vsel %vm2200, 1.0, 0.0
          %v2217 = vsel %vm2201, 1.0, 0.0
          %v2218 = vsel %vm2202, 1.0, 0.0
          %v2219 = vsel %vm2203, 1.0, 0.0
          %v2220 = vsel %vm2204, 1.0, 0.0
          %v2221 = vsel %vm2205, 1.0, 0.0
          %v2222 = vsel %vm2206, 1.0, 0.0
          %v2223 = vsel %vm2207, 1.0, 0.0
          %v2224 = vsel %vm2208, 1.0, 0.0
          %v2225 = vsel %vm2209, 1.0, 0.0
          %2226 = vmax.xlane.f32.xlu0 %v2210
          %v2227 = vpop.xlane.xlu0 %2226
          %2228 = vmax.xlane.f32.xlu0 %v2211
          %v2229 = vpop.xlane.xlu0 %2228
          %2230 = vmax.xlane.f32.xlu0 %v2212
          %v2231 = vpop.xlane.xlu0 %2230
          %2232 = vmax.xlane.f32.xlu0 %v2213
          %v2233 = vpop.xlane.xlu0 %2232
          %2234 = vmax.xlane.f32.xlu0 %v2214
          %v2235 = vpop.xlane.xlu0 %2234
          %2236 = vmax.xlane.f32.xlu0 %v2215
          %v2237 = vpop.xlane.xlu0 %2236
          %2238 = vmax.xlane.f32.xlu0 %v2216
          %v2239 = vpop.xlane.xlu0 %2238
          %2240 = vmax.xlane.f32.xlu0 %v2217
          %v2241 = vpop.xlane.xlu0 %2240
          %2242 = vmax.xlane.f32.xlu0 %v2218
          %v2243 = vpop.xlane.xlu0 %2242
          %2244 = vmax.xlane.f32.xlu0 %v2219
          %v2245 = vpop.xlane.xlu0 %2244
          %2246 = vmax.xlane.f32.xlu0 %v2220
          %v2247 = vpop.xlane.xlu0 %2246
          %2248 = vmax.xlane.f32.xlu0 %v2221
          %v2249 = vpop.xlane.xlu0 %2248
          %2250 = vmax.xlane.f32.xlu0 %v2222
          %v2251 = vpop.xlane.xlu0 %2250
          %2252 = vmax.xlane.f32.xlu0 %v2223
          %v2253 = vpop.xlane.xlu0 %2252
          %2254 = vmax.xlane.f32.xlu0 %v2224
          %v2255 = vpop.xlane.xlu0 %2254
          %2256 = vmax.xlane.f32.xlu0 %v2225
          %v2257 = vpop.xlane.xlu0 %2256
          %v2258 = vmax.f32 %v2227, %v2235
          %v2259 = vmax.f32 %v2229, %v2237
          %v2260 = vmax.f32 %v2231, %v2239
          %v2261 = vmax.f32 %v2233, %v2241
          %v2262 = vmax.f32 %v2258, %v2243
          %v2263 = vmax.f32 %v2259, %v2245
          %v2264 = vmax.f32 %v2260, %v2247
          %v2265 = vmax.f32 %v2261, %v2249
          %v2266 = vmax.f32 %v2262, %v2251
          %v2267 = vmax.f32 %v2263, %v2253
          %v2268 = vmax.f32 %v2264, %v2255
          %v2269 = vmax.f32 %v2265, %v2257
          %v2270 = vmax.f32 %v2266, %v2267
          %v2271 = vmax.f32 %v2268, %v2269
          %v2272 = vmax.f32 %v2270, %v2271
          %v2273 = vrot.slane %v2272, 4
          %v2274 = vmax.f32 %v2272, %v2273
          %v2275 = vrot.slane %v2274, 2
          %v2276 = vmax.f32 %v2274, %v2275
          %v2277 = vrot.slane %v2276, 1
          %v2278 = vmax.f32 %v2276, %v2277
          %vm2279 = vcmask 0
          %2280 = vst.msk [vmem:[#allocation5] sm:$0x1] %vm2279, %v2278
          %v2281 = vld [vmem:[#allocation5] sm:$0x1]
          %s2282 = vtos %v2281
          %p2283 = scmp.gt.f32.partialorder %s2282, 0.5
          // Predicated region
          $region89: #{tpu_custom_call.1} parent=87 // pred_check
            %p2284 = pneg %p2283
          $region90: #{tpu_custom_call.1} parent=87 // pred_check_branch
            %2286 = sbr.rel (%p2284) target = $region92
          $region91: #{tpu_custom_call.1} parent=87 // pred_region
            %v2287 = vld [vmem:[%s538] sm:$0xff]
            %v2288 = vld [vmem:[%s538 + $0x8] sm:$0xff]
            %v2289 = vld [vmem:[%s538 + $0x10] sm:$0xff]
            %v2290 = vld [vmem:[%s538 + $0x18] sm:$0xff]
            %v2291 = vld [vmem:[%s538 + $0x20] sm:$0xff]
            %v2292 = vld [vmem:[%s538 + $0x28] sm:$0xff]
            %v2293 = vld [vmem:[%s538 + $0x30] sm:$0xff]
            %v2294 = vld [vmem:[%s538 + $0x38] sm:$0xff]
            %v2295 = vld [vmem:[%s538 + $0x40] sm:$0xff]
            %v2296 = vld [vmem:[%s538 + $0x48] sm:$0xff]
            %v2297 = vld [vmem:[%s538 + $0x50] sm:$0xff]
            %v2298 = vld [vmem:[%s538 + $0x58] sm:$0xff]
            %v2299 = vld [vmem:[%s538 + $0x60] sm:$0xff]
            %v2300 = vld [vmem:[%s538 + $0x68] sm:$0xff]
            %v2301 = vld [vmem:[%s538 + $0x70] sm:$0xff]
            %v2302 = vld [vmem:[%s538 + $0x78] sm:$0xff]
            %v2303 = vld [vmem:[%s4] sm:$0x1]
            %v2304 = vld [vmem:[%s5] sm:$0x1]
            %vm2305 = vcmask 261120
            %v2306 = vsel %vm2305, %v2287, 0.0
            %2307 = vadd.xlane.f32.xlu0 %v2306
            %v2308 = vpop.xlane.xlu0 %2307
            %v2309 = vsel %vm2305, %v2288, 0.0
            %2310 = vadd.xlane.f32.xlu0 %v2309
            %v2311 = vpop.xlane.xlu0 %2310
            %v2312 = vsel %vm2305, %v2289, 0.0
            %2313 = vadd.xlane.f32.xlu0 %v2312
            %v2314 = vpop.xlane.xlu0 %2313
            %v2315 = vsel %vm2305, %v2290, 0.0
            %2316 = vadd.xlane.f32.xlu0 %v2315
            %v2317 = vpop.xlane.xlu0 %2316
            %v2318 = vsel %vm2305, %v2291, 0.0
            %2319 = vadd.xlane.f32.xlu0 %v2318
            %v2320 = vpop.xlane.xlu0 %2319
            %v2321 = vsel %vm2305, %v2292, 0.0
            %2322 = vadd.xlane.f32.xlu0 %v2321
            %v2323 = vpop.xlane.xlu0 %2322
            %v2324 = vsel %vm2305, %v2293, 0.0
            %2325 = vadd.xlane.f32.xlu0 %v2324
            %v2326 = vpop.xlane.xlu0 %2325
            %v2327 = vsel %vm2305, %v2294, 0.0
            %2328 = vadd.xlane.f32.xlu0 %v2327
            %v2329 = vpop.xlane.xlu0 %2328
            %v2330 = vsel %vm2305, %v2295, 0.0
            %2331 = vadd.xlane.f32.xlu0 %v2330
            %v2332 = vpop.xlane.xlu0 %2331
            %v2333 = vsel %vm2305, %v2296, 0.0
            %2334 = vadd.xlane.f32.xlu0 %v2333
            %v2335 = vpop.xlane.xlu0 %2334
            %v2336 = vsel %vm2305, %v2297, 0.0
            %2337 = vadd.xlane.f32.xlu0 %v2336
            %v2338 = vpop.xlane.xlu0 %2337
            %v2339 = vsel %vm2305, %v2298, 0.0
            %2340 = vadd.xlane.f32.xlu0 %v2339
            %v2341 = vpop.xlane.xlu0 %2340
            %v2342 = vsel %vm2305, %v2299, 0.0
            %2343 = vadd.xlane.f32.xlu0 %v2342
            %v2344 = vpop.xlane.xlu0 %2343
            %v2345 = vsel %vm2305, %v2300, 0.0
            %2346 = vadd.xlane.f32.xlu0 %v2345
            %v2347 = vpop.xlane.xlu0 %2346
            %v2348 = vsel %vm2305, %v2301, 0.0
            %2349 = vadd.xlane.f32.xlu0 %v2348
            %v2350 = vpop.xlane.xlu0 %2349
            %v2351 = vsel %vm2305, %v2302, 0.0
            %2352 = vadd.xlane.f32.xlu0 %v2351
            %v2353 = vpop.xlane.xlu0 %2352
            %v2354 = vrcp.pop 32.0
            %v2355 = vmul.f32 %v2308, %v2354
            %v2356 = vmul.f32 %v2311, %v2354
            %v2357 = vmul.f32 %v2314, %v2354
            %v2358 = vmul.f32 %v2317, %v2354
            %v2359 = vmul.f32 %v2320, %v2354
            %v2360 = vmul.f32 %v2323, %v2354
            %v2361 = vmul.f32 %v2326, %v2354
            %v2362 = vmul.f32 %v2329, %v2354
            %v2363 = vmul.f32 %v2332, %v2354
            %v2364 = vmul.f32 %v2335, %v2354
            %v2365 = vmul.f32 %v2338, %v2354
            %v2366 = vmul.f32 %v2341, %v2354
            %v2367 = vmul.f32 %v2344, %v2354
            %v2368 = vmul.f32 %v2347, %v2354
            %v2369 = vmul.f32 %v2350, %v2354
            %v2370 = vmul.f32 %v2353, %v2354
            %v2371 = vsub.f32 %v2287, %v2355
            %v2372 = vsub.f32 %v2288, %v2356
            %v2373 = vsub.f32 %v2289, %v2357
            %v2374 = vsub.f32 %v2290, %v2358
            %v2375 = vsub.f32 %v2291, %v2359
            %v2376 = vsub.f32 %v2292, %v2360
            %v2377 = vsub.f32 %v2293, %v2361
            %v2378 = vsub.f32 %v2294, %v2362
            %v2379 = vsub.f32 %v2295, %v2363
            %v2380 = vsub.f32 %v2296, %v2364
            %v2381 = vsub.f32 %v2297, %v2365
            %v2382 = vsub.f32 %v2298, %v2366
            %v2383 = vsub.f32 %v2299, %v2367
            %v2384 = vsub.f32 %v2300, %v2368
            %v2385 = vsub.f32 %v2301, %v2369
            %v2386 = vsub.f32 %v2302, %v2370
            %v2387 = vmul.f32 %v2371, %v2371
            %v2388 = vmul.f32 %v2372, %v2372
            %v2389 = vmul.f32 %v2373, %v2373
            %v2390 = vmul.f32 %v2374, %v2374
            %v2391 = vmul.f32 %v2375, %v2375
            %v2392 = vmul.f32 %v2376, %v2376
            %v2393 = vmul.f32 %v2377, %v2377
            %v2394 = vmul.f32 %v2378, %v2378
            %v2395 = vmul.f32 %v2379, %v2379
            %v2396 = vmul.f32 %v2380, %v2380
            %v2397 = vmul.f32 %v2381, %v2381
            %v2398 = vmul.f32 %v2382, %v2382
            %v2399 = vmul.f32 %v2383, %v2383
            %v2400 = vmul.f32 %v2384, %v2384
            %v2401 = vmul.f32 %v2385, %v2385
            %v2402 = vmul.f32 %v2386, %v2386
            %v2403 = vsel %vm2305, %v2387, 0.0
            %2404 = vadd.xlane.f32.xlu0 %v2403
            %v2405 = vpop.xlane.xlu0 %2404
            %v2406 = vsel %vm2305, %v2388, 0.0
            %2407 = vadd.xlane.f32.xlu0 %v2406
            %v2408 = vpop.xlane.xlu0 %2407
            %v2409 = vsel %vm2305, %v2389, 0.0
            %2410 = vadd.xlane.f32.xlu0 %v2409
            %v2411 = vpop.xlane.xlu0 %2410
            %v2412 = vsel %vm2305, %v2390, 0.0
            %2413 = vadd.xlane.f32.xlu0 %v2412
            %v2414 = vpop.xlane.xlu0 %2413
            %v2415 = vsel %vm2305, %v2391, 0.0
            %2416 = vadd.xlane.f32.xlu0 %v2415
            %v2417 = vpop.xlane.xlu0 %2416
            %v2418 = vsel %vm2305, %v2392, 0.0
            %2419 = vadd.xlane.f32.xlu0 %v2418
            %v2420 = vpop.xlane.xlu0 %2419
            %v2421 = vsel %vm2305, %v2393, 0.0
            %2422 = vadd.xlane.f32.xlu0 %v2421
            %v2423 = vpop.xlane.xlu0 %2422
            %v2424 = vsel %vm2305, %v2394, 0.0
            %2425 = vadd.xlane.f32.xlu0 %v2424
            %v2426 = vpop.xlane.xlu0 %2425
            %v2427 = vsel %vm2305, %v2395, 0.0
            %2428 = vadd.xlane.f32.xlu0 %v2427
            %v2429 = vpop.xlane.xlu0 %2428
            %v2430 = vsel %vm2305, %v2396, 0.0
            %2431 = vadd.xlane.f32.xlu0 %v2430
            %v2432 = vpop.xlane.xlu0 %2431
            %v2433 = vsel %vm2305, %v2397, 0.0
            %2434 = vadd.xlane.f32.xlu0 %v2433
            %v2435 = vpop.xlane.xlu0 %2434
            %v2436 = vsel %vm2305, %v2398, 0.0
            %2437 = vadd.xlane.f32.xlu0 %v2436
            %v2438 = vpop.xlane.xlu0 %2437
            %v2439 = vsel %vm2305, %v2399, 0.0
            %2440 = vadd.xlane.f32.xlu0 %v2439
            %v2441 = vpop.xlane.xlu0 %2440
            %v2442 = vsel %vm2305, %v2400, 0.0
            %2443 = vadd.xlane.f32.xlu0 %v2442
            %v2444 = vpop.xlane.xlu0 %2443
            %v2445 = vsel %vm2305, %v2401, 0.0
            %2446 = vadd.xlane.f32.xlu0 %v2445
            %v2447 = vpop.xlane.xlu0 %2446
            %v2448 = vsel %vm2305, %v2402, 0.0
            %2449 = vadd.xlane.f32.xlu0 %v2448
            %v2450 = vpop.xlane.xlu0 %2449
            %v2451 = vmul.f32 %v2405, %v2354
            %v2452 = vmul.f32 %v2408, %v2354
            %v2453 = vmul.f32 %v2411, %v2354
            %v2454 = vmul.f32 %v2414, %v2354
            %v2455 = vmul.f32 %v2417, %v2354
            %v2456 = vmul.f32 %v2420, %v2354
            %v2457 = vmul.f32 %v2423, %v2354
            %v2458 = vmul.f32 %v2426, %v2354
            %v2459 = vmul.f32 %v2429, %v2354
            %v2460 = vmul.f32 %v2432, %v2354
            %v2461 = vmul.f32 %v2435, %v2354
            %v2462 = vmul.f32 %v2438, %v2354
            %v2463 = vmul.f32 %v2441, %v2354
            %v2464 = vmul.f32 %v2444, %v2354
            %v2465 = vmul.f32 %v2447, %v2354
            %v2466 = vmul.f32 %v2450, %v2354
            %v2467 = vadd.f32 %v2451, 1e-05
            %v2468 = vadd.f32 %v2452, 1e-05
            %v2469 = vadd.f32 %v2453, 1e-05
            %v2470 = vadd.f32 %v2454, 1e-05
            %v2471 = vadd.f32 %v2455, 1e-05
            %v2472 = vadd.f32 %v2456, 1e-05
            %v2473 = vadd.f32 %v2457, 1e-05
            %v2474 = vadd.f32 %v2458, 1e-05
            %v2475 = vadd.f32 %v2459, 1e-05
            %v2476 = vadd.f32 %v2460, 1e-05
            %v2477 = vadd.f32 %v2461, 1e-05
            %v2478 = vadd.f32 %v2462, 1e-05
            %v2479 = vadd.f32 %v2463, 1e-05
            %v2480 = vadd.f32 %v2464, 1e-05
            %v2481 = vadd.f32 %v2465, 1e-05
            %v2482 = vadd.f32 %v2466, 1e-05
            %v2483 = vrsqrt.pop %v2467
            %v2484 = vrsqrt.pop %v2468
            %v2485 = vrsqrt.pop %v2469
            %v2486 = vrsqrt.pop %v2470
            %v2487 = vrsqrt.pop %v2471
            %v2488 = vrsqrt.pop %v2472
            %v2489 = vrsqrt.pop %v2473
            %v2490 = vrsqrt.pop %v2474
            %v2491 = vrsqrt.pop %v2475
            %v2492 = vrsqrt.pop %v2476
            %v2493 = vrsqrt.pop %v2477
            %v2494 = vrsqrt.pop %v2478
            %v2495 = vrsqrt.pop %v2479
            %v2496 = vrsqrt.pop %v2480
            %v2497 = vrsqrt.pop %v2481
            %v2498 = vrsqrt.pop %v2482
            %v2499 = vmul.f32 %v2371, %v2483
            %v2500 = vmul.f32 %v2372, %v2484
            %v2501 = vmul.f32 %v2373, %v2485
            %v2502 = vmul.f32 %v2374, %v2486
            %v2503 = vmul.f32 %v2375, %v2487
            %v2504 = vmul.f32 %v2376, %v2488
            %v2505 = vmul.f32 %v2377, %v2489
            %v2506 = vmul.f32 %v2378, %v2490
            %v2507 = vmul.f32 %v2379, %v2491
            %v2508 = vmul.f32 %v2380, %v2492
            %v2509 = vmul.f32 %v2381, %v2493
            %v2510 = vmul.f32 %v2382, %v2494
            %v2511 = vmul.f32 %v2383, %v2495
            %v2512 = vmul.f32 %v2384, %v2496
            %v2513 = vmul.f32 %v2385, %v2497
            %v2514 = vmul.f32 %v2386, %v2498
            %v2516 = vlaneseq
            %v2517 = vshrl.u32 %v2516, 7
            %v2518 = vsub.s32 0, %v2517
            %v2519 = vrot.slane %v2303, %v2518
            %v2521 = vmul.f32 %v2499, %v2519
            %v2522 = vmul.f32 %v2500, %v2519
            %v2523 = vmul.f32 %v2501, %v2519
            %v2524 = vmul.f32 %v2502, %v2519
            %v2525 = vmul.f32 %v2503, %v2519
            %v2526 = vmul.f32 %v2504, %v2519
            %v2527 = vmul.f32 %v2505, %v2519
            %v2528 = vmul.f32 %v2506, %v2519
            %v2529 = vmul.f32 %v2507, %v2519
            %v2530 = vmul.f32 %v2508, %v2519
            %v2531 = vmul.f32 %v2509, %v2519
            %v2532 = vmul.f32 %v2510, %v2519
            %v2533 = vmul.f32 %v2511, %v2519
            %v2534 = vmul.f32 %v2512, %v2519
            %v2535 = vmul.f32 %v2513, %v2519
            %v2536 = vmul.f32 %v2514, %v2519
            %v2538 = vlaneseq
            %v2539 = vshrl.u32 %v2538, 7
            %v2540 = vsub.s32 0, %v2539
            %v2541 = vrot.slane %v2304, %v2540
            %v2543 = vadd.f32 %v2521, %v2541
            %v2544 = vadd.f32 %v2522, %v2541
            %v2545 = vadd.f32 %v2523, %v2541
            %v2546 = vadd.f32 %v2524, %v2541
            %v2547 = vadd.f32 %v2525, %v2541
            %v2548 = vadd.f32 %v2526, %v2541
            %v2549 = vadd.f32 %v2527, %v2541
            %v2550 = vadd.f32 %v2528, %v2541
            %v2551 = vadd.f32 %v2529, %v2541
            %v2552 = vadd.f32 %v2530, %v2541
            %v2553 = vadd.f32 %v2531, %v2541
            %v2554 = vadd.f32 %v2532, %v2541
            %v2555 = vadd.f32 %v2533, %v2541
            %v2556 = vadd.f32 %v2534, %v2541
            %v2557 = vadd.f32 %v2535, %v2541
            %v2558 = vadd.f32 %v2536, %v2541
            %v2559 = vld [vmem:[%s6] sm:$0xff]
            %v2560 = vld [vmem:[%s6 + $0x8] sm:$0xff]
            %v2561 = vld [vmem:[%s6 + $0x10] sm:$0xff]
            %v2562 = vld [vmem:[%s6 + $0x18] sm:$0xff]
            %v2563 = vpack.c.bf16 %v2544, %v2543
            %v2564 = vpack.c.bf16 %v2546, %v2545
            %v2565 = vpack.c.bf16 %v2548, %v2547
            %v2566 = vpack.c.bf16 %v2550, %v2549
            %v2567 = vpack.c.bf16 %v2552, %v2551
            %v2568 = vpack.c.bf16 %v2554, %v2553
            %v2569 = vpack.c.bf16 %v2556, %v2555
            %v2570 = vpack.c.bf16 %v2558, %v2557
            %v2571 = vunpack.c.l.bf16 %v2563
            %v2572 = vunpack.c.h.bf16 %v2563
            %v2573 = vunpack.c.l.bf16 %v2564
            %v2574 = vunpack.c.h.bf16 %v2564
            %v2575 = vunpack.c.l.bf16 %v2565
            %v2576 = vunpack.c.h.bf16 %v2565
            %v2577 = vunpack.c.l.bf16 %v2566
            %v2578 = vunpack.c.h.bf16 %v2566
            %v2579 = vunpack.c.l.bf16 %v2567
            %v2580 = vunpack.c.h.bf16 %v2567
            %v2581 = vunpack.c.l.bf16 %v2568
            %v2582 = vunpack.c.h.bf16 %v2568
            %v2583 = vunpack.c.l.bf16 %v2569
            %v2584 = vunpack.c.h.bf16 %v2569
            %v2585 = vunpack.c.l.bf16 %v2570
            %v2586 = vunpack.c.h.bf16 %v2570
            %v2587 = vsub.f32 %v2543, %v2571
            %v2588 = vsub.f32 %v2544, %v2572
            %v2589 = vsub.f32 %v2545, %v2573
            %v2590 = vsub.f32 %v2546, %v2574
            %v2591 = vsub.f32 %v2547, %v2575
            %v2592 = vsub.f32 %v2548, %v2576
            %v2593 = vsub.f32 %v2549, %v2577
            %v2594 = vsub.f32 %v2550, %v2578
            %v2595 = vsub.f32 %v2551, %v2579
            %v2596 = vsub.f32 %v2552, %v2580
            %v2597 = vsub.f32 %v2553, %v2581
            %v2598 = vsub.f32 %v2554, %v2582
            %v2599 = vsub.f32 %v2555, %v2583
            %v2600 = vsub.f32 %v2556, %v2584
            %v2601 = vsub.f32 %v2557, %v2585
            %v2602 = vsub.f32 %v2558, %v2586
            %v2603 = vpack.c.bf16 %v2588, %v2587
            %v2604 = vpack.c.bf16 %v2590, %v2589
            %v2605 = vpack.c.bf16 %v2592, %v2591
            %v2606 = vpack.c.bf16 %v2594, %v2593
            %v2607 = vpack.c.bf16 %v2596, %v2595
            %v2608 = vpack.c.bf16 %v2598, %v2597
            %v2609 = vpack.c.bf16 %v2600, %v2599
            %v2610 = vpack.c.bf16 %v2602, %v2601
            %v2611 = vpack.c.bf16 %v2560, %v2559
            %v2612 = vpack.c.bf16 %v2562, %v2561
            %v2613 = vunpack.c.l.bf16 %v2611
            %v2614 = vunpack.c.h.bf16 %v2611
            %v2615 = vunpack.c.l.bf16 %v2612
            %v2616 = vunpack.c.h.bf16 %v2612
            %v2617 = vsub.f32 %v2559, %v2613
            %v2618 = vsub.f32 %v2560, %v2614
            %v2619 = vsub.f32 %v2561, %v2615
            %v2620 = vsub.f32 %v2562, %v2616
            %v2621 = vpack.c.bf16 %v2618, %v2617
            %v2622 = vpack.c.bf16 %v2620, %v2619
            %v2624 = vsel %vm2305, %v2563, 0
            %v2627 = vsel %vm2305, %v2564, 0
            %v2630 = vsel %vm2305, %v2565, 0
            %v2633 = vsel %vm2305, %v2566, 0
            %v2636 = vsel %vm2305, %v2567, 0
            %v2639 = vsel %vm2305, %v2568, 0
            %v2642 = vsel %vm2305, %v2569, 0
            %v2645 = vsel %vm2305, %v2570, 0
            %2647 = vmatprep.subr.bf16.mxu0 0
            %2648 = vmatpush1.bf16.msra.mxu0 %v2621
            %2649 = vmatprep.subr.bf16.mxu0 0
            %2650 = vmatpush1.bf16.msra.mxu0 %v2622
            %2651 = vmatprep.subr.bf16.mxu0 0
            %2652 = vmatpush1.bf16.msra.mxu0 0
            %2653 = vmatprep.subr.bf16.mxu0 0
            %2654 = vmatpush1.bf16.msra.mxu0 0
            %2655 = vmatprep.subr.bf16.mxu0 0
            %2656 = vmatpush1.bf16.msra.mxu0 0
            %2657 = vmatprep.subr.bf16.mxu0 0
            %2658 = vmatpush1.bf16.msra.mxu0 0
            %2659 = vmatprep.subr.bf16.mxu0 0
            %2660 = vmatpush1.bf16.msra.mxu0 0
            %2661 = vmatprep.subr.bf16.mxu0 0
            %2662 = vmatpush1.bf16.msra.mxu0 0
            %2663 = vmatprep.subr.bf16.mxu0 0
            %2664 = vmatpush1.bf16.msra.mxu0 0
            %2665 = vmatprep.subr.bf16.mxu0 0
            %2666 = vmatpush1.bf16.msra.mxu0 0
            %2667 = vmatprep.subr.bf16.mxu0 0
            %2668 = vmatpush1.bf16.msra.mxu0 0
            %2669 = vmatprep.subr.bf16.mxu0 0
            %2670 = vmatpush1.bf16.msra.mxu0 0
            %2671 = vmatprep.subr.bf16.mxu0 0
            %2672 = vmatpush1.bf16.msra.mxu0 0
            %2673 = vmatprep.subr.bf16.mxu0 0
            %2674 = vmatpush1.bf16.msra.mxu0 0
            %2675 = vmatprep.subr.bf16.mxu0 0
            %2676 = vmatpush1.bf16.msra.mxu0 0
            %2677 = vmatprep.subr.bf16.mxu0 0
            %2678 = vmatpush1.bf16.msra.mxu0 0
            %2679 = vmatprep.mubr.bf16.mxu0 0
            %2680 = vmatmul.mubr.bf16.gmra.mrb[0].mxu0 %v2624
            %v2681 = vpop.f32.mrb[0].mxu0
            %v2682 = vadd.f32 0.0, %v2681
            %v2683 = vpop.f32.mrb[0].mxu0
            %v2684 = vpop.f32.mrb[0].mxu0
            %v2685 = vadd.f32 0.0, %v2684
            %v2686 = vpop.f32.mrb[0].mxu0
            %2687 = vmatprep.mubr.bf16.mxu0 0
            %2688 = vmatmul.mubr.bf16.gmra.mrb[0].mxu0 %v2627
            %v2689 = vpop.f32.mrb[0].mxu0
            %v2690 = vadd.f32 0.0, %v2689
            %v2691 = vpop.f32.mrb[0].mxu0
            %v2692 = vpop.f32.mrb[0].mxu0
            %v2693 = vadd.f32 0.0, %v2692
            %v2694 = vpop.f32.mrb[0].mxu0
            %2695 = vmatprep.mubr.bf16.mxu0 0
            %2696 = vmatmul.mubr.bf16.gmra.mrb[0].mxu0 %v2630
            %v2697 = vpop.f32.mrb[0].mxu0
            %v2698 = vadd.f32 0.0, %v2697
            %v2699 = vpop.f32.mrb[0].mxu0
            %v2700 = vpop.f32.mrb[0].mxu0
            %v2701 = vadd.f32 0.0, %v2700
            %v2702 = vpop.f32.mrb[0].mxu0
            %2703 = vmatprep.mubr.bf16.mxu0 0
            %2704 = vmatmul.mubr.bf16.gmra.mrb[0].mxu0 %v2633
            %v2705 = vpop.f32.mrb[0].mxu0
            %v2706 = vadd.f32 0.0, %v2705
            %v2707 = vpop.f32.mrb[0].mxu0
            %v2708 = vpop.f32.mrb[0].mxu0
            %v2709 = vadd.f32 0.0, %v2708
            %v2710 = vpop.f32.mrb[0].mxu0
            %2711 = vmatprep.mubr.bf16.mxu0 0
            %2712 = vmatmul.mubr.bf16.gmra.mrb[0].mxu0 %v2636
            %v2713 = vpop.f32.mrb[0].mxu0
            %v2714 = vadd.f32 0.0, %v2713
            %v2715 = vpop.f32.mrb[0].mxu0
            %v2716 = vpop.f32.mrb[0].mxu0
            %v2717 = vadd.f32 0.0, %v2716
            %v2718 = vpop.f32.mrb[0].mxu0
            %2719 = vmatprep.mubr.bf16.mxu0 0
            %2720 = vmatmul.mubr.bf16.gmra.mrb[0].mxu0 %v2639
            %v2721 = vpop.f32.mrb[0].mxu0
            %v2722 = vadd.f32 0.0, %v2721
            %v2723 = vpop.f32.mrb[0].mxu0
            %v2724 = vpop.f32.mrb[0].mxu0
            %v2725 = vadd.f32 0.0, %v2724
            %v2726 = vpop.f32.mrb[0].mxu0
            %2727 = vmatprep.mubr.bf16.mxu0 0
            %2728 = vmatmul.mubr.bf16.gmra.mrb[0].mxu0 %v2642
            %v2729 = vpop.f32.mrb[0].mxu0
            %v2730 = vadd.f32 0.0, %v2729
            %v2731 = vpop.f32.mrb[0].mxu0
            %v2732 = vpop.f32.mrb[0].mxu0
            %v2733 = vadd.f32 0.0, %v2732
            %v2734 = vpop.f32.mrb[0].mxu0
            %2735 = vmatprep.mubr.bf16.mxu0 0
            %2736 = vmatmul.mubr.bf16.gmra.mrb[0].mxu0 %v2645
            %v2737 = vpop.f32.mrb[0].mxu0
            %v2738 = vadd.f32 0.0, %v2737
            %v2739 = vpop.f32.mrb[0].mxu0
            %v2740 = vpop.f32.mrb[0].mxu0
            %v2741 = vadd.f32 0.0, %v2740
            %v2742 = vpop.f32.mrb[0].mxu0
            %2743 = vdwg.mxu0
            %2744 = vmatprep.subr.bf16.mxu0 0
            %2745 = vmatpush1.bf16.msra.mxu0 %v2611
            %2746 = vmatprep.subr.bf16.mxu0 0
            %2747 = vmatpush1.bf16.msra.mxu0 %v2612
            %2748 = vmatprep.subr.bf16.mxu0 0
            %2749 = vmatpush1.bf16.msra.mxu0 0
            %2750 = vmatprep.subr.bf16.mxu0 0
            %2751 = vmatpush1.bf16.msra.mxu0 0
            %2752 = vmatprep.subr.bf16.mxu0 0
            %2753 = vmatpush1.bf16.msra.mxu0 0
            %2754 = vmatprep.subr.bf16.mxu0 0
            %2755 = vmatpush1.bf16.msra.mxu0 0
            %2756 = vmatprep.subr.bf16.mxu0 0
            %2757 = vmatpush1.bf16.msra.mxu0 0
            %2758 = vmatprep.subr.bf16.mxu0 0
            %2759 = vmatpush1.bf16.msra.mxu0 0
            %2760 = vmatprep.subr.bf16.mxu0 0
            %2761 = vmatpush1.bf16.msra.mxu0 0
            %2762 = vmatprep.subr.bf16.mxu0 0
            %2763 = vmatpush1.bf16.msra.mxu0 0
            %2764 = vmatprep.subr.bf16.mxu0 0
            %2765 = vmatpush1.bf16.msra.mxu0 0
            %2766 = vmatprep.subr.bf16.mxu0 0
            %2767 = vmatpush1.bf16.msra.mxu0 0
            %2768 = vmatprep.subr.bf16.mxu0 0
            %2769 = vmatpush1.bf16.msra.mxu0 0
            %2770 = vmatprep.subr.bf16.mxu0 0
            %2771 = vmatpush1.bf16.msra.mxu0 0
            %2772 = vmatprep.subr.bf16.mxu0 0
            %2773 = vmatpush1.bf16.msra.mxu0 0
            %2774 = vmatprep.subr.bf16.mxu0 0
            %2775 = vmatpush1.bf16.msra.mxu0 0
            %2776 = vmatprep.mubr.bf16.mxu0 0
            %2777 = vmatmul.mubr.bf16.gmra.mrb[0].mxu0 %v2624
            %v2778 = vpop.f32.mrb[0].mxu0
            %v2779 = vadd.f32 %v2682, %v2778
            %v2780 = vpop.f32.mrb[0].mxu0
            %v2781 = vpop.f32.mrb[0].mxu0
            %v2782 = vadd.f32 %v2685, %v2781
            %v2783 = vpop.f32.mrb[0].mxu0
            %2784 = vmatprep.mubr.bf16.mxu0 0
            %2785 = vmatmul.mubr.bf16.gmra.mrb[0].mxu0 %v2627
            %v2786 = vpop.f32.mrb[0].mxu0
            %v2787 = vadd.f32 %v2690, %v2786
            %v2788 = vpop.f32.mrb[0].mxu0
            %v2789 = vpop.f32.mrb[0].mxu0
            %v2790 = vadd.f32 %v2693, %v2789
            %v2791 = vpop.f32.mrb[0].mxu0
            %2792 = vmatprep.mubr.bf16.mxu0 0
            %2793 = vmatmul.mubr.bf16.gmra.mrb[0].mxu0 %v2630
            %v2794 = vpop.f32.mrb[0].mxu0
            %v2795 = vadd.f32 %v2698, %v2794
            %v2796 = vpop.f32.mrb[0].mxu0
            %v2797 = vpop.f32.mrb[0].mxu0
            %v2798 = vadd.f32 %v2701, %v2797
            %v2799 = vpop.f32.mrb[0].mxu0
            %2800 = vmatprep.mubr.bf16.mxu0 0
            %2801 = vmatmul.mubr.bf16.gmra.mrb[0].mxu0 %v2633
            %v2802 = vpop.f32.mrb[0].mxu0
            %v2803 = vadd.f32 %v2706, %v2802
            %v2804 = vpop.f32.mrb[0].mxu0
            %v2805 = vpop.f32.mrb[0].mxu0
            %v2806 = vadd.f32 %v2709, %v2805
            %v2807 = vpop.f32.mrb[0].mxu0
            %2808 = vmatprep.mubr.bf16.mxu0 0
            %2809 = vmatmul.mubr.bf16.gmra.mrb[0].mxu0 %v2636
            %v2810 = vpop.f32.mrb[0].mxu0
            %v2811 = vadd.f32 %v2714, %v2810
            %v2812 = vpop.f32.mrb[0].mxu0
            %v2813 = vpop.f32.mrb[0].mxu0
            %v2814 = vadd.f32 %v2717, %v2813
            %v2815 = vpop.f32.mrb[0].mxu0
            %2816 = vmatprep.mubr.bf16.mxu0 0
            %2817 = vmatmul.mubr.bf16.gmra.mrb[0].mxu0 %v2639
            %v2818 = vpop.f32.mrb[0].mxu0
            %v2819 = vadd.f32 %v2722, %v2818
            %v2820 = vpop.f32.mrb[0].mxu0
            %v2821 = vpop.f32.mrb[0].mxu0
            %v2822 = vadd.f32 %v2725, %v2821
            %v2823 = vpop.f32.mrb[0].mxu0
            %2824 = vmatprep.mubr.bf16.mxu0 0
            %2825 = vmatmul.mubr.bf16.gmra.mrb[0].mxu0 %v2642
            %v2826 = vpop.f32.mrb[0].mxu0
            %v2827 = vadd.f32 %v2730, %v2826
            %v2828 = vpop.f32.mrb[0].mxu0
            %v2829 = vpop.f32.mrb[0].mxu0
            %v2830 = vadd.f32 %v2733, %v2829
            %v2831 = vpop.f32.mrb[0].mxu0
            %2832 = vmatprep.mubr.bf16.mxu0 0
            %2833 = vmatmul.mubr.bf16.gmra.mrb[0].mxu0 %v2645
            %v2834 = vpop.f32.mrb[0].mxu0
            %v2835 = vadd.f32 %v2738, %v2834
            %v2836 = vpop.f32.mrb[0].mxu0
            %v2837 = vpop.f32.mrb[0].mxu0
            %v2838 = vadd.f32 %v2741, %v2837
            %v2839 = vpop.f32.mrb[0].mxu0
            %2840 = vdwg.mxu0
            %v2842 = vsel %vm2305, %v2603, 0
            %v2845 = vsel %vm2305, %v2604, 0
            %v2848 = vsel %vm2305, %v2605, 0
            %v2851 = vsel %vm2305, %v2606, 0
            %v2854 = vsel %vm2305, %v2607, 0
            %v2857 = vsel %vm2305, %v2608, 0
            %v2860 = vsel %vm2305, %v2609, 0
            %v2863 = vsel %vm2305, %v2610, 0
            %2865 = vmatprep.subr.bf16.mxu0 0
            %2866 = vmatpush1.bf16.msra.mxu0 %v2611
            %2867 = vmatprep.subr.bf16.mxu0 0
            %2868 = vmatpush1.bf16.msra.mxu0 %v2612
            %2869 = vmatprep.subr.bf16.mxu0 0
            %2870 = vmatpush1.bf16.msra.mxu0 0
            %2871 = vmatprep.subr.bf16.mxu0 0
            %2872 = vmatpush1.bf16.msra.mxu0 0
            %2873 = vmatprep.subr.bf16.mxu0 0
            %2874 = vmatpush1.bf16.msra.mxu0 0
            %2875 = vmatprep.subr.bf16.mxu0 0
            %2876 = vmatpush1.bf16.msra.mxu0 0
            %2877 = vmatprep.subr.bf16.mxu0 0
            %2878 = vmatpush1.bf16.msra.mxu0 0
            %2879 = vmatprep.subr.bf16.mxu0 0
            %2880 = vmatpush1.bf16.msra.mxu0 0
            %2881 = vmatprep.subr.bf16.mxu0 0
            %2882 = vmatpush1.bf16.msra.mxu0 0
            %2883 = vmatprep.subr.bf16.mxu0 0
            %2884 = vmatpush1.bf16.msra.mxu0 0
            %2885 = vmatprep.subr.bf16.mxu0 0
            %2886 = vmatpush1.bf16.msra.mxu0 0
            %2887 = vmatprep.subr.bf16.mxu0 0
            %2888 = vmatpush1.bf16.msra.mxu0 0
            %2889 = vmatprep.subr.bf16.mxu0 0
            %2890 = vmatpush1.bf16.msra.mxu0 0
            %2891 = vmatprep.subr.bf16.mxu0 0
            %2892 = vmatpush1.bf16.msra.mxu0 0
            %2893 = vmatprep.subr.bf16.mxu0 0
            %2894 = vmatpush1.bf16.msra.mxu0 0
            %2895 = vmatprep.subr.bf16.mxu0 0
            %2896 = vmatpush1.bf16.msra.mxu0 0
            %2897 = vmatprep.mubr.bf16.mxu0 0
            %2898 = vmatmul.mubr.bf16.gmra.mrb[0].mxu0 %v2842
            %v2899 = vpop.f32.mrb[0].mxu0
            %v2900 = vadd.f32 0.0, %v2899
            %v2901 = vpop.f32.mrb[0].mxu0
            %v2902 = vpop.f32.mrb[0].mxu0
            %v2903 = vadd.f32 0.0, %v2902
            %v2904 = vpop.f32.mrb[0].mxu0
            %2905 = vmatprep.mubr.bf16.mxu0 0
            %2906 = vmatmul.mubr.bf16.gmra.mrb[0].mxu0 %v2845
            %v2907 = vpop.f32.mrb[0].mxu0
            %v2908 = vadd.f32 0.0, %v2907
            %v2909 = vpop.f32.mrb[0].mxu0
            %v2910 = vpop.f32.mrb[0].mxu0
            %v2911 = vadd.f32 0.0, %v2910
            %v2912 = vpop.f32.mrb[0].mxu0
            %2913 = vmatprep.mubr.bf16.mxu0 0
            %2914 = vmatmul.mubr.bf16.gmra.mrb[0].mxu0 %v2848
            %v2915 = vpop.f32.mrb[0].mxu0
            %v2916 = vadd.f32 0.0, %v2915
            %v2917 = vpop.f32.mrb[0].mxu0
            %v2918 = vpop.f32.mrb[0].mxu0
            %v2919 = vadd.f32 0.0, %v2918
            %v2920 = vpop.f32.mrb[0].mxu0
            %2921 = vmatprep.mubr.bf16.mxu0 0
            %2922 = vmatmul.mubr.bf16.gmra.mrb[0].mxu0 %v2851
            %v2923 = vpop.f32.mrb[0].mxu0
            %v2924 = vadd.f32 0.0, %v2923
            %v2925 = vpop.f32.mrb[0].mxu0
            %v2926 = vpop.f32.mrb[0].mxu0
            %v2927 = vadd.f32 0.0, %v2926
            %v2928 = vpop.f32.mrb[0].mxu0
            %2929 = vmatprep.mubr.bf16.mxu0 0
            %2930 = vmatmul.mubr.bf16.gmra.mrb[0].mxu0 %v2854
            %v2931 = vpop.f32.mrb[0].mxu0
            %v2932 = vadd.f32 0.0, %v2931
            %v2933 = vpop.f32.mrb[0].mxu0
            %v2934 = vpop.f32.mrb[0].mxu0
            %v2935 = vadd.f32 0.0, %v2934
            %v2936 = vpop.f32.mrb[0].mxu0
            %2937 = vmatprep.mubr.bf16.mxu0 0
            %2938 = vmatmul.mubr.bf16.gmra.mrb[0].mxu0 %v2857
            %v2939 = vpop.f32.mrb[0].mxu0
            %v2940 = vadd.f32 0.0, %v2939
            %v2941 = vpop.f32.mrb[0].mxu0
            %v2942 = vpop.f32.mrb[0].mxu0
            %v2943 = vadd.f32 0.0, %v2942
            %v2944 = vpop.f32.mrb[0].mxu0
            %2945 = vmatprep.mubr.bf16.mxu0 0
            %2946 = vmatmul.mubr.bf16.gmra.mrb[0].mxu0 %v2860
            %v2947 = vpop.f32.mrb[0].mxu0
            %v2948 = vadd.f32 0.0, %v2947
            %v2949 = vpop.f32.mrb[0].mxu0
            %v2950 = vpop.f32.mrb[0].mxu0
            %v2951 = vadd.f32 0.0, %v2950
            %v2952 = vpop.f32.mrb[0].mxu0
            %2953 = vmatprep.mubr.bf16.mxu0 0
            %2954 = vmatmul.mubr.bf16.gmra.mrb[0].mxu0 %v2863
            %v2955 = vpop.f32.mrb[0].mxu0
            %v2956 = vadd.f32 0.0, %v2955
            %v2957 = vpop.f32.mrb[0].mxu0
            %v2958 = vpop.f32.mrb[0].mxu0
            %v2959 = vadd.f32 0.0, %v2958
            %v2960 = vpop.f32.mrb[0].mxu0
            %2961 = vdwg.mxu0
            %v2962 = vadd.f32 %v2779, %v2900
            %v2963 = vadd.f32 %v2782, %v2903
            %v2964 = vadd.f32 %v2787, %v2908
            %v2965 = vadd.f32 %v2790, %v2911
            %v2966 = vadd.f32 %v2795, %v2916
            %v2967 = vadd.f32 %v2798, %v2919
            %v2968 = vadd.f32 %v2803, %v2924
            %v2969 = vadd.f32 %v2806, %v2927
            %v2970 = vadd.f32 %v2811, %v2932
            %v2971 = vadd.f32 %v2814, %v2935
            %v2972 = vadd.f32 %v2819, %v2940
            %v2973 = vadd.f32 %v2822, %v2943
            %v2974 = vadd.f32 %v2827, %v2948
            %v2975 = vadd.f32 %v2830, %v2951
            %v2976 = vadd.f32 %v2835, %v2956
            %v2977 = vadd.f32 %v2838, %v2959
            %v2978 = vld [vmem:[%s7] sm:$0x1]
            %v2980 = vlaneseq
            %v2981 = vshrl.u32 %v2980, 7
            %v2982 = vsub.s32 0, %v2981
            %v2983 = vrot.slane %v2978, %v2982
            %v2985 = vadd.f32 %v2962, %v2983
            %v2986 = vadd.f32 %v2963, %v2983
            %v2987 = vadd.f32 %v2964, %v2983
            %v2988 = vadd.f32 %v2965, %v2983
            %v2989 = vadd.f32 %v2966, %v2983
            %v2990 = vadd.f32 %v2967, %v2983
            %v2991 = vadd.f32 %v2968, %v2983
            %v2992 = vadd.f32 %v2969, %v2983
            %v2993 = vadd.f32 %v2970, %v2983
            %v2994 = vadd.f32 %v2971, %v2983
            %v2995 = vadd.f32 %v2972, %v2983
            %v2996 = vadd.f32 %v2973, %v2983
            %v2997 = vadd.f32 %v2974, %v2983
            %v2998 = vadd.f32 %v2975, %v2983
            %v2999 = vadd.f32 %v2976, %v2983
            %v3000 = vadd.f32 %v2977, %v2983
            %v3001 = vld [vmem:[#allocation2] sm:$0xff]
            %v3002 = vld [vmem:[#allocation2 + $0x8] sm:$0xff]
            %v3003 = vld [vmem:[#allocation2 + $0x10] sm:$0xff]
            %v3004 = vld [vmem:[#allocation2 + $0x18] sm:$0xff]
            %v3005 = vld [vmem:[#allocation2 + $0x20] sm:$0xff]
            %v3006 = vld [vmem:[#allocation2 + $0x28] sm:$0xff]
            %v3007 = vld [vmem:[#allocation2 + $0x30] sm:$0xff]
            %v3008 = vld [vmem:[#allocation2 + $0x38] sm:$0xff]
            %v3009 = vld [vmem:[#allocation2 + $0x40] sm:$0xff]
            %v3010 = vld [vmem:[#allocation2 + $0x48] sm:$0xff]
            %v3011 = vld [vmem:[#allocation2 + $0x50] sm:$0xff]
            %v3012 = vld [vmem:[#allocation2 + $0x58] sm:$0xff]
            %v3013 = vld [vmem:[#allocation2 + $0x60] sm:$0xff]
            %v3014 = vld [vmem:[#allocation2 + $0x68] sm:$0xff]
            %v3015 = vld [vmem:[#allocation2 + $0x70] sm:$0xff]
            %v3016 = vld [vmem:[#allocation2 + $0x78] sm:$0xff]
            %v3017 = vld [vmem:[#allocation3] sm:$0xff]
            %v3018 = vld [vmem:[#allocation3 + $0x8] sm:$0xff]
            %v3019 = vld [vmem:[#allocation3 + $0x10] sm:$0xff]
            %v3020 = vld [vmem:[#allocation3 + $0x18] sm:$0xff]
            %v3021 = vld [vmem:[#allocation3 + $0x20] sm:$0xff]
            %v3022 = vld [vmem:[#allocation3 + $0x28] sm:$0xff]
            %v3023 = vld [vmem:[#allocation3 + $0x30] sm:$0xff]
            %v3024 = vld [vmem:[#allocation3 + $0x38] sm:$0xff]
            %v3025 = vld [vmem:[#allocation3 + $0x40] sm:$0xff]
            %v3026 = vld [vmem:[#allocation3 + $0x48] sm:$0xff]
            %v3027 = vld [vmem:[#allocation3 + $0x50] sm:$0xff]
            %v3028 = vld [vmem:[#allocation3 + $0x58] sm:$0xff]
            %v3029 = vld [vmem:[#allocation3 + $0x60] sm:$0xff]
            %v3030 = vld [vmem:[#allocation3 + $0x68] sm:$0xff]
            %v3031 = vld [vmem:[#allocation3 + $0x70] sm:$0xff]
            %v3032 = vld [vmem:[#allocation3 + $0x78] sm:$0xff]
            %v3033 = vlaneseq
            %v3034 = vand.u32 %v3033, 127
            %v3035 = vcvt.s32.f32 %v3034
            %v3036 = vadd.f32 %v3035, %v2159
            %3038 = vset.pattern.permute.xlu0 0
            %3039 = vperm.xlu0 %3038, %v3017
            %v3040 = vpop.permute.xlu0 %3039
            %3043 = vset.pattern.permute.xlu0 0
            %3044 = vperm.xlu0 %3043, %v3018
            %v3045 = vpop.permute.xlu0 %3044
            %3048 = vset.pattern.permute.xlu0 0
            %3049 = vperm.xlu0 %3048, %v3019
            %v3050 = vpop.permute.xlu0 %3049
            %3053 = vset.pattern.permute.xlu0 0
            %3054 = vperm.xlu0 %3053, %v3020
            %v3055 = vpop.permute.xlu0 %3054
            %3058 = vset.pattern.permute.xlu0 0
            %3059 = vperm.xlu0 %3058, %v3021
            %v3060 = vpop.permute.xlu0 %3059
            %3063 = vset.pattern.permute.xlu0 0
            %3064 = vperm.xlu0 %3063, %v3022
            %v3065 = vpop.permute.xlu0 %3064
            %3068 = vset.pattern.permute.xlu0 0
            %3069 = vperm.xlu0 %3068, %v3023
            %v3070 = vpop.permute.xlu0 %3069
            %3073 = vset.pattern.permute.xlu0 0
            %3074 = vperm.xlu0 %3073, %v3024
            %v3075 = vpop.permute.xlu0 %3074
            %3078 = vset.pattern.permute.xlu0 0
            %3079 = vperm.xlu0 %3078, %v3025
            %v3080 = vpop.permute.xlu0 %3079
            %3083 = vset.pattern.permute.xlu0 0
            %3084 = vperm.xlu0 %3083, %v3026
            %v3085 = vpop.permute.xlu0 %3084
            %3088 = vset.pattern.permute.xlu0 0
            %3089 = vperm.xlu0 %3088, %v3027
            %v3090 = vpop.permute.xlu0 %3089
            %3093 = vset.pattern.permute.xlu0 0
            %3094 = vperm.xlu0 %3093, %v3028
            %v3095 = vpop.permute.xlu0 %3094
            %3098 = vset.pattern.permute.xlu0 0
            %3099 = vperm.xlu0 %3098, %v3029
            %v3100 = vpop.permute.xlu0 %3099
            %3103 = vset.pattern.permute.xlu0 0
            %3104 = vperm.xlu0 %3103, %v3030
            %v3105 = vpop.permute.xlu0 %3104
            %3108 = vset.pattern.permute.xlu0 0
            %3109 = vperm.xlu0 %3108, %v3031
            %v3110 = vpop.permute.xlu0 %3109
            %3113 = vset.pattern.permute.xlu0 0
            %3114 = vperm.xlu0 %3113, %v3032
            %v3115 = vpop.permute.xlu0 %3114
            %vm3117 = vcmp.eq.f32.partialorder %v3036, %v3040
            %vm3118 = vcmp.eq.f32.partialorder %v3036, %v3045
            %vm3119 = vcmp.eq.f32.partialorder %v3036, %v3050
            %vm3120 = vcmp.eq.f32.partialorder %v3036, %v3055
            %vm3121 = vcmp.eq.f32.partialorder %v3036, %v3060
            %vm3122 = vcmp.eq.f32.partialorder %v3036, %v3065
            %vm3123 = vcmp.eq.f32.partialorder %v3036, %v3070
            %vm3124 = vcmp.eq.f32.partialorder %v3036, %v3075
            %vm3125 = vcmp.eq.f32.partialorder %v3036, %v3080
            %vm3126 = vcmp.eq.f32.partialorder %v3036, %v3085
            %vm3127 = vcmp.eq.f32.partialorder %v3036, %v3090
            %vm3128 = vcmp.eq.f32.partialorder %v3036, %v3095
            %vm3129 = vcmp.eq.f32.partialorder %v3036, %v3100
            %vm3130 = vcmp.eq.f32.partialorder %v3036, %v3105
            %vm3131 = vcmp.eq.f32.partialorder %v3036, %v3110
            %vm3132 = vcmp.eq.f32.partialorder %v3036, %v3115
            %3134 = vset.pattern.permute.xlu0 0
            %3135 = vperm.xlu0 %3134, %v3001
            %v3136 = vpop.permute.xlu0 %3135
            %3139 = vset.pattern.permute.xlu0 0
            %3140 = vperm.xlu0 %3139, %v3002
            %v3141 = vpop.permute.xlu0 %3140
            %3144 = vset.pattern.permute.xlu0 0
            %3145 = vperm.xlu0 %3144, %v3003
            %v3146 = vpop.permute.xlu0 %3145
            %3149 = vset.pattern.permute.xlu0 0
            %3150 = vperm.xlu0 %3149, %v3004
            %v3151 = vpop.permute.xlu0 %3150
            %3154 = vset.pattern.permute.xlu0 0
            %3155 = vperm.xlu0 %3154, %v3005
            %v3156 = vpop.permute.xlu0 %3155
            %3159 = vset.pattern.permute.xlu0 0
            %3160 = vperm.xlu0 %3159, %v3006
            %v3161 = vpop.permute.xlu0 %3160
            %3164 = vset.pattern.permute.xlu0 0
            %3165 = vperm.xlu0 %3164, %v3007
            %v3166 = vpop.permute.xlu0 %3165
            %3169 = vset.pattern.permute.xlu0 0
            %3170 = vperm.xlu0 %3169, %v3008
            %v3171 = vpop.permute.xlu0 %3170
            %3174 = vset.pattern.permute.xlu0 0
            %3175 = vperm.xlu0 %3174, %v3009
            %v3176 = vpop.permute.xlu0 %3175
            %3179 = vset.pattern.permute.xlu0 0
            %3180 = vperm.xlu0 %3179, %v3010
            %v3181 = vpop.permute.xlu0 %3180
            %3184 = vset.pattern.permute.xlu0 0
            %3185 = vperm.xlu0 %3184, %v3011
            %v3186 = vpop.permute.xlu0 %3185
            %3189 = vset.pattern.permute.xlu0 0
            %3190 = vperm.xlu0 %3189, %v3012
            %v3191 = vpop.permute.xlu0 %3190
            %3194 = vset.pattern.permute.xlu0 0
            %3195 = vperm.xlu0 %3194, %v3013
            %v3196 = vpop.permute.xlu0 %3195
            %3199 = vset.pattern.permute.xlu0 0
            %3200 = vperm.xlu0 %3199, %v3014
            %v3201 = vpop.permute.xlu0 %3200
            %3204 = vset.pattern.permute.xlu0 0
            %3205 = vperm.xlu0 %3204, %v3015
            %v3206 = vpop.permute.xlu0 %3205
            %3209 = vset.pattern.permute.xlu0 0
            %3210 = vperm.xlu0 %3209, %v3016
            %v3211 = vpop.permute.xlu0 %3210
            %v3213 = vsel %vm3117, %v3136, 0.0
            %v3214 = vsel %vm3118, %v3141, 0.0
            %v3215 = vsel %vm3119, %v3146, 0.0
            %v3216 = vsel %vm3120, %v3151, 0.0
            %v3217 = vsel %vm3121, %v3156, 0.0
            %v3218 = vsel %vm3122, %v3161, 0.0
            %v3219 = vsel %vm3123, %v3166, 0.0
            %v3220 = vsel %vm3124, %v3171, 0.0
            %v3221 = vsel %vm3125, %v3176, 0.0
            %v3222 = vsel %vm3126, %v3181, 0.0
            %v3223 = vsel %vm3127, %v3186, 0.0
            %v3224 = vsel %vm3128, %v3191, 0.0
            %v3225 = vsel %vm3129, %v3196, 0.0
            %v3226 = vsel %vm3130, %v3201, 0.0
            %v3227 = vsel %vm3131, %v3206, 0.0
            %v3228 = vsel %vm3132, %v3211, 0.0
            %v3229 = vadd.f32 %v3213, 0.0
            %v3230 = vadd.f32 %v3214, 0.0
            %v3231 = vadd.f32 %v3215, 0.0
            %v3232 = vadd.f32 %v3216, 0.0
            %v3233 = vadd.f32 %v3217, 0.0
            %v3234 = vadd.f32 %v3218, 0.0
            %v3235 = vadd.f32 %v3219, 0.0
            %v3236 = vadd.f32 %v3220, 0.0
            %v3237 = vadd.f32 %v3221, 0.0
            %v3238 = vadd.f32 %v3222, 0.0
            %v3239 = vadd.f32 %v3223, 0.0
            %v3240 = vadd.f32 %v3224, 0.0
            %v3241 = vadd.f32 %v3225, 0.0
            %v3242 = vadd.f32 %v3226, 0.0
            %v3243 = vadd.f32 %v3227, 0.0
            %v3244 = vadd.f32 %v3228, 0.0
            %3245 = vset.pattern.permute.xlu0 1
            %3246 = vperm.xlu0 %3245, %v3017
            %v3247 = vpop.permute.xlu0 %3246
            %3249 = vset.pattern.permute.xlu0 1
            %3250 = vperm.xlu0 %3249, %v3018
            %v3251 = vpop.permute.xlu0 %3250
            %3253 = vset.pattern.permute.xlu0 1
            %3254 = vperm.xlu0 %3253, %v3019
            %v3255 = vpop.permute.xlu0 %3254
            %3257 = vset.pattern.permute.xlu0 1
            %3258 = vperm.xlu0 %3257, %v3020
            %v3259 = vpop.permute.xlu0 %3258
            %3261 = vset.pattern.permute.xlu0 1
            %3262 = vperm.xlu0 %3261, %v3021
            %v3263 = vpop.permute.xlu0 %3262
            %3265 = vset.pattern.permute.xlu0 1
            %3266 = vperm.xlu0 %3265, %v3022
            %v3267 = vpop.permute.xlu0 %3266
            %3269 = vset.pattern.permute.xlu0 1
            %3270 = vperm.xlu0 %3269, %v3023
            %v3271 = vpop.permute.xlu0 %3270
            %3273 = vset.pattern.permute.xlu0 1
            %3274 = vperm.xlu0 %3273, %v3024
            %v3275 = vpop.permute.xlu0 %3274
            %3277 = vset.pattern.permute.xlu0 1
            %3278 = vperm.xlu0 %3277, %v3025
            %v3279 = vpop.permute.xlu0 %3278
            %3281 = vset.pattern.permute.xlu0 1
            %3282 = vperm.xlu0 %3281, %v3026
            %v3283 = vpop.permute.xlu0 %3282
            %3285 = vset.pattern.permute.xlu0 1
            %3286 = vperm.xlu0 %3285, %v3027
            %v3287 = vpop.permute.xlu0 %3286
            %3289 = vset.pattern.permute.xlu0 1
            %3290 = vperm.xlu0 %3289, %v3028
            %v3291 = vpop.permute.xlu0 %3290
            %3293 = vset.pattern.permute.xlu0 1
            %3294 = vperm.xlu0 %3293, %v3029
            %v3295 = vpop.permute.xlu0 %3294
            %3297 = vset.pattern.permute.xlu0 1
            %3298 = vperm.xlu0 %3297, %v3030
            %v3299 = vpop.permute.xlu0 %3298
            %3301 = vset.pattern.permute.xlu0 1
            %3302 = vperm.xlu0 %3301, %v3031
            %v3303 = vpop.permute.xlu0 %3302
            %3305 = vset.pattern.permute.xlu0 1
            %3306 = vperm.xlu0 %3305, %v3032
            %v3307 = vpop.permute.xlu0 %3306
            %vm3309 = vcmp.eq.f32.partialorder %v3036, %v3247
            %vm3310 = vcmp.eq.f32.partialorder %v3036, %v3251
            %vm3311 = vcmp.eq.f32.partialorder %v3036, %v3255
            %vm3312 = vcmp.eq.f32.partialorder %v3036, %v3259
            %vm3313 = vcmp.eq.f32.partialorder %v3036, %v3263
            %vm3314 = vcmp.eq.f32.partialorder %v3036, %v3267
            %vm3315 = vcmp.eq.f32.partialorder %v3036, %v3271
            %vm3316 = vcmp.eq.f32.partialorder %v3036, %v3275
            %vm3317 = vcmp.eq.f32.partialorder %v3036, %v3279
            %vm3318 = vcmp.eq.f32.partialorder %v3036, %v3283
            %vm3319 = vcmp.eq.f32.partialorder %v3036, %v3287
            %vm3320 = vcmp.eq.f32.partialorder %v3036, %v3291
            %vm3321 = vcmp.eq.f32.partialorder %v3036, %v3295
            %vm3322 = vcmp.eq.f32.partialorder %v3036, %v3299
            %vm3323 = vcmp.eq.f32.partialorder %v3036, %v3303
            %vm3324 = vcmp.eq.f32.partialorder %v3036, %v3307
            %3325 = vset.pattern.permute.xlu0 1
            %3326 = vperm.xlu0 %3325, %v3001
            %v3327 = vpop.permute.xlu0 %3326
            %3329 = vset.pattern.permute.xlu0 1
            %3330 = vperm.xlu0 %3329, %v3002
            %v3331 = vpop.permute.xlu0 %3330
            %3333 = vset.pattern.permute.xlu0 1
            %3334 = vperm.xlu0 %3333, %v3003
            %v3335 = vpop.permute.xlu0 %3334
            %3337 = vset.pattern.permute.xlu0 1
            %3338 = vperm.xlu0 %3337, %v3004
            %v3339 = vpop.permute.xlu0 %3338
            %3341 = vset.pattern.permute.xlu0 1
            %3342 = vperm.xlu0 %3341, %v3005
            %v3343 = vpop.permute.xlu0 %3342
            %3345 = vset.pattern.permute.xlu0 1
            %3346 = vperm.xlu0 %3345, %v3006
            %v3347 = vpop.permute.xlu0 %3346
            %3349 = vset.pattern.permute.xlu0 1
            %3350 = vperm.xlu0 %3349, %v3007
            %v3351 = vpop.permute.xlu0 %3350
            %3353 = vset.pattern.permute.xlu0 1
            %3354 = vperm.xlu0 %3353, %v3008
            %v3355 = vpop.permute.xlu0 %3354
            %3357 = vset.pattern.permute.xlu0 1
            %3358 = vperm.xlu0 %3357, %v3009
            %v3359 = vpop.permute.xlu0 %3358
            %3361 = vset.pattern.permute.xlu0 1
            %3362 = vperm.xlu0 %3361, %v3010
            %v3363 = vpop.permute.xlu0 %3362
            %3365 = vset.pattern.permute.xlu0 1
            %3366 = vperm.xlu0 %3365, %v3011
            %v3367 = vpop.permute.xlu0 %3366
            %3369 = vset.pattern.permute.xlu0 1
            %3370 = vperm.xlu0 %3369, %v3012
            %v3371 = vpop.permute.xlu0 %3370
            %3373 = vset.pattern.permute.xlu0 1
            %3374 = vperm.xlu0 %3373, %v3013
            %v3375 = vpop.permute.xlu0 %3374
            %3377 = vset.pattern.permute.xlu0 1
            %3378 = vperm.xlu0 %3377, %v3014
            %v3379 = vpop.permute.xlu0 %3378
            %3381 = vset.pattern.permute.xlu0 1
            %3382 = vperm.xlu0 %3381, %v3015
            %v3383 = vpop.permute.xlu0 %3382
            %3385 = vset.pattern.permute.xlu0 1
            %3386 = vperm.xlu0 %3385, %v3016
            %v3387 = vpop.permute.xlu0 %3386
            %v3389 = vsel %vm3309, %v3327, 0.0
            %v3390 = vsel %vm3310, %v3331, 0.0
            %v3391 = vsel %vm3311, %v3335, 0.0
            %v3392 = vsel %vm3312, %v3339, 0.0
            %v3393 = vsel %vm3313, %v3343, 0.0
            %v3394 = vsel %vm3314, %v3347, 0.0
            %v3395 = vsel %vm3315, %v3351, 0.0
            %v3396 = vsel %vm3316, %v3355, 0.0
            %v3397 = vsel %vm3317, %v3359, 0.0
            %v3398 = vsel %vm3318, %v3363, 0.0
            %v3399 = vsel %vm3319, %v3367, 0.0
            %v3400 = vsel %vm3320, %v3371, 0.0
            %v3401 = vsel %vm3321, %v3375, 0.0
            %v3402 = vsel %vm3322, %v3379, 0.0
            %v3403 = vsel %vm3323, %v3383, 0.0
            %v3404 = vsel %vm3324, %v3387, 0.0
            %v3405 = vadd.f32 %v3229, %v3389
            %v3406 = vadd.f32 %v3230, %v3390
            %v3407 = vadd.f32 %v3231, %v3391
            %v3408 = vadd.f32 %v3232, %v3392
            %v3409 = vadd.f32 %v3233, %v3393
            %v3410 = vadd.f32 %v3234, %v3394
            %v3411 = vadd.f32 %v3235, %v3395
            %v3412 = vadd.f32 %v3236, %v3396
            %v3413 = vadd.f32 %v3237, %v3397
            %v3414 = vadd.f32 %v3238, %v3398
            %v3415 = vadd.f32 %v3239, %v3399
            %v3416 = vadd.f32 %v3240, %v3400
            %v3417 = vadd.f32 %v3241, %v3401
            %v3418 = vadd.f32 %v3242, %v3402
            %v3419 = vadd.f32 %v3243, %v3403
            %v3420 = vadd.f32 %v3244, %v3404
            %3421 = vset.pattern.permute.xlu0 2
            %3422 = vperm.xlu0 %3421, %v3017
            %v3423 = vpop.permute.xlu0 %3422
            %3425 = vset.pattern.permute.xlu0 2
            %3426 = vperm.xlu0 %3425, %v3018
            %v3427 = vpop.permute.xlu0 %3426
            %3429 = vset.pattern.permute.xlu0 2
            %3430 = vperm.xlu0 %3429, %v3019
            %v3431 = vpop.permute.xlu0 %3430
            %3433 = vset.pattern.permute.xlu0 2
            %3434 = vperm.xlu0 %3433, %v3020
            %v3435 = vpop.permute.xlu0 %3434
            %3437 = vset.pattern.permute.xlu0 2
            %3438 = vperm.xlu0 %3437, %v3021
            %v3439 = vpop.permute.xlu0 %3438
            %3441 = vset.pattern.permute.xlu0 2
            %3442 = vperm.xlu0 %3441, %v3022
            %v3443 = vpop.permute.xlu0 %3442
            %3445 = vset.pattern.permute.xlu0 2
            %3446 = vperm.xlu0 %3445, %v3023
            %v3447 = vpop.permute.xlu0 %3446
            %3449 = vset.pattern.permute.xlu0 2
            %3450 = vperm.xlu0 %3449, %v3024
            %v3451 = vpop.permute.xlu0 %3450
            %3453 = vset.pattern.permute.xlu0 2
            %3454 = vperm.xlu0 %3453, %v3025
            %v3455 = vpop.permute.xlu0 %3454
            %3457 = vset.pattern.permute.xlu0 2
            %3458 = vperm.xlu0 %3457, %v3026
            %v3459 = vpop.permute.xlu0 %3458
            %3461 = vset.pattern.permute.xlu0 2
            %3462 = vperm.xlu0 %3461, %v3027
            %v3463 = vpop.permute.xlu0 %3462
            %3465 = vset.pattern.permute.xlu0 2
            %3466 = vperm.xlu0 %3465, %v3028
            %v3467 = vpop.permute.xlu0 %3466
            %3469 = vset.pattern.permute.xlu0 2
            %3470 = vperm.xlu0 %3469, %v3029
            %v3471 = vpop.permute.xlu0 %3470
            %3473 = vset.pattern.permute.xlu0 2
            %3474 = vperm.xlu0 %3473, %v3030
            %v3475 = vpop.permute.xlu0 %3474
            %3477 = vset.pattern.permute.xlu0 2
            %3478 = vperm.xlu0 %3477, %v3031
            %v3479 = vpop.permute.xlu0 %3478
            %3481 = vset.pattern.permute.xlu0 2
            %3482 = vperm.xlu0 %3481, %v3032
            %v3483 = vpop.permute.xlu0 %3482
            %vm3485 = vcmp.eq.f32.partialorder %v3036, %v3423
            %vm3486 = vcmp.eq.f32.partialorder %v3036, %v3427
            %vm3487 = vcmp.eq.f32.partialorder %v3036, %v3431
            %vm3488 = vcmp.eq.f32.partialorder %v3036, %v3435
            %vm3489 = vcmp.eq.f32.partialorder %v3036, %v3439
            %vm3490 = vcmp.eq.f32.partialorder %v3036, %v3443
            %vm3491 = vcmp.eq.f32.partialorder %v3036, %v3447
            %vm3492 = vcmp.eq.f32.partialorder %v3036, %v3451
            %vm3493 = vcmp.eq.f32.partialorder %v3036, %v3455
            %vm3494 = vcmp.eq.f32.partialorder %v3036, %v3459
            %vm3495 = vcmp.eq.f32.partialorder %v3036, %v3463
            %vm3496 = vcmp.eq.f32.partialorder %v3036, %v3467
            %vm3497 = vcmp.eq.f32.partialorder %v3036, %v3471
            %vm3498 = vcmp.eq.f32.partialorder %v3036, %v3475
            %vm3499 = vcmp.eq.f32.partialorder %v3036, %v3479
            %vm3500 = vcmp.eq.f32.partialorder %v3036, %v3483
            %3501 = vset.pattern.permute.xlu0 2
            %3502 = vperm.xlu0 %3501, %v3001
            %v3503 = vpop.permute.xlu0 %3502
            %3505 = vset.pattern.permute.xlu0 2
            %3506 = vperm.xlu0 %3505, %v3002
            %v3507 = vpop.permute.xlu0 %3506
            %3509 = vset.pattern.permute.xlu0 2
            %3510 = vperm.xlu0 %3509, %v3003
            %v3511 = vpop.permute.xlu0 %3510
            %3513 = vset.pattern.permute.xlu0 2
            %3514 = vperm.xlu0 %3513, %v3004
            %v3515 = vpop.permute.xlu0 %3514
            %3517 = vset.pattern.permute.xlu0 2
            %3518 = vperm.xlu0 %3517, %v3005
            %v3519 = vpop.permute.xlu0 %3518
            %3521 = vset.pattern.permute.xlu0 2
            %3522 = vperm.xlu0 %3521, %v3006
            %v3523 = vpop.permute.xlu0 %3522
            %3525 = vset.pattern.permute.xlu0 2
            %3526 = vperm.xlu0 %3525, %v3007
            %v3527 = vpop.permute.xlu0 %3526
            %3529 = vset.pattern.permute.xlu0 2
            %3530 = vperm.xlu0 %3529, %v3008
            %v3531 = vpop.permute.xlu0 %3530
            %3533 = vset.pattern.permute.xlu0 2
            %3534 = vperm.xlu0 %3533, %v3009
            %v3535 = vpop.permute.xlu0 %3534
            %3537 = vset.pattern.permute.xlu0 2
            %3538 = vperm.xlu0 %3537, %v3010
            %v3539 = vpop.permute.xlu0 %3538
            %3541 = vset.pattern.permute.xlu0 2
            %3542 = vperm.xlu0 %3541, %v3011
            %v3543 = vpop.permute.xlu0 %3542
            %3545 = vset.pattern.permute.xlu0 2
            %3546 = vperm.xlu0 %3545, %v3012
            %v3547 = vpop.permute.xlu0 %3546
            %3549 = vset.pattern.permute.xlu0 2
            %3550 = vperm.xlu0 %3549, %v3013
            %v3551 = vpop.permute.xlu0 %3550
            %3553 = vset.pattern.permute.xlu0 2
            %3554 = vperm.xlu0 %3553, %v3014
            %v3555 = vpop.permute.xlu0 %3554
            %3557 = vset.pattern.permute.xlu0 2
            %3558 = vperm.xlu0 %3557, %v3015
            %v3559 = vpop.permute.xlu0 %3558
            %3561 = vset.pattern.permute.xlu0 2
            %3562 = vperm.xlu0 %3561, %v3016
            %v3563 = vpop.permute.xlu0 %3562
            %v3565 = vsel %vm3485, %v3503, 0.0
            %v3566 = vsel %vm3486, %v3507, 0.0
            %v3567 = vsel %vm3487, %v3511, 0.0
            %v3568 = vsel %vm3488, %v3515, 0.0
            %v3569 = vsel %vm3489, %v3519, 0.0
            %v3570 = vsel %vm3490, %v3523, 0.0
            %v3571 = vsel %vm3491, %v3527, 0.0
            %v3572 = vsel %vm3492, %v3531, 0.0
            %v3573 = vsel %vm3493, %v3535, 0.0
            %v3574 = vsel %vm3494, %v3539, 0.0
            %v3575 = vsel %vm3495, %v3543, 0.0
            %v3576 = vsel %vm3496, %v3547, 0.0
            %v3577 = vsel %vm3497, %v3551, 0.0
            %v3578 = vsel %vm3498, %v3555, 0.0
            %v3579 = vsel %vm3499, %v3559, 0.0
            %v3580 = vsel %vm3500, %v3563, 0.0
            %v3581 = vadd.f32 %v3405, %v3565
            %v3582 = vadd.f32 %v3406, %v3566
            %v3583 = vadd.f32 %v3407, %v3567
            %v3584 = vadd.f32 %v3408, %v3568
            %v3585 = vadd.f32 %v3409, %v3569
            %v3586 = vadd.f32 %v3410, %v3570
            %v3587 = vadd.f32 %v3411, %v3571
            %v3588 = vadd.f32 %v3412, %v3572
            %v3589 = vadd.f32 %v3413, %v3573
            %v3590 = vadd.f32 %v3414, %v3574
            %v3591 = vadd.f32 %v3415, %v3575
            %v3592 = vadd.f32 %v3416, %v3576
            %v3593 = vadd.f32 %v3417, %v3577
            %v3594 = vadd.f32 %v3418, %v3578
            %v3595 = vadd.f32 %v3419, %v3579
            %v3596 = vadd.f32 %v3420, %v3580
            %v3597 = vld [vmem:[#allocation4] sm:$0xff]
            %v3598 = vld [vmem:[#allocation4 + $0x8] sm:$0xff]
            %v3599 = vld [vmem:[#allocation4 + $0x10] sm:$0xff]
            %v3600 = vld [vmem:[#allocation4 + $0x18] sm:$0xff]
            %v3601 = vld [vmem:[#allocation4 + $0x20] sm:$0xff]
            %v3602 = vld [vmem:[#allocation4 + $0x28] sm:$0xff]
            %v3603 = vld [vmem:[#allocation4 + $0x30] sm:$0xff]
            %v3604 = vld [vmem:[#allocation4 + $0x38] sm:$0xff]
            %v3605 = vld [vmem:[#allocation4 + $0x40] sm:$0xff]
            %v3606 = vld [vmem:[#allocation4 + $0x48] sm:$0xff]
            %v3607 = vld [vmem:[#allocation4 + $0x50] sm:$0xff]
            %v3608 = vld [vmem:[#allocation4 + $0x58] sm:$0xff]
            %v3609 = vld [vmem:[#allocation4 + $0x60] sm:$0xff]
            %v3610 = vld [vmem:[#allocation4 + $0x68] sm:$0xff]
            %v3611 = vld [vmem:[#allocation4 + $0x70] sm:$0xff]
            %v3612 = vld [vmem:[#allocation4 + $0x78] sm:$0xff]
            %v3613 = vpack.c.bf16 %v3582, %v3581
            %v3614 = vpack.c.bf16 %v3584, %v3583
            %v3615 = vpack.c.bf16 %v3586, %v3585
            %v3616 = vpack.c.bf16 %v3588, %v3587
            %v3617 = vpack.c.bf16 %v3590, %v3589
            %v3618 = vpack.c.bf16 %v3592, %v3591
            %v3619 = vpack.c.bf16 %v3594, %v3593
            %v3620 = vpack.c.bf16 %v3596, %v3595
            %v3621 = vunpack.c.l.bf16 %v3613
            %v3622 = vunpack.c.h.bf16 %v3613
            %v3623 = vunpack.c.l.bf16 %v3614
            %v3624 = vunpack.c.h.bf16 %v3614
            %v3625 = vunpack.c.l.bf16 %v3615
            %v3626 = vunpack.c.h.bf16 %v3615
            %v3627 = vunpack.c.l.bf16 %v3616
            %v3628 = vunpack.c.h.bf16 %v3616
            %v3629 = vunpack.c.l.bf16 %v3617
            %v3630 = vunpack.c.h.bf16 %v3617
            %v3631 = vunpack.c.l.bf16 %v3618
            %v3632 = vunpack.c.h.bf16 %v3618
            %v3633 = vunpack.c.l.bf16 %v3619
            %v3634 = vunpack.c.h.bf16 %v3619
            %v3635 = vunpack.c.l.bf16 %v3620
            %v3636 = vunpack.c.h.bf16 %v3620
            %v3637 = vsub.f32 %v3581, %v3621
            %v3638 = vsub.f32 %v3582, %v3622
            %v3639 = vsub.f32 %v3583, %v3623
            %v3640 = vsub.f32 %v3584, %v3624
            %v3641 = vsub.f32 %v3585, %v3625
            %v3642 = vsub.f32 %v3586, %v3626
            %v3643 = vsub.f32 %v3587, %v3627
            %v3644 = vsub.f32 %v3588, %v3628
            %v3645 = vsub.f32 %v3589, %v3629
            %v3646 = vsub.f32 %v3590, %v3630
            %v3647 = vsub.f32 %v3591, %v3631
            %v3648 = vsub.f32 %v3592, %v3632
            %v3649 = vsub.f32 %v3593, %v3633
            %v3650 = vsub.f32 %v3594, %v3634
            %v3651 = vsub.f32 %v3595, %v3635
            %v3652 = vsub.f32 %v3596, %v3636
            %v3653 = vpack.c.bf16 %v3638, %v3637
            %v3654 = vpack.c.bf16 %v3640, %v3639
            %v3655 = vpack.c.bf16 %v3642, %v3641
            %v3656 = vpack.c.bf16 %v3644, %v3643
            %v3657 = vpack.c.bf16 %v3646, %v3645
            %v3658 = vpack.c.bf16 %v3648, %v3647
            %v3659 = vpack.c.bf16 %v3650, %v3649
            %v3660 = vpack.c.bf16 %v3652, %v3651
            %v3661 = vpack.c.bf16 %v2986, %v2985
            %v3662 = vpack.c.bf16 %v2988, %v2987
            %v3663 = vpack.c.bf16 %v2990, %v2989
            %v3664 = vpack.c.bf16 %v2992, %v2991
            %v3665 = vpack.c.bf16 %v2994, %v2993
            %v3666 = vpack.c.bf16 %v2996, %v2995
            %v3667 = vpack.c.bf16 %v2998, %v2997
            %v3668 = vpack.c.bf16 %v3000, %v2999
            %v3669 = vunpack.c.l.bf16 %v3661
            %v3670 = vunpack.c.h.bf16 %v3661
            %v3671 = vunpack.c.l.bf16 %v3662
            %v3672 = vunpack.c.h.bf16 %v3662
            %v3673 = vunpack.c.l.bf16 %v3663
            %v3674 = vunpack.c.h.bf16 %v3663
            %v3675 = vunpack.c.l.bf16 %v3664
            %v3676 = vunpack.c.h.bf16 %v3664
            %v3677 = vunpack.c.l.bf16 %v3665
            %v3678 = vunpack.c.h.bf16 %v3665
            %v3679 = vunpack.c.l.bf16 %v3666
            %v3680 = vunpack.c.h.bf16 %v3666
            %v3681 = vunpack.c.l.bf16 %v3667
            %v3682 = vunpack.c.h.bf16 %v3667
            %v3683 = vunpack.c.l.bf16 %v3668
            %v3684 = vunpack.c.h.bf16 %v3668
            %v3685 = vsub.f32 %v2985, %v3669
            %v3686 = vsub.f32 %v2986, %v3670
            %v3687 = vsub.f32 %v2987, %v3671
            %v3688 = vsub.f32 %v2988, %v3672
            %v3689 = vsub.f32 %v2989, %v3673
            %v3690 = vsub.f32 %v2990, %v3674
            %v3691 = vsub.f32 %v2991, %v3675
            %v3692 = vsub.f32 %v2992, %v3676
            %v3693 = vsub.f32 %v2993, %v3677
            %v3694 = vsub.f32 %v2994, %v3678
            %v3695 = vsub.f32 %v2995, %v3679
            %v3696 = vsub.f32 %v2996, %v3680
            %v3697 = vsub.f32 %v2997, %v3681
            %v3698 = vsub.f32 %v2998, %v3682
            %v3699 = vsub.f32 %v2999, %v3683
            %v3700 = vsub.f32 %v3000, %v3684
            %v3701 = vpack.c.bf16 %v3686, %v3685
            %v3702 = vpack.c.bf16 %v3688, %v3687
            %v3703 = vpack.c.bf16 %v3690, %v3689
            %v3704 = vpack.c.bf16 %v3692, %v3691
            %v3705 = vpack.c.bf16 %v3694, %v3693
            %v3706 = vpack.c.bf16 %v3696, %v3695
            %v3707 = vpack.c.bf16 %v3698, %v3697
            %v3708 = vpack.c.bf16 %v3700, %v3699
            %3709 = vmatprep.subr.bf16.mxu0 0
            %3710 = vmatpush1.bf16.msra.mxu0 %v3701
            %3711 = vmatprep.subr.bf16.mxu0 0
            %3712 = vmatpush1.bf16.msra.mxu0 %v3702
            %3713 = vmatprep.subr.bf16.mxu0 0
            %3714 = vmatpush1.bf16.msra.mxu0 %v3703
            %3715 = vmatprep.subr.bf16.mxu0 0
            %3716 = vmatpush1.bf16.msra.mxu0 %v3704
            %3717 = vmatprep.subr.bf16.mxu0 0
            %3718 = vmatpush1.bf16.msra.mxu0 %v3705
            %3719 = vmatprep.subr.bf16.mxu0 0
            %3720 = vmatpush1.bf16.msra.mxu0 %v3706
            %3721 = vmatprep.subr.bf16.mxu0 0
            %3722 = vmatpush1.bf16.msra.mxu0 %v3707
            %3723 = vmatprep.subr.bf16.mxu0 0
            %3724 = vmatpush1.bf16.msra.mxu0 %v3708
            %3725 = vmatprep.subr.bf16.mxu0 0
            %3726 = vmatpush1.bf16.msra.mxu0 0
            %3727 = vmatprep.subr.bf16.mxu0 0
            %3728 = vmatpush1.bf16.msra.mxu0 0
            %3729 = vmatprep.subr.bf16.mxu0 0
            %3730 = vmatpush1.bf16.msra.mxu0 0
            %3731 = vmatprep.subr.bf16.mxu0 0
            %3732 = vmatpush1.bf16.msra.mxu0 0
            %3733 = vmatprep.subr.bf16.mxu0 0
            %3734 = vmatpush1.bf16.msra.mxu0 0
            %3735 = vmatprep.subr.bf16.mxu0 0
            %3736 = vmatpush1.bf16.msra.mxu0 0
            %3737 = vmatprep.subr.bf16.mxu0 0
            %3738 = vmatpush1.bf16.msra.mxu0 0
            %3739 = vmatprep.subr.bf16.mxu0 0
            %3740 = vmatpush1.bf16.msra.mxu0 0
            %3741 = vmatprep.mubr.bf16.mxu0 0
            %3742 = vmatmul.mubr.bf16.gmra.mrb[0].mxu0 %v3613
            %v3743 = vpop.f32.mrb[0].mxu0
            %v3744 = vadd.f32 0.0, %v3743
            %v3745 = vpop.f32.mrb[0].mxu0
            %v3746 = vpop.f32.mrb[0].mxu0
            %v3747 = vadd.f32 0.0, %v3746
            %v3748 = vpop.f32.mrb[0].mxu0
            %3749 = vmatprep.mubr.bf16.mxu0 0
            %3750 = vmatmul.mubr.bf16.gmra.mrb[0].mxu0 %v3614
            %v3751 = vpop.f32.mrb[0].mxu0
            %v3752 = vadd.f32 0.0, %v3751
            %v3753 = vpop.f32.mrb[0].mxu0
            %v3754 = vpop.f32.mrb[0].mxu0
            %v3755 = vadd.f32 0.0, %v3754
            %v3756 = vpop.f32.mrb[0].mxu0
            %3757 = vmatprep.mubr.bf16.mxu0 0
            %3758 = vmatmul.mubr.bf16.gmra.mrb[0].mxu0 %v3615
            %v3759 = vpop.f32.mrb[0].mxu0
            %v3760 = vadd.f32 0.0, %v3759
            %v3761 = vpop.f32.mrb[0].mxu0
            %v3762 = vpop.f32.mrb[0].mxu0
            %v3763 = vadd.f32 0.0, %v3762
            %v3764 = vpop.f32.mrb[0].mxu0
            %3765 = vmatprep.mubr.bf16.mxu0 0
            %3766 = vmatmul.mubr.bf16.gmra.mrb[0].mxu0 %v3616
            %v3767 = vpop.f32.mrb[0].mxu0
            %v3768 = vadd.f32 0.0, %v3767
            %v3769 = vpop.f32.mrb[0].mxu0
            %v3770 = vpop.f32.mrb[0].mxu0
            %v3771 = vadd.f32 0.0, %v3770
            %v3772 = vpop.f32.mrb[0].mxu0
            %3773 = vmatprep.mubr.bf16.mxu0 0
            %3774 = vmatmul.mubr.bf16.gmra.mrb[0].mxu0 %v3617
            %v3775 = vpop.f32.mrb[0].mxu0
            %v3776 = vadd.f32 0.0, %v3775
            %v3777 = vpop.f32.mrb[0].mxu0
            %v3778 = vpop.f32.mrb[0].mxu0
            %v3779 = vadd.f32 0.0, %v3778
            %v3780 = vpop.f32.mrb[0].mxu0
            %3781 = vmatprep.mubr.bf16.mxu0 0
            %3782 = vmatmul.mubr.bf16.gmra.mrb[0].mxu0 %v3618
            %v3783 = vpop.f32.mrb[0].mxu0
            %v3784 = vadd.f32 0.0, %v3783
            %v3785 = vpop.f32.mrb[0].mxu0
            %v3786 = vpop.f32.mrb[0].mxu0
            %v3787 = vadd.f32 0.0, %v3786
            %v3788 = vpop.f32.mrb[0].mxu0
            %3789 = vmatprep.mubr.bf16.mxu0 0
            %3790 = vmatmul.mubr.bf16.gmra.mrb[0].mxu0 %v3619
            %v3791 = vpop.f32.mrb[0].mxu0
            %v3792 = vadd.f32 0.0, %v3791
            %v3793 = vpop.f32.mrb[0].mxu0
            %v3794 = vpop.f32.mrb[0].mxu0
            %v3795 = vadd.f32 0.0, %v3794
            %v3796 = vpop.f32.mrb[0].mxu0
            %3797 = vmatprep.mubr.bf16.mxu0 0
            %3798 = vmatmul.mubr.bf16.gmra.mrb[0].mxu0 %v3620
            %v3799 = vpop.f32.mrb[0].mxu0
            %v3800 = vadd.f32 0.0, %v3799
            %v3801 = vpop.f32.mrb[0].mxu0
            %v3802 = vpop.f32.mrb[0].mxu0
            %v3803 = vadd.f32 0.0, %v3802
            %v3804 = vpop.f32.mrb[0].mxu0
            %3805 = vdwg.mxu0
            %3806 = vmatprep.subr.bf16.mxu0 0
            %3807 = vmatpush1.bf16.msra.mxu0 %v3661
            %3808 = vmatprep.subr.bf16.mxu0 0
            %3809 = vmatpush1.bf16.msra.mxu0 %v3662
            %3810 = vmatprep.subr.bf16.mxu0 0
            %3811 = vmatpush1.bf16.msra.mxu0 %v3663
            %3812 = vmatprep.subr.bf16.mxu0 0
            %3813 = vmatpush1.bf16.msra.mxu0 %v3664
            %3814 = vmatprep.subr.bf16.mxu0 0
            %3815 = vmatpush1.bf16.msra.mxu0 %v3665
            %3816 = vmatprep.subr.bf16.mxu0 0
            %3817 = vmatpush1.bf16.msra.mxu0 %v3666
            %3818 = vmatprep.subr.bf16.mxu0 0
            %3819 = vmatpush1.bf16.msra.mxu0 %v3667
            %3820 = vmatprep.subr.bf16.mxu0 0
            %3821 = vmatpush1.bf16.msra.mxu0 %v3668
            %3822 = vmatprep.subr.bf16.mxu0 0
            %3823 = vmatpush1.bf16.msra.mxu0 0
            %3824 = vmatprep.subr.bf16.mxu0 0
            %3825 = vmatpush1.bf16.msra.mxu0 0
            %3826 = vmatprep.subr.bf16.mxu0 0
            %3827 = vmatpush1.bf16.msra.mxu0 0
            %3828 = vmatprep.subr.bf16.mxu0 0
            %3829 = vmatpush1.bf16.msra.mxu0 0
            %3830 = vmatprep.subr.bf16.mxu0 0
            %3831 = vmatpush1.bf16.msra.mxu0 0
            %3832 = vmatprep.subr.bf16.mxu0 0
            %3833 = vmatpush1.bf16.msra.mxu0 0
            %3834 = vmatprep.subr.bf16.mxu0 0
            %3835 = vmatpush1.bf16.msra.mxu0 0
            %3836 = vmatprep.subr.bf16.mxu0 0
            %3837 = vmatpush1.bf16.msra.mxu0 0
            %3838 = vmatprep.mubr.bf16.mxu0 0
            %3839 = vmatmul.mubr.bf16.gmra.mrb[0].mxu0 %v3613
            %v3840 = vpop.f32.mrb[0].mxu0
            %v3841 = vadd.f32 %v3744, %v3840
            %v3842 = vpop.f32.mrb[0].mxu0
            %v3843 = vpop.f32.mrb[0].mxu0
            %v3844 = vadd.f32 %v3747, %v3843
            %v3845 = vpop.f32.mrb[0].mxu0
            %3846 = vmatprep.mubr.bf16.mxu0 0
            %3847 = vmatmul.mubr.bf16.gmra.mrb[0].mxu0 %v3614
            %v3848 = vpop.f32.mrb[0].mxu0
            %v3849 = vadd.f32 %v3752, %v3848
            %v3850 = vpop.f32.mrb[0].mxu0
            %v3851 = vpop.f32.mrb[0].mxu0
            %v3852 = vadd.f32 %v3755, %v3851
            %v3853 = vpop.f32.mrb[0].mxu0
            %3854 = vmatprep.mubr.bf16.mxu0 0
            %3855 = vmatmul.mubr.bf16.gmra.mrb[0].mxu0 %v3615
            %v3856 = vpop.f32.mrb[0].mxu0
            %v3857 = vadd.f32 %v3760, %v3856
            %v3858 = vpop.f32.mrb[0].mxu0
            %v3859 = vpop.f32.mrb[0].mxu0
            %v3860 = vadd.f32 %v3763, %v3859
            %v3861 = vpop.f32.mrb[0].mxu0
            %3862 = vmatprep.mubr.bf16.mxu0 0
            %3863 = vmatmul.mubr.bf16.gmra.mrb[0].mxu0 %v3616
            %v3864 = vpop.f32.mrb[0].mxu0
            %v3865 = vadd.f32 %v3768, %v3864
            %v3866 = vpop.f32.mrb[0].mxu0
            %v3867 = vpop.f32.mrb[0].mxu0
            %v3868 = vadd.f32 %v3771, %v3867
            %v3869 = vpop.f32.mrb[0].mxu0
            %3870 = vmatprep.mubr.bf16.mxu0 0
            %3871 = vmatmul.mubr.bf16.gmra.mrb[0].mxu0 %v3617
            %v3872 = vpop.f32.mrb[0].mxu0
            %v3873 = vadd.f32 %v3776, %v3872
            %v3874 = vpop.f32.mrb[0].mxu0
            %v3875 = vpop.f32.mrb[0].mxu0
            %v3876 = vadd.f32 %v3779, %v3875
            %v3877 = vpop.f32.mrb[0].mxu0
            %3878 = vmatprep.mubr.bf16.mxu0 0
            %3879 = vmatmul.mubr.bf16.gmra.mrb[0].mxu0 %v3618
            %v3880 = vpop.f32.mrb[0].mxu0
            %v3881 = vadd.f32 %v3784, %v3880
            %v3882 = vpop.f32.mrb[0].mxu0
            %v3883 = vpop.f32.mrb[0].mxu0
            %v3884 = vadd.f32 %v3787, %v3883
            %v3885 = vpop.f32.mrb[0].mxu0
            %3886 = vmatprep.mubr.bf16.mxu0 0
            %3887 = vmatmul.mubr.bf16.gmra.mrb[0].mxu0 %v3619
            %v3888 = vpop.f32.mrb[0].mxu0
            %v3889 = vadd.f32 %v3792, %v3888
            %v3890 = vpop.f32.mrb[0].mxu0
            %v3891 = vpop.f32.mrb[0].mxu0
            %v3892 = vadd.f32 %v3795, %v3891
            %v3893 = vpop.f32.mrb[0].mxu0
            %3894 = vmatprep.mubr.bf16.mxu0 0
            %3895 = vmatmul.mubr.bf16.gmra.mrb[0].mxu0 %v3620
            %v3896 = vpop.f32.mrb[0].mxu0
            %v3897 = vadd.f32 %v3800, %v3896
            %v3898 = vpop.f32.mrb[0].mxu0
            %v3899 = vpop.f32.mrb[0].mxu0
            %v3900 = vadd.f32 %v3803, %v3899
            %v3901 = vpop.f32.mrb[0].mxu0
            %3902 = vdwg.mxu0
            %3903 = vmatprep.subr.bf16.mxu0 0
            %3904 = vmatpush1.bf16.msra.mxu0 %v3661
            %3905 = vmatprep.subr.bf16.mxu0 0
            %3906 = vmatpush1.bf16.msra.mxu0 %v3662
            %3907 = vmatprep.subr.bf16.mxu0 0
            %3908 = vmatpush1.bf16.msra.mxu0 %v3663
            %3909 = vmatprep.subr.bf16.mxu0 0
            %3910 = vmatpush1.bf16.msra.mxu0 %v3664
            %3911 = vmatprep.subr.bf16.mxu0 0
            %3912 = vmatpush1.bf16.msra.mxu0 %v3665
            %3913 = vmatprep.subr.bf16.mxu0 0
            %3914 = vmatpush1.bf16.msra.mxu0 %v3666
            %3915 = vmatprep.subr.bf16.mxu0 0
            %3916 = vmatpush1.bf16.msra.mxu0 %v3667
            %3917 = vmatprep.subr.bf16.mxu0 0
            %3918 = vmatpush1.bf16.msra.mxu0 %v3668
            %3919 = vmatprep.subr.bf16.mxu0 0
            %3920 = vmatpush1.bf16.msra.mxu0 0
            %3921 = vmatprep.subr.bf16.mxu0 0
            %3922 = vmatpush1.bf16.msra.mxu0 0
            %3923 = vmatprep.subr.bf16.mxu0 0
            %3924 = vmatpush1.bf16.msra.mxu0 0
            %3925 = vmatprep.subr.bf16.mxu0 0
            %3926 = vmatpush1.bf16.msra.mxu0 0
            %3927 = vmatprep.subr.bf16.mxu0 0
            %3928 = vmatpush1.bf16.msra.mxu0 0
            %3929 = vmatprep.subr.bf16.mxu0 0
            %3930 = vmatpush1.bf16.msra.mxu0 0
            %3931 = vmatprep.subr.bf16.mxu0 0
            %3932 = vmatpush1.bf16.msra.mxu0 0
            %3933 = vmatprep.subr.bf16.mxu0 0
            %3934 = vmatpush1.bf16.msra.mxu0 0
            %3935 = vmatprep.mubr.bf16.mxu0 0
            %3936 = vmatmul.mubr.bf16.gmra.mrb[0].mxu0 %v3653
            %v3937 = vpop.f32.mrb[0].mxu0
            %v3938 = vadd.f32 0.0, %v3937
            %v3939 = vpop.f32.mrb[0].mxu0
            %v3940 = vpop.f32.mrb[0].mxu0
            %v3941 = vadd.f32 0.0, %v3940
            %v3942 = vpop.f32.mrb[0].mxu0
            %3943 = vmatprep.mubr.bf16.mxu0 0
            %3944 = vmatmul.mubr.bf16.gmra.mrb[0].mxu0 %v3654
            %v3945 = vpop.f32.mrb[0].mxu0
            %v3946 = vadd.f32 0.0, %v3945
            %v3947 = vpop.f32.mrb[0].mxu0
            %v3948 = vpop.f32.mrb[0].mxu0
            %v3949 = vadd.f32 0.0, %v3948
            %v3950 = vpop.f32.mrb[0].mxu0
            %3951 = vmatprep.mubr.bf16.mxu0 0
            %3952 = vmatmul.mubr.bf16.gmra.mrb[0].mxu0 %v3655
            %v3953 = vpop.f32.mrb[0].mxu0
            %v3954 = vadd.f32 0.0, %v3953
            %v3955 = vpop.f32.mrb[0].mxu0
            %v3956 = vpop.f32.mrb[0].mxu0
            %v3957 = vadd.f32 0.0, %v3956
            %v3958 = vpop.f32.mrb[0].mxu0
            %3959 = vmatprep.mubr.bf16.mxu0 0
            %3960 = vmatmul.mubr.bf16.gmra.mrb[0].mxu0 %v3656
            %v3961 = vpop.f32.mrb[0].mxu0
            %v3962 = vadd.f32 0.0, %v3961
            %v3963 = vpop.f32.mrb[0].mxu0
            %v3964 = vpop.f32.mrb[0].mxu0
            %v3965 = vadd.f32 0.0, %v3964
            %v3966 = vpop.f32.mrb[0].mxu0
            %3967 = vmatprep.mubr.bf16.mxu0 0
            %3968 = vmatmul.mubr.bf16.gmra.mrb[0].mxu0 %v3657
            %v3969 = vpop.f32.mrb[0].mxu0
            %v3970 = vadd.f32 0.0, %v3969
            %v3971 = vpop.f32.mrb[0].mxu0
            %v3972 = vpop.f32.mrb[0].mxu0
            %v3973 = vadd.f32 0.0, %v3972
            %v3974 = vpop.f32.mrb[0].mxu0
            %3975 = vmatprep.mubr.bf16.mxu0 0
            %3976 = vmatmul.mubr.bf16.gmra.mrb[0].mxu0 %v3658
            %v3977 = vpop.f32.mrb[0].mxu0
            %v3978 = vadd.f32 0.0, %v3977
            %v3979 = vpop.f32.mrb[0].mxu0
            %v3980 = vpop.f32.mrb[0].mxu0
            %v3981 = vadd.f32 0.0, %v3980
            %v3982 = vpop.f32.mrb[0].mxu0
            %3983 = vmatprep.mubr.bf16.mxu0 0
            %3984 = vmatmul.mubr.bf16.gmra.mrb[0].mxu0 %v3659
            %v3985 = vpop.f32.mrb[0].mxu0
            %v3986 = vadd.f32 0.0, %v3985
            %v3987 = vpop.f32.mrb[0].mxu0
            %v3988 = vpop.f32.mrb[0].mxu0
            %v3989 = vadd.f32 0.0, %v3988
            %v3990 = vpop.f32.mrb[0].mxu0
            %3991 = vmatprep.mubr.bf16.mxu0 0
            %3992 = vmatmul.mubr.bf16.gmra.mrb[0].mxu0 %v3660
            %v3993 = vpop.f32.mrb[0].mxu0
            %v3994 = vadd.f32 0.0, %v3993
            %v3995 = vpop.f32.mrb[0].mxu0
            %v3996 = vpop.f32.mrb[0].mxu0
            %v3997 = vadd.f32 0.0, %v3996
            %v3998 = vpop.f32.mrb[0].mxu0
            %3999 = vdwg.mxu0
            %v4000 = vadd.f32 %v3841, %v3938
            %v4001 = vadd.f32 %v3844, %v3941
            %v4002 = vadd.f32 %v3849, %v3946
            %v4003 = vadd.f32 %v3852, %v3949
            %v4004 = vadd.f32 %v3857, %v3954
            %v4005 = vadd.f32 %v3860, %v3957
            %v4006 = vadd.f32 %v3865, %v3962
            %v4007 = vadd.f32 %v3868, %v3965
            %v4008 = vadd.f32 %v3873, %v3970
            %v4009 = vadd.f32 %v3876, %v3973
            %v4010 = vadd.f32 %v3881, %v3978
            %v4011 = vadd.f32 %v3884, %v3981
            %v4012 = vadd.f32 %v3889, %v3986
            %v4013 = vadd.f32 %v3892, %v3989
            %v4014 = vadd.f32 %v3897, %v3994
            %v4015 = vadd.f32 %v3900, %v3997
            %v4016 = vadd.f32 %v3597, %v4000
            %v4017 = vadd.f32 %v3598, %v4001
            %v4018 = vadd.f32 %v3599, %v4002
            %v4019 = vadd.f32 %v3600, %v4003
            %v4020 = vadd.f32 %v3601, %v4004
            %v4021 = vadd.f32 %v3602, %v4005
            %v4022 = vadd.f32 %v3603, %v4006
            %v4023 = vadd.f32 %v3604, %v4007
            %v4024 = vadd.f32 %v3605, %v4008
            %v4025 = vadd.f32 %v3606, %v4009
            %v4026 = vadd.f32 %v3607, %v4010
            %v4027 = vadd.f32 %v3608, %v4011
            %v4028 = vadd.f32 %v3609, %v4012
            %v4029 = vadd.f32 %v3610, %v4013
            %v4030 = vadd.f32 %v3611, %v4014
            %v4031 = vadd.f32 %v3612, %v4015
            %vm4032 = vcmask 130048
            %4033 = vst.msk [vmem:[#allocation4] sm:$0xff] %vm4032, %v4016
            %4034 = vst.msk [vmem:[#allocation4 + $0x8] sm:$0xff] %vm4032, %v4017
            %4035 = vst.msk [vmem:[#allocation4 + $0x10] sm:$0xff] %vm4032, %v4018
            %4036 = vst.msk [vmem:[#allocation4 + $0x18] sm:$0xff] %vm4032, %v4019
            %4037 = vst.msk [vmem:[#allocation4 + $0x20] sm:$0xff] %vm4032, %v4020
            %4038 = vst.msk [vmem:[#allocation4 + $0x28] sm:$0xff] %vm4032, %v4021
            %4039 = vst.msk [vmem:[#allocation4 + $0x30] sm:$0xff] %vm4032, %v4022
            %4040 = vst.msk [vmem:[#allocation4 + $0x38] sm:$0xff] %vm4032, %v4023
            %4041 = vst.msk [vmem:[#allocation4 + $0x40] sm:$0xff] %vm4032, %v4024
            %4042 = vst.msk [vmem:[#allocation4 + $0x48] sm:$0xff] %vm4032, %v4025
            %4043 = vst.msk [vmem:[#allocation4 + $0x50] sm:$0xff] %vm4032, %v4026
            %4044 = vst.msk [vmem:[#allocation4 + $0x58] sm:$0xff] %vm4032, %v4027
            %4045 = vst.msk [vmem:[#allocation4 + $0x60] sm:$0xff] %vm4032, %v4028
            %4046 = vst.msk [vmem:[#allocation4 + $0x68] sm:$0xff] %vm4032, %v4029
            %4047 = vst.msk [vmem:[#allocation4 + $0x70] sm:$0xff] %vm4032, %v4030
            %4048 = vst.msk [vmem:[#allocation4 + $0x78] sm:$0xff] %vm4032, %v4031
          $region92: #{tpu_custom_call.1} parent=87 // pred_fallthru
            _
        $region88: #{tpu_custom_call.1} parent=71 // pred_fallthru
          _
        // Predicated region
        $region93: #{tpu_custom_call.1} parent=71 // pred_check
          %p4049 = pneg %p1969
        $region94: #{tpu_custom_call.1} parent=71 // pred_check_branch
          %4051 = sbr.rel (%p4049) target = $region96
        $region95: #{tpu_custom_call.1} parent=71 // pred_region
          %v4052 = vld [vmem:[%s547] sm:$0xff]
          %v4053 = vld [vmem:[%s547 + $0x8] sm:$0xff]
          %v4054 = vld [vmem:[%s547 + $0x10] sm:$0xff]
          %v4055 = vld [vmem:[%s547 + $0x18] sm:$0xff]
          %v4056 = vld [vmem:[%s547 + $0x20] sm:$0xff]
          %v4057 = vld [vmem:[%s547 + $0x28] sm:$0xff]
          %v4058 = vld [vmem:[%s547 + $0x30] sm:$0xff]
          %v4059 = vld [vmem:[%s547 + $0x38] sm:$0xff]
          %v4060 = vld [vmem:[%s547 + $0x40] sm:$0xff]
          %v4061 = vld [vmem:[%s547 + $0x48] sm:$0xff]
          %v4062 = vld [vmem:[%s547 + $0x50] sm:$0xff]
          %v4063 = vld [vmem:[%s547 + $0x58] sm:$0xff]
          %v4064 = vld [vmem:[%s547 + $0x60] sm:$0xff]
          %v4065 = vld [vmem:[%s547 + $0x68] sm:$0xff]
          %v4066 = vld [vmem:[%s547 + $0x70] sm:$0xff]
          %v4067 = vld [vmem:[%s547 + $0x78] sm:$0xff]
          %v4068 = vld [vmem:[%s8] sm:$0x1]
          %v4069 = vld [vmem:[%s9] sm:$0x1]
          %vm4070 = vcmask 130048
          %v4071 = vsel %vm4070, %v4052, 0.0
          %4072 = vadd.xlane.f32.xlu0 %v4071
          %v4073 = vpop.xlane.xlu0 %4072
          %v4074 = vsel %vm4070, %v4053, 0.0
          %4075 = vadd.xlane.f32.xlu0 %v4074
          %v4076 = vpop.xlane.xlu0 %4075
          %v4077 = vsel %vm4070, %v4054, 0.0
          %4078 = vadd.xlane.f32.xlu0 %v4077
          %v4079 = vpop.xlane.xlu0 %4078
          %v4080 = vsel %vm4070, %v4055, 0.0
          %4081 = vadd.xlane.f32.xlu0 %v4080
          %v4082 = vpop.xlane.xlu0 %4081
          %v4083 = vsel %vm4070, %v4056, 0.0
          %4084 = vadd.xlane.f32.xlu0 %v4083
          %v4085 = vpop.xlane.xlu0 %4084
          %v4086 = vsel %vm4070, %v4057, 0.0
          %4087 = vadd.xlane.f32.xlu0 %v4086
          %v4088 = vpop.xlane.xlu0 %4087
          %v4089 = vsel %vm4070, %v4058, 0.0
          %4090 = vadd.xlane.f32.xlu0 %v4089
          %v4091 = vpop.xlane.xlu0 %4090
          %v4092 = vsel %vm4070, %v4059, 0.0
          %4093 = vadd.xlane.f32.xlu0 %v4092
          %v4094 = vpop.xlane.xlu0 %4093
          %v4095 = vsel %vm4070, %v4060, 0.0
          %4096 = vadd.xlane.f32.xlu0 %v4095
          %v4097 = vpop.xlane.xlu0 %4096
          %v4098 = vsel %vm4070, %v4061, 0.0
          %4099 = vadd.xlane.f32.xlu0 %v4098
          %v4100 = vpop.xlane.xlu0 %4099
          %v4101 = vsel %vm4070, %v4062, 0.0
          %4102 = vadd.xlane.f32.xlu0 %v4101
          %v4103 = vpop.xlane.xlu0 %4102
          %v4104 = vsel %vm4070, %v4063, 0.0
          %4105 = vadd.xlane.f32.xlu0 %v4104
          %v4106 = vpop.xlane.xlu0 %4105
          %v4107 = vsel %vm4070, %v4064, 0.0
          %4108 = vadd.xlane.f32.xlu0 %v4107
          %v4109 = vpop.xlane.xlu0 %4108
          %v4110 = vsel %vm4070, %v4065, 0.0
          %4111 = vadd.xlane.f32.xlu0 %v4110
          %v4112 = vpop.xlane.xlu0 %4111
          %v4113 = vsel %vm4070, %v4066, 0.0
          %4114 = vadd.xlane.f32.xlu0 %v4113
          %v4115 = vpop.xlane.xlu0 %4114
          %v4116 = vsel %vm4070, %v4067, 0.0
          %4117 = vadd.xlane.f32.xlu0 %v4116
          %v4118 = vpop.xlane.xlu0 %4117
          %v4119 = vrcp.pop 16.0
          %v4120 = vmul.f32 %v4073, %v4119
          %v4121 = vmul.f32 %v4076, %v4119
          %v4122 = vmul.f32 %v4079, %v4119
          %v4123 = vmul.f32 %v4082, %v4119
          %v4124 = vmul.f32 %v4085, %v4119
          %v4125 = vmul.f32 %v4088, %v4119
          %v4126 = vmul.f32 %v4091, %v4119
          %v4127 = vmul.f32 %v4094, %v4119
          %v4128 = vmul.f32 %v4097, %v4119
          %v4129 = vmul.f32 %v4100, %v4119
          %v4130 = vmul.f32 %v4103, %v4119
          %v4131 = vmul.f32 %v4106, %v4119
          %v4132 = vmul.f32 %v4109, %v4119
          %v4133 = vmul.f32 %v4112, %v4119
          %v4134 = vmul.f32 %v4115, %v4119
          %v4135 = vmul.f32 %v4118, %v4119
          %v4136 = vsub.f32 %v4052, %v4120
          %v4137 = vsub.f32 %v4053, %v4121
          %v4138 = vsub.f32 %v4054, %v4122
          %v4139 = vsub.f32 %v4055, %v4123
          %v4140 = vsub.f32 %v4056, %v4124
          %v4141 = vsub.f32 %v4057, %v4125
          %v4142 = vsub.f32 %v4058, %v4126
          %v4143 = vsub.f32 %v4059, %v4127
          %v4144 = vsub.f32 %v4060, %v4128
          %v4145 = vsub.f32 %v4061, %v4129
          %v4146 = vsub.f32 %v4062, %v4130
          %v4147 = vsub.f32 %v4063, %v4131
          %v4148 = vsub.f32 %v4064, %v4132
          %v4149 = vsub.f32 %v4065, %v4133
          %v4150 = vsub.f32 %v4066, %v4134
          %v4151 = vsub.f32 %v4067, %v4135
          %v4152 = vmul.f32 %v4136, %v4136
          %v4153 = vmul.f32 %v4137, %v4137
          %v4154 = vmul.f32 %v4138, %v4138
          %v4155 = vmul.f32 %v4139, %v4139
          %v4156 = vmul.f32 %v4140, %v4140
          %v4157 = vmul.f32 %v4141, %v4141
          %v4158 = vmul.f32 %v4142, %v4142
          %v4159 = vmul.f32 %v4143, %v4143
          %v4160 = vmul.f32 %v4144, %v4144
          %v4161 = vmul.f32 %v4145, %v4145
          %v4162 = vmul.f32 %v4146, %v4146
          %v4163 = vmul.f32 %v4147, %v4147
          %v4164 = vmul.f32 %v4148, %v4148
          %v4165 = vmul.f32 %v4149, %v4149
          %v4166 = vmul.f32 %v4150, %v4150
          %v4167 = vmul.f32 %v4151, %v4151
          %v4168 = vsel %vm4070, %v4152, 0.0
          %4169 = vadd.xlane.f32.xlu0 %v4168
          %v4170 = vpop.xlane.xlu0 %4169
          %v4171 = vsel %vm4070, %v4153, 0.0
          %4172 = vadd.xlane.f32.xlu0 %v4171
          %v4173 = vpop.xlane.xlu0 %4172
          %v4174 = vsel %vm4070, %v4154, 0.0
          %4175 = vadd.xlane.f32.xlu0 %v4174
          %v4176 = vpop.xlane.xlu0 %4175
          %v4177 = vsel %vm4070, %v4155, 0.0
          %4178 = vadd.xlane.f32.xlu0 %v4177
          %v4179 = vpop.xlane.xlu0 %4178
          %v4180 = vsel %vm4070, %v4156, 0.0
          %4181 = vadd.xlane.f32.xlu0 %v4180
          %v4182 = vpop.xlane.xlu0 %4181
          %v4183 = vsel %vm4070, %v4157, 0.0
          %4184 = vadd.xlane.f32.xlu0 %v4183
          %v4185 = vpop.xlane.xlu0 %4184
          %v4186 = vsel %vm4070, %v4158, 0.0
          %4187 = vadd.xlane.f32.xlu0 %v4186
          %v4188 = vpop.xlane.xlu0 %4187
          %v4189 = vsel %vm4070, %v4159, 0.0
          %4190 = vadd.xlane.f32.xlu0 %v4189
          %v4191 = vpop.xlane.xlu0 %4190
          %v4192 = vsel %vm4070, %v4160, 0.0
          %4193 = vadd.xlane.f32.xlu0 %v4192
          %v4194 = vpop.xlane.xlu0 %4193
          %v4195 = vsel %vm4070, %v4161, 0.0
          %4196 = vadd.xlane.f32.xlu0 %v4195
          %v4197 = vpop.xlane.xlu0 %4196
          %v4198 = vsel %vm4070, %v4162, 0.0
          %4199 = vadd.xlane.f32.xlu0 %v4198
          %v4200 = vpop.xlane.xlu0 %4199
          %v4201 = vsel %vm4070, %v4163, 0.0
          %4202 = vadd.xlane.f32.xlu0 %v4201
          %v4203 = vpop.xlane.xlu0 %4202
          %v4204 = vsel %vm4070, %v4164, 0.0
          %4205 = vadd.xlane.f32.xlu0 %v4204
          %v4206 = vpop.xlane.xlu0 %4205
          %v4207 = vsel %vm4070, %v4165, 0.0
          %4208 = vadd.xlane.f32.xlu0 %v4207
          %v4209 = vpop.xlane.xlu0 %4208
          %v4210 = vsel %vm4070, %v4166, 0.0
          %4211 = vadd.xlane.f32.xlu0 %v4210
          %v4212 = vpop.xlane.xlu0 %4211
          %v4213 = vsel %vm4070, %v4167, 0.0
          %4214 = vadd.xlane.f32.xlu0 %v4213
          %v4215 = vpop.xlane.xlu0 %4214
          %v4216 = vmul.f32 %v4170, %v4119
          %v4217 = vmul.f32 %v4173, %v4119
          %v4218 = vmul.f32 %v4176, %v4119
          %v4219 = vmul.f32 %v4179, %v4119
          %v4220 = vmul.f32 %v4182, %v4119
          %v4221 = vmul.f32 %v4185, %v4119
          %v4222 = vmul.f32 %v4188, %v4119
          %v4223 = vmul.f32 %v4191, %v4119
          %v4224 = vmul.f32 %v4194, %v4119
          %v4225 = vmul.f32 %v4197, %v4119
          %v4226 = vmul.f32 %v4200, %v4119
          %v4227 = vmul.f32 %v4203, %v4119
          %v4228 = vmul.f32 %v4206, %v4119
          %v4229 = vmul.f32 %v4209, %v4119
          %v4230 = vmul.f32 %v4212, %v4119
          %v4231 = vmul.f32 %v4215, %v4119
          %v4232 = vadd.f32 %v4216, 1e-05
          %v4233 = vadd.f32 %v4217, 1e-05
          %v4234 = vadd.f32 %v4218, 1e-05
          %v4235 = vadd.f32 %v4219, 1e-05
          %v4236 = vadd.f32 %v4220, 1e-05
          %v4237 = vadd.f32 %v4221, 1e-05
          %v4238 = vadd.f32 %v4222, 1e-05
          %v4239 = vadd.f32 %v4223, 1e-05
          %v4240 = vadd.f32 %v4224, 1e-05
          %v4241 = vadd.f32 %v4225, 1e-05
          %v4242 = vadd.f32 %v4226, 1e-05
          %v4243 = vadd.f32 %v4227, 1e-05
          %v4244 = vadd.f32 %v4228, 1e-05
          %v4245 = vadd.f32 %v4229, 1e-05
          %v4246 = vadd.f32 %v4230, 1e-05
          %v4247 = vadd.f32 %v4231, 1e-05
          %v4248 = vrsqrt.pop %v4232
          %v4249 = vrsqrt.pop %v4233
          %v4250 = vrsqrt.pop %v4234
          %v4251 = vrsqrt.pop %v4235
          %v4252 = vrsqrt.pop %v4236
          %v4253 = vrsqrt.pop %v4237
          %v4254 = vrsqrt.pop %v4238
          %v4255 = vrsqrt.pop %v4239
          %v4256 = vrsqrt.pop %v4240
          %v4257 = vrsqrt.pop %v4241
          %v4258 = vrsqrt.pop %v4242
          %v4259 = vrsqrt.pop %v4243
          %v4260 = vrsqrt.pop %v4244
          %v4261 = vrsqrt.pop %v4245
          %v4262 = vrsqrt.pop %v4246
          %v4263 = vrsqrt.pop %v4247
          %v4264 = vmul.f32 %v4136, %v4248
          %v4265 = vmul.f32 %v4137, %v4249
          %v4266 = vmul.f32 %v4138, %v4250
          %v4267 = vmul.f32 %v4139, %v4251
          %v4268 = vmul.f32 %v4140, %v4252
          %v4269 = vmul.f32 %v4141, %v4253
          %v4270 = vmul.f32 %v4142, %v4254
          %v4271 = vmul.f32 %v4143, %v4255
          %v4272 = vmul.f32 %v4144, %v4256
          %v4273 = vmul.f32 %v4145, %v4257
          %v4274 = vmul.f32 %v4146, %v4258
          %v4275 = vmul.f32 %v4147, %v4259
          %v4276 = vmul.f32 %v4148, %v4260
          %v4277 = vmul.f32 %v4149, %v4261
          %v4278 = vmul.f32 %v4150, %v4262
          %v4279 = vmul.f32 %v4151, %v4263
          %v4281 = vlaneseq
          %v4282 = vshrl.u32 %v4281, 7
          %v4283 = vsub.s32 0, %v4282
          %v4284 = vrot.slane %v4068, %v4283
          %v4286 = vmul.f32 %v4264, %v4284
          %v4287 = vmul.f32 %v4265, %v4284
          %v4288 = vmul.f32 %v4266, %v4284
          %v4289 = vmul.f32 %v4267, %v4284
          %v4290 = vmul.f32 %v4268, %v4284
          %v4291 = vmul.f32 %v4269, %v4284
          %v4292 = vmul.f32 %v4270, %v4284
          %v4293 = vmul.f32 %v4271, %v4284
          %v4294 = vmul.f32 %v4272, %v4284
          %v4295 = vmul.f32 %v4273, %v4284
          %v4296 = vmul.f32 %v4274, %v4284
          %v4297 = vmul.f32 %v4275, %v4284
          %v4298 = vmul.f32 %v4276, %v4284
          %v4299 = vmul.f32 %v4277, %v4284
          %v4300 = vmul.f32 %v4278, %v4284
          %v4301 = vmul.f32 %v4279, %v4284
          %v4303 = vlaneseq
          %v4304 = vshrl.u32 %v4303, 7
          %v4305 = vsub.s32 0, %v4304
          %v4306 = vrot.slane %v4069, %v4305
          %v4308 = vadd.f32 %v4286, %v4306
          %v4309 = vadd.f32 %v4287, %v4306
          %v4310 = vadd.f32 %v4288, %v4306
          %v4311 = vadd.f32 %v4289, %v4306
          %v4312 = vadd.f32 %v4290, %v4306
          %v4313 = vadd.f32 %v4291, %v4306
          %v4314 = vadd.f32 %v4292, %v4306
          %v4315 = vadd.f32 %v4293, %v4306
          %v4316 = vadd.f32 %v4294, %v4306
          %v4317 = vadd.f32 %v4295, %v4306
          %v4318 = vadd.f32 %v4296, %v4306
          %v4319 = vadd.f32 %v4297, %v4306
          %v4320 = vadd.f32 %v4298, %v4306
          %v4321 = vadd.f32 %v4299, %v4306
          %v4322 = vadd.f32 %v4300, %v4306
          %v4323 = vadd.f32 %v4301, %v4306
          %v4324 = vld [vmem:[%s10] sm:$0xff]
          %v4325 = vld [vmem:[%s10 + $0x8] sm:$0xff]
          %v4326 = vpack.c.bf16 %v4309, %v4308
          %v4327 = vpack.c.bf16 %v4311, %v4310
          %v4328 = vpack.c.bf16 %v4313, %v4312
          %v4329 = vpack.c.bf16 %v4315, %v4314
          %v4330 = vpack.c.bf16 %v4317, %v4316
          %v4331 = vpack.c.bf16 %v4319, %v4318
          %v4332 = vpack.c.bf16 %v4321, %v4320
          %v4333 = vpack.c.bf16 %v4323, %v4322
          %v4334 = vunpack.c.l.bf16 %v4326
          %v4335 = vunpack.c.h.bf16 %v4326
          %v4336 = vunpack.c.l.bf16 %v4327
          %v4337 = vunpack.c.h.bf16 %v4327
          %v4338 = vunpack.c.l.bf16 %v4328
          %v4339 = vunpack.c.h.bf16 %v4328
          %v4340 = vunpack.c.l.bf16 %v4329
          %v4341 = vunpack.c.h.bf16 %v4329
          %v4342 = vunpack.c.l.bf16 %v4330
          %v4343 = vunpack.c.h.bf16 %v4330
          %v4344 = vunpack.c.l.bf16 %v4331
          %v4345 = vunpack.c.h.bf16 %v4331
          %v4346 = vunpack.c.l.bf16 %v4332
          %v4347 = vunpack.c.h.bf16 %v4332
          %v4348 = vunpack.c.l.bf16 %v4333
          %v4349 = vunpack.c.h.bf16 %v4333
          %v4350 = vsub.f32 %v4308, %v4334
          %v4351 = vsub.f32 %v4309, %v4335
          %v4352 = vsub.f32 %v4310, %v4336
          %v4353 = vsub.f32 %v4311, %v4337
          %v4354 = vsub.f32 %v4312, %v4338
          %v4355 = vsub.f32 %v4313, %v4339
          %v4356 = vsub.f32 %v4314, %v4340
          %v4357 = vsub.f32 %v4315, %v4341
          %v4358 = vsub.f32 %v4316, %v4342
          %v4359 = vsub.f32 %v4317, %v4343
          %v4360 = vsub.f32 %v4318, %v4344
          %v4361 = vsub.f32 %v4319, %v4345
          %v4362 = vsub.f32 %v4320, %v4346
          %v4363 = vsub.f32 %v4321, %v4347
          %v4364 = vsub.f32 %v4322, %v4348
          %v4365 = vsub.f32 %v4323, %v4349
          %v4366 = vpack.c.bf16 %v4351, %v4350
          %v4367 = vpack.c.bf16 %v4353, %v4352
          %v4368 = vpack.c.bf16 %v4355, %v4354
          %v4369 = vpack.c.bf16 %v4357, %v4356
          %v4370 = vpack.c.bf16 %v4359, %v4358
          %v4371 = vpack.c.bf16 %v4361, %v4360
          %v4372 = vpack.c.bf16 %v4363, %v4362
          %v4373 = vpack.c.bf16 %v4365, %v4364
          %v4374 = vpack.c.bf16 %v4325, %v4324
          %v4375 = vunpack.c.l.bf16 %v4374
          %v4376 = vunpack.c.h.bf16 %v4374
          %v4377 = vsub.f32 %v4324, %v4375
          %v4378 = vsub.f32 %v4325, %v4376
          %v4379 = vpack.c.bf16 %v4378, %v4377
          %v4381 = vsel %vm4070, %v4326, 0
          %v4384 = vsel %vm4070, %v4327, 0
          %v4387 = vsel %vm4070, %v4328, 0
          %v4390 = vsel %vm4070, %v4329, 0
          %v4393 = vsel %vm4070, %v4330, 0
          %v4396 = vsel %vm4070, %v4331, 0
          %v4399 = vsel %vm4070, %v4332, 0
          %v4402 = vsel %vm4070, %v4333, 0
          %4404 = vmatprep.subr.bf16.mxu0 0
          %4405 = vmatpush1.bf16.msra.mxu0 %v4379
          %4406 = vmatprep.subr.bf16.mxu0 0
          %4407 = vmatpush1.bf16.msra.mxu0 0
          %4408 = vmatprep.subr.bf16.mxu0 0
          %4409 = vmatpush1.bf16.msra.mxu0 0
          %4410 = vmatprep.subr.bf16.mxu0 0
          %4411 = vmatpush1.bf16.msra.mxu0 0
          %4412 = vmatprep.subr.bf16.mxu0 0
          %4413 = vmatpush1.bf16.msra.mxu0 0
          %4414 = vmatprep.subr.bf16.mxu0 0
          %4415 = vmatpush1.bf16.msra.mxu0 0
          %4416 = vmatprep.subr.bf16.mxu0 0
          %4417 = vmatpush1.bf16.msra.mxu0 0
          %4418 = vmatprep.subr.bf16.mxu0 0
          %4419 = vmatpush1.bf16.msra.mxu0 0
          %4420 = vmatprep.subr.bf16.mxu0 0
          %4421 = vmatpush1.bf16.msra.mxu0 0
          %4422 = vmatprep.subr.bf16.mxu0 0
          %4423 = vmatpush1.bf16.msra.mxu0 0
          %4424 = vmatprep.subr.bf16.mxu0 0
          %4425 = vmatpush1.bf16.msra.mxu0 0
          %4426 = vmatprep.subr.bf16.mxu0 0
          %4427 = vmatpush1.bf16.msra.mxu0 0
          %4428 = vmatprep.subr.bf16.mxu0 0
          %4429 = vmatpush1.bf16.msra.mxu0 0
          %4430 = vmatprep.subr.bf16.mxu0 0
          %4431 = vmatpush1.bf16.msra.mxu0 0
          %4432 = vmatprep.subr.bf16.mxu0 0
          %4433 = vmatpush1.bf16.msra.mxu0 0
          %4434 = vmatprep.subr.bf16.mxu0 0
          %4435 = vmatpush1.bf16.msra.mxu0 0
          %4436 = vmatprep.mubr.bf16.mxu0 0
          %4437 = vmatmul.mubr.bf16.gmra.mrb[0].mxu0 %v4381
          %v4438 = vpop.f32.mrb[0].mxu0
          %v4439 = vadd.f32 0.0, %v4438
          %v4440 = vpop.f32.mrb[0].mxu0
          %v4441 = vpop.f32.mrb[0].mxu0
          %v4442 = vadd.f32 0.0, %v4441
          %v4443 = vpop.f32.mrb[0].mxu0
          %4444 = vmatprep.mubr.bf16.mxu0 0
          %4445 = vmatmul.mubr.bf16.gmra.mrb[0].mxu0 %v4384
          %v4446 = vpop.f32.mrb[0].mxu0
          %v4447 = vadd.f32 0.0, %v4446
          %v4448 = vpop.f32.mrb[0].mxu0
          %v4449 = vpop.f32.mrb[0].mxu0
          %v4450 = vadd.f32 0.0, %v4449
          %v4451 = vpop.f32.mrb[0].mxu0
          %4452 = vmatprep.mubr.bf16.mxu0 0
          %4453 = vmatmul.mubr.bf16.gmra.mrb[0].mxu0 %v4387
          %v4454 = vpop.f32.mrb[0].mxu0
          %v4455 = vadd.f32 0.0, %v4454
          %v4456 = vpop.f32.mrb[0].mxu0
          %v4457 = vpop.f32.mrb[0].mxu0
          %v4458 = vadd.f32 0.0, %v4457
          %v4459 = vpop.f32.mrb[0].mxu0
          %4460 = vmatprep.mubr.bf16.mxu0 0
          %4461 = vmatmul.mubr.bf16.gmra.mrb[0].mxu0 %v4390
          %v4462 = vpop.f32.mrb[0].mxu0
          %v4463 = vadd.f32 0.0, %v4462
          %v4464 = vpop.f32.mrb[0].mxu0
          %v4465 = vpop.f32.mrb[0].mxu0
          %v4466 = vadd.f32 0.0, %v4465
          %v4467 = vpop.f32.mrb[0].mxu0
          %4468 = vmatprep.mubr.bf16.mxu0 0
          %4469 = vmatmul.mubr.bf16.gmra.mrb[0].mxu0 %v4393
          %v4470 = vpop.f32.mrb[0].mxu0
          %v4471 = vadd.f32 0.0, %v4470
          %v4472 = vpop.f32.mrb[0].mxu0
          %v4473 = vpop.f32.mrb[0].mxu0
          %v4474 = vadd.f32 0.0, %v4473
          %v4475 = vpop.f32.mrb[0].mxu0
          %4476 = vmatprep.mubr.bf16.mxu0 0
          %4477 = vmatmul.mubr.bf16.gmra.mrb[0].mxu0 %v4396
          %v4478 = vpop.f32.mrb[0].mxu0
          %v4479 = vadd.f32 0.0, %v4478
          %v4480 = vpop.f32.mrb[0].mxu0
          %v4481 = vpop.f32.mrb[0].mxu0
          %v4482 = vadd.f32 0.0, %v4481
          %v4483 = vpop.f32.mrb[0].mxu0
          %4484 = vmatprep.mubr.bf16.mxu0 0
          %4485 = vmatmul.mubr.bf16.gmra.mrb[0].mxu0 %v4399
          %v4486 = vpop.f32.mrb[0].mxu0
          %v4487 = vadd.f32 0.0, %v4486
          %v4488 = vpop.f32.mrb[0].mxu0
          %v4489 = vpop.f32.mrb[0].mxu0
          %v4490 = vadd.f32 0.0, %v4489
          %v4491 = vpop.f32.mrb[0].mxu0
          %4492 = vmatprep.mubr.bf16.mxu0 0
          %4493 = vmatmul.mubr.bf16.gmra.mrb[0].mxu0 %v4402
          %v4494 = vpop.f32.mrb[0].mxu0
          %v4495 = vadd.f32 0.0, %v4494
          %v4496 = vpop.f32.mrb[0].mxu0
          %v4497 = vpop.f32.mrb[0].mxu0
          %v4498 = vadd.f32 0.0, %v4497
          %v4499 = vpop.f32.mrb[0].mxu0
          %4500 = vdwg.mxu0
          %4501 = vmatprep.subr.bf16.mxu0 0
          %4502 = vmatpush1.bf16.msra.mxu0 %v4374
          %4503 = vmatprep.subr.bf16.mxu0 0
          %4504 = vmatpush1.bf16.msra.mxu0 0
          %4505 = vmatprep.subr.bf16.mxu0 0
          %4506 = vmatpush1.bf16.msra.mxu0 0
          %4507 = vmatprep.subr.bf16.mxu0 0
          %4508 = vmatpush1.bf16.msra.mxu0 0
          %4509 = vmatprep.subr.bf16.mxu0 0
          %4510 = vmatpush1.bf16.msra.mxu0 0
          %4511 = vmatprep.subr.bf16.mxu0 0
          %4512 = vmatpush1.bf16.msra.mxu0 0
          %4513 = vmatprep.subr.bf16.mxu0 0
          %4514 = vmatpush1.bf16.msra.mxu0 0
          %4515 = vmatprep.subr.bf16.mxu0 0
          %4516 = vmatpush1.bf16.msra.mxu0 0
          %4517 = vmatprep.subr.bf16.mxu0 0
          %4518 = vmatpush1.bf16.msra.mxu0 0
          %4519 = vmatprep.subr.bf16.mxu0 0
          %4520 = vmatpush1.bf16.msra.mxu0 0
          %4521 = vmatprep.subr.bf16.mxu0 0
          %4522 = vmatpush1.bf16.msra.mxu0 0
          %4523 = vmatprep.subr.bf16.mxu0 0
          %4524 = vmatpush1.bf16.msra.mxu0 0
          %4525 = vmatprep.subr.bf16.mxu0 0
          %4526 = vmatpush1.bf16.msra.mxu0 0
          %4527 = vmatprep.subr.bf16.mxu0 0
          %4528 = vmatpush1.bf16.msra.mxu0 0
          %4529 = vmatprep.subr.bf16.mxu0 0
          %4530 = vmatpush1.bf16.msra.mxu0 0
          %4531 = vmatprep.subr.bf16.mxu0 0
          %4532 = vmatpush1.bf16.msra.mxu0 0
          %4533 = vmatprep.mubr.bf16.mxu0 0
          %4534 = vmatmul.mubr.bf16.gmra.mrb[0].mxu0 %v4381
          %v4535 = vpop.f32.mrb[0].mxu0
          %v4536 = vadd.f32 %v4439, %v4535
          %v4537 = vpop.f32.mrb[0].mxu0
          %v4538 = vpop.f32.mrb[0].mxu0
          %v4539 = vadd.f32 %v4442, %v4538
          %v4540 = vpop.f32.mrb[0].mxu0
          %4541 = vmatprep.mubr.bf16.mxu0 0
          %4542 = vmatmul.mubr.bf16.gmra.mrb[0].mxu0 %v4384
          %v4543 = vpop.f32.mrb[0].mxu0
          %v4544 = vadd.f32 %v4447, %v4543
          %v4545 = vpop.f32.mrb[0].mxu0
          %v4546 = vpop.f32.mrb[0].mxu0
          %v4547 = vadd.f32 %v4450, %v4546
          %v4548 = vpop.f32.mrb[0].mxu0
          %4549 = vmatprep.mubr.bf16.mxu0 0
          %4550 = vmatmul.mubr.bf16.gmra.mrb[0].mxu0 %v4387
          %v4551 = vpop.f32.mrb[0].mxu0
          %v4552 = vadd.f32 %v4455, %v4551
          %v4553 = vpop.f32.mrb[0].mxu0
          %v4554 = vpop.f32.mrb[0].mxu0
          %v4555 = vadd.f32 %v4458, %v4554
          %v4556 = vpop.f32.mrb[0].mxu0
          %4557 = vmatprep.mubr.bf16.mxu0 0
          %4558 = vmatmul.mubr.bf16.gmra.mrb[0].mxu0 %v4390
          %v4559 = vpop.f32.mrb[0].mxu0
          %v4560 = vadd.f32 %v4463, %v4559
          %v4561 = vpop.f32.mrb[0].mxu0
          %v4562 = vpop.f32.mrb[0].mxu0
          %v4563 = vadd.f32 %v4466, %v4562
          %v4564 = vpop.f32.mrb[0].mxu0
          %4565 = vmatprep.mubr.bf16.mxu0 0
          %4566 = vmatmul.mubr.bf16.gmra.mrb[0].mxu0 %v4393
          %v4567 = vpop.f32.mrb[0].mxu0
          %v4568 = vadd.f32 %v4471, %v4567
          %v4569 = vpop.f32.mrb[0].mxu0
          %v4570 = vpop.f32.mrb[0].mxu0
          %v4571 = vadd.f32 %v4474, %v4570
          %v4572 = vpop.f32.mrb[0].mxu0
          %4573 = vmatprep.mubr.bf16.mxu0 0
          %4574 = vmatmul.mubr.bf16.gmra.mrb[0].mxu0 %v4396
          %v4575 = vpop.f32.mrb[0].mxu0
          %v4576 = vadd.f32 %v4479, %v4575
          %v4577 = vpop.f32.mrb[0].mxu0
          %v4578 = vpop.f32.mrb[0].mxu0
          %v4579 = vadd.f32 %v4482, %v4578
          %v4580 = vpop.f32.mrb[0].mxu0
          %4581 = vmatprep.mubr.bf16.mxu0 0
          %4582 = vmatmul.mubr.bf16.gmra.mrb[0].mxu0 %v4399
          %v4583 = vpop.f32.mrb[0].mxu0
          %v4584 = vadd.f32 %v4487, %v4583
          %v4585 = vpop.f32.mrb[0].mxu0
          %v4586 = vpop.f32.mrb[0].mxu0
          %v4587 = vadd.f32 %v4490, %v4586
          %v4588 = vpop.f32.mrb[0].mxu0
          %4589 = vmatprep.mubr.bf16.mxu0 0
          %4590 = vmatmul.mubr.bf16.gmra.mrb[0].mxu0 %v4402
          %v4591 = vpop.f32.mrb[0].mxu0
          %v4592 = vadd.f32 %v4495, %v4591
          %v4593 = vpop.f32.mrb[0].mxu0
          %v4594 = vpop.f32.mrb[0].mxu0
          %v4595 = vadd.f32 %v4498, %v4594
          %v4596 = vpop.f32.mrb[0].mxu0
          %4597 = vdwg.mxu0
          %v4599 = vsel %vm4070, %v4366, 0
          %v4602 = vsel %vm4070, %v4367, 0
          %v4605 = vsel %vm4070, %v4368, 0
          %v4608 = vsel %vm4070, %v4369, 0
          %v4611 = vsel %vm4070, %v4370, 0
          %v4614 = vsel %vm4070, %v4371, 0
          %v4617 = vsel %vm4070, %v4372, 0
          %v4620 = vsel %vm4070, %v4373, 0
          %4622 = vmatprep.subr.bf16.mxu0 0
          %4623 = vmatpush1.bf16.msra.mxu0 %v4374
          %4624 = vmatprep.subr.bf16.mxu0 0
          %4625 = vmatpush1.bf16.msra.mxu0 0
          %4626 = vmatprep.subr.bf16.mxu0 0
          %4627 = vmatpush1.bf16.msra.mxu0 0
          %4628 = vmatprep.subr.bf16.mxu0 0
          %4629 = vmatpush1.bf16.msra.mxu0 0
          %4630 = vmatprep.subr.bf16.mxu0 0
          %4631 = vmatpush1.bf16.msra.mxu0 0
          %4632 = vmatprep.subr.bf16.mxu0 0
          %4633 = vmatpush1.bf16.msra.mxu0 0
          %4634 = vmatprep.subr.bf16.mxu0 0
          %4635 = vmatpush1.bf16.msra.mxu0 0
          %4636 = vmatprep.subr.bf16.mxu0 0
          %4637 = vmatpush1.bf16.msra.mxu0 0
          %4638 = vmatprep.subr.bf16.mxu0 0
          %4639 = vmatpush1.bf16.msra.mxu0 0
          %4640 = vmatprep.subr.bf16.mxu0 0
          %4641 = vmatpush1.bf16.msra.mxu0 0
          %4642 = vmatprep.subr.bf16.mxu0 0
          %4643 = vmatpush1.bf16.msra.mxu0 0
          %4644 = vmatprep.subr.bf16.mxu0 0
          %4645 = vmatpush1.bf16.msra.mxu0 0
          %4646 = vmatprep.subr.bf16.mxu0 0
          %4647 = vmatpush1.bf16.msra.mxu0 0
          %4648 = vmatprep.subr.bf16.mxu0 0
          %4649 = vmatpush1.bf16.msra.mxu0 0
          %4650 = vmatprep.subr.bf16.mxu0 0
          %4651 = vmatpush1.bf16.msra.mxu0 0
          %4652 = vmatprep.subr.bf16.mxu0 0
          %4653 = vmatpush1.bf16.msra.mxu0 0
          %4654 = vmatprep.mubr.bf16.mxu0 0
          %4655 = vmatmul.mubr.bf16.gmra.mrb[0].mxu0 %v4599
          %v4656 = vpop.f32.mrb[0].mxu0
          %v4657 = vadd.f32 0.0, %v4656
          %v4658 = vpop.f32.mrb[0].mxu0
          %v4659 = vpop.f32.mrb[0].mxu0
          %v4660 = vadd.f32 0.0, %v4659
          %v4661 = vpop.f32.mrb[0].mxu0
          %4662 = vmatprep.mubr.bf16.mxu0 0
          %4663 = vmatmul.mubr.bf16.gmra.mrb[0].mxu0 %v4602
          %v4664 = vpop.f32.mrb[0].mxu0
          %v4665 = vadd.f32 0.0, %v4664
          %v4666 = vpop.f32.mrb[0].mxu0
          %v4667 = vpop.f32.mrb[0].mxu0
          %v4668 = vadd.f32 0.0, %v4667
          %v4669 = vpop.f32.mrb[0].mxu0
          %4670 = vmatprep.mubr.bf16.mxu0 0
          %4671 = vmatmul.mubr.bf16.gmra.mrb[0].mxu0 %v4605
          %v4672 = vpop.f32.mrb[0].mxu0
          %v4673 = vadd.f32 0.0, %v4672
          %v4674 = vpop.f32.mrb[0].mxu0
          %v4675 = vpop.f32.mrb[0].mxu0
          %v4676 = vadd.f32 0.0, %v4675
          %v4677 = vpop.f32.mrb[0].mxu0
          %4678 = vmatprep.mubr.bf16.mxu0 0
          %4679 = vmatmul.mubr.bf16.gmra.mrb[0].mxu0 %v4608
          %v4680 = vpop.f32.mrb[0].mxu0
          %v4681 = vadd.f32 0.0, %v4680
          %v4682 = vpop.f32.mrb[0].mxu0
          %v4683 = vpop.f32.mrb[0].mxu0
          %v4684 = vadd.f32 0.0, %v4683
          %v4685 = vpop.f32.mrb[0].mxu0
          %4686 = vmatprep.mubr.bf16.mxu0 0
          %4687 = vmatmul.mubr.bf16.gmra.mrb[0].mxu0 %v4611
          %v4688 = vpop.f32.mrb[0].mxu0
          %v4689 = vadd.f32 0.0, %v4688
          %v4690 = vpop.f32.mrb[0].mxu0
          %v4691 = vpop.f32.mrb[0].mxu0
          %v4692 = vadd.f32 0.0, %v4691
          %v4693 = vpop.f32.mrb[0].mxu0
          %4694 = vmatprep.mubr.bf16.mxu0 0
          %4695 = vmatmul.mubr.bf16.gmra.mrb[0].mxu0 %v4614
          %v4696 = vpop.f32.mrb[0].mxu0
          %v4697 = vadd.f32 0.0, %v4696
          %v4698 = vpop.f32.mrb[0].mxu0
          %v4699 = vpop.f32.mrb[0].mxu0
          %v4700 = vadd.f32 0.0, %v4699
          %v4701 = vpop.f32.mrb[0].mxu0
          %4702 = vmatprep.mubr.bf16.mxu0 0
          %4703 = vmatmul.mubr.bf16.gmra.mrb[0].mxu0 %v4617
          %v4704 = vpop.f32.mrb[0].mxu0
          %v4705 = vadd.f32 0.0, %v4704
          %v4706 = vpop.f32.mrb[0].mxu0
          %v4707 = vpop.f32.mrb[0].mxu0
          %v4708 = vadd.f32 0.0, %v4707
          %v4709 = vpop.f32.mrb[0].mxu0
          %4710 = vmatprep.mubr.bf16.mxu0 0
          %4711 = vmatmul.mubr.bf16.gmra.mrb[0].mxu0 %v4620
          %v4712 = vpop.f32.mrb[0].mxu0
          %v4713 = vadd.f32 0.0, %v4712
          %v4714 = vpop.f32.mrb[0].mxu0
          %v4715 = vpop.f32.mrb[0].mxu0
          %v4716 = vadd.f32 0.0, %v4715
          %v4717 = vpop.f32.mrb[0].mxu0
          %4718 = vdwg.mxu0
          %v4719 = vadd.f32 %v4536, %v4657
          %v4720 = vadd.f32 %v4539, %v4660
          %v4721 = vadd.f32 %v4544, %v4665
          %v4722 = vadd.f32 %v4547, %v4668
          %v4723 = vadd.f32 %v4552, %v4673
          %v4724 = vadd.f32 %v4555, %v4676
          %v4725 = vadd.f32 %v4560, %v4681
          %v4726 = vadd.f32 %v4563, %v4684
          %v4727 = vadd.f32 %v4568, %v4689
          %v4728 = vadd.f32 %v4571, %v4692
          %v4729 = vadd.f32 %v4576, %v4697
          %v4730 = vadd.f32 %v4579, %v4700
          %v4731 = vadd.f32 %v4584, %v4705
          %v4732 = vadd.f32 %v4587, %v4708
          %v4733 = vadd.f32 %v4592, %v4713
          %v4734 = vadd.f32 %v4595, %v4716
          %v4735 = vld [vmem:[%s11] sm:$0x1]
          %v4737 = vlaneseq
          %v4738 = vshrl.u32 %v4737, 7
          %v4739 = vsub.s32 0, %v4738
          %v4740 = vrot.slane %v4735, %v4739
          %v4742 = vadd.f32 %v4719, %v4740
          %v4743 = vadd.f32 %v4720, %v4740
          %v4744 = vadd.f32 %v4721, %v4740
          %v4745 = vadd.f32 %v4722, %v4740
          %v4746 = vadd.f32 %v4723, %v4740
          %v4747 = vadd.f32 %v4724, %v4740
          %v4748 = vadd.f32 %v4725, %v4740
          %v4749 = vadd.f32 %v4726, %v4740
          %v4750 = vadd.f32 %v4727, %v4740
          %v4751 = vadd.f32 %v4728, %v4740
          %v4752 = vadd.f32 %v4729, %v4740
          %v4753 = vadd.f32 %v4730, %v4740
          %v4754 = vadd.f32 %v4731, %v4740
          %v4755 = vadd.f32 %v4732, %v4740
          %v4756 = vadd.f32 %v4733, %v4740
          %v4757 = vadd.f32 %v4734, %v4740
          %v4758 = vld [vmem:[#allocation4] sm:$0xff]
          %v4759 = vld [vmem:[#allocation4 + $0x8] sm:$0xff]
          %v4760 = vld [vmem:[#allocation4 + $0x10] sm:$0xff]
          %v4761 = vld [vmem:[#allocation4 + $0x18] sm:$0xff]
          %v4762 = vld [vmem:[#allocation4 + $0x20] sm:$0xff]
          %v4763 = vld [vmem:[#allocation4 + $0x28] sm:$0xff]
          %v4764 = vld [vmem:[#allocation4 + $0x30] sm:$0xff]
          %v4765 = vld [vmem:[#allocation4 + $0x38] sm:$0xff]
          %v4766 = vld [vmem:[#allocation4 + $0x40] sm:$0xff]
          %v4767 = vld [vmem:[#allocation4 + $0x48] sm:$0xff]
          %v4768 = vld [vmem:[#allocation4 + $0x50] sm:$0xff]
          %v4769 = vld [vmem:[#allocation4 + $0x58] sm:$0xff]
          %v4770 = vld [vmem:[#allocation4 + $0x60] sm:$0xff]
          %v4771 = vld [vmem:[#allocation4 + $0x68] sm:$0xff]
          %v4772 = vld [vmem:[#allocation4 + $0x70] sm:$0xff]
          %v4773 = vld [vmem:[#allocation4 + $0x78] sm:$0xff]
          %v4774 = vld [vmem:[%s12] sm:$0xff]
          %v4775 = vld [vmem:[%s12 + $0x8] sm:$0xff]
          %v4776 = vpack.c.bf16 %v4759, %v4758
          %v4777 = vpack.c.bf16 %v4761, %v4760
          %v4778 = vpack.c.bf16 %v4763, %v4762
          %v4779 = vpack.c.bf16 %v4765, %v4764
          %v4780 = vpack.c.bf16 %v4767, %v4766
          %v4781 = vpack.c.bf16 %v4769, %v4768
          %v4782 = vpack.c.bf16 %v4771, %v4770
          %v4783 = vpack.c.bf16 %v4773, %v4772
          %v4784 = vunpack.c.l.bf16 %v4776
          %v4785 = vunpack.c.h.bf16 %v4776
          %v4786 = vunpack.c.l.bf16 %v4777
          %v4787 = vunpack.c.h.bf16 %v4777
          %v4788 = vunpack.c.l.bf16 %v4778
          %v4789 = vunpack.c.h.bf16 %v4778
          %v4790 = vunpack.c.l.bf16 %v4779
          %v4791 = vunpack.c.h.bf16 %v4779
          %v4792 = vunpack.c.l.bf16 %v4780
          %v4793 = vunpack.c.h.bf16 %v4780
          %v4794 = vunpack.c.l.bf16 %v4781
          %v4795 = vunpack.c.h.bf16 %v4781
          %v4796 = vunpack.c.l.bf16 %v4782
          %v4797 = vunpack.c.h.bf16 %v4782
          %v4798 = vunpack.c.l.bf16 %v4783
          %v4799 = vunpack.c.h.bf16 %v4783
          %v4800 = vsub.f32 %v4758, %v4784
          %v4801 = vsub.f32 %v4759, %v4785
          %v4802 = vsub.f32 %v4760, %v4786
          %v4803 = vsub.f32 %v4761, %v4787
          %v4804 = vsub.f32 %v4762, %v4788
          %v4805 = vsub.f32 %v4763, %v4789
          %v4806 = vsub.f32 %v4764, %v4790
          %v4807 = vsub.f32 %v4765, %v4791
          %v4808 = vsub.f32 %v4766, %v4792
          %v4809 = vsub.f32 %v4767, %v4793
          %v4810 = vsub.f32 %v4768, %v4794
          %v4811 = vsub.f32 %v4769, %v4795
          %v4812 = vsub.f32 %v4770, %v4796
          %v4813 = vsub.f32 %v4771, %v4797
          %v4814 = vsub.f32 %v4772, %v4798
          %v4815 = vsub.f32 %v4773, %v4799
          %v4816 = vpack.c.bf16 %v4801, %v4800
          %v4817 = vpack.c.bf16 %v4803, %v4802
          %v4818 = vpack.c.bf16 %v4805, %v4804
          %v4819 = vpack.c.bf16 %v4807, %v4806
          %v4820 = vpack.c.bf16 %v4809, %v4808
          %v4821 = vpack.c.bf16 %v4811, %v4810
          %v4822 = vpack.c.bf16 %v4813, %v4812
          %v4823 = vpack.c.bf16 %v4815, %v4814
          %v4824 = vpack.c.bf16 %v4775, %v4774
          %v4825 = vunpack.c.l.bf16 %v4824
          %v4826 = vunpack.c.h.bf16 %v4824
          %v4827 = vsub.f32 %v4774, %v4825
          %v4828 = vsub.f32 %v4775, %v4826
          %v4829 = vpack.c.bf16 %v4828, %v4827
          %v4831 = vsel %vm4070, %v4776, 0
          %v4834 = vsel %vm4070, %v4777, 0
          %v4837 = vsel %vm4070, %v4778, 0
          %v4840 = vsel %vm4070, %v4779, 0
          %v4843 = vsel %vm4070, %v4780, 0
          %v4846 = vsel %vm4070, %v4781, 0
          %v4849 = vsel %vm4070, %v4782, 0
          %v4852 = vsel %vm4070, %v4783, 0
          %4854 = vmatprep.subr.bf16.mxu0 0
          %4855 = vmatpush1.bf16.msra.mxu0 %v4829
          %4856 = vmatprep.subr.bf16.mxu0 0
          %4857 = vmatpush1.bf16.msra.mxu0 0
          %4858 = vmatprep.subr.bf16.mxu0 0
          %4859 = vmatpush1.bf16.msra.mxu0 0
          %4860 = vmatprep.subr.bf16.mxu0 0
          %4861 = vmatpush1.bf16.msra.mxu0 0
          %4862 = vmatprep.subr.bf16.mxu0 0
          %4863 = vmatpush1.bf16.msra.mxu0 0
          %4864 = vmatprep.subr.bf16.mxu0 0
          %4865 = vmatpush1.bf16.msra.mxu0 0
          %4866 = vmatprep.subr.bf16.mxu0 0
          %4867 = vmatpush1.bf16.msra.mxu0 0
          %4868 = vmatprep.subr.bf16.mxu0 0
          %4869 = vmatpush1.bf16.msra.mxu0 0
          %4870 = vmatprep.subr.bf16.mxu0 0
          %4871 = vmatpush1.bf16.msra.mxu0 0
          %4872 = vmatprep.subr.bf16.mxu0 0
          %4873 = vmatpush1.bf16.msra.mxu0 0
          %4874 = vmatprep.subr.bf16.mxu0 0
          %4875 = vmatpush1.bf16.msra.mxu0 0
          %4876 = vmatprep.subr.bf16.mxu0 0
          %4877 = vmatpush1.bf16.msra.mxu0 0
          %4878 = vmatprep.subr.bf16.mxu0 0
          %4879 = vmatpush1.bf16.msra.mxu0 0
          %4880 = vmatprep.subr.bf16.mxu0 0
          %4881 = vmatpush1.bf16.msra.mxu0 0
          %4882 = vmatprep.subr.bf16.mxu0 0
          %4883 = vmatpush1.bf16.msra.mxu0 0
          %4884 = vmatprep.subr.bf16.mxu0 0
          %4885 = vmatpush1.bf16.msra.mxu0 0
          %4886 = vmatprep.mubr.bf16.mxu0 0
          %4887 = vmatmul.mubr.bf16.gmra.mrb[0].mxu0 %v4831
          %v4888 = vpop.f32.mrb[0].mxu0
          %v4889 = vadd.f32 0.0, %v4888
          %v4890 = vpop.f32.mrb[0].mxu0
          %v4891 = vpop.f32.mrb[0].mxu0
          %v4892 = vadd.f32 0.0, %v4891
          %v4893 = vpop.f32.mrb[0].mxu0
          %4894 = vmatprep.mubr.bf16.mxu0 0
          %4895 = vmatmul.mubr.bf16.gmra.mrb[0].mxu0 %v4834
          %v4896 = vpop.f32.mrb[0].mxu0
          %v4897 = vadd.f32 0.0, %v4896
          %v4898 = vpop.f32.mrb[0].mxu0
          %v4899 = vpop.f32.mrb[0].mxu0
          %v4900 = vadd.f32 0.0, %v4899
          %v4901 = vpop.f32.mrb[0].mxu0
          %4902 = vmatprep.mubr.bf16.mxu0 0
          %4903 = vmatmul.mubr.bf16.gmra.mrb[0].mxu0 %v4837
          %v4904 = vpop.f32.mrb[0].mxu0
          %v4905 = vadd.f32 0.0, %v4904
          %v4906 = vpop.f32.mrb[0].mxu0
          %v4907 = vpop.f32.mrb[0].mxu0
          %v4908 = vadd.f32 0.0, %v4907
          %v4909 = vpop.f32.mrb[0].mxu0
          %4910 = vmatprep.mubr.bf16.mxu0 0
          %4911 = vmatmul.mubr.bf16.gmra.mrb[0].mxu0 %v4840
          %v4912 = vpop.f32.mrb[0].mxu0
          %v4913 = vadd.f32 0.0, %v4912
          %v4914 = vpop.f32.mrb[0].mxu0
          %v4915 = vpop.f32.mrb[0].mxu0
          %v4916 = vadd.f32 0.0, %v4915
          %v4917 = vpop.f32.mrb[0].mxu0
          %4918 = vmatprep.mubr.bf16.mxu0 0
          %4919 = vmatmul.mubr.bf16.gmra.mrb[0].mxu0 %v4843
          %v4920 = vpop.f32.mrb[0].mxu0
          %v4921 = vadd.f32 0.0, %v4920
          %v4922 = vpop.f32.mrb[0].mxu0
          %v4923 = vpop.f32.mrb[0].mxu0
          %v4924 = vadd.f32 0.0, %v4923
          %v4925 = vpop.f32.mrb[0].mxu0
          %4926 = vmatprep.mubr.bf16.mxu0 0
          %4927 = vmatmul.mubr.bf16.gmra.mrb[0].mxu0 %v4846
          %v4928 = vpop.f32.mrb[0].mxu0
          %v4929 = vadd.f32 0.0, %v4928
          %v4930 = vpop.f32.mrb[0].mxu0
          %v4931 = vpop.f32.mrb[0].mxu0
          %v4932 = vadd.f32 0.0, %v4931
          %v4933 = vpop.f32.mrb[0].mxu0
          %4934 = vmatprep.mubr.bf16.mxu0 0
          %4935 = vmatmul.mubr.bf16.gmra.mrb[0].mxu0 %v4849
          %v4936 = vpop.f32.mrb[0].mxu0
          %v4937 = vadd.f32 0.0, %v4936
          %v4938 = vpop.f32.mrb[0].mxu0
          %v4939 = vpop.f32.mrb[0].mxu0
          %v4940 = vadd.f32 0.0, %v4939
          %v4941 = vpop.f32.mrb[0].mxu0
          %4942 = vmatprep.mubr.bf16.mxu0 0
          %4943 = vmatmul.mubr.bf16.gmra.mrb[0].mxu0 %v4852
          %v4944 = vpop.f32.mrb[0].mxu0
          %v4945 = vadd.f32 0.0, %v4944
          %v4946 = vpop.f32.mrb[0].mxu0
          %v4947 = vpop.f32.mrb[0].mxu0
          %v4948 = vadd.f32 0.0, %v4947
          %v4949 = vpop.f32.mrb[0].mxu0
          %4950 = vdwg.mxu0
          %4951 = vmatprep.subr.bf16.mxu0 0
          %4952 = vmatpush1.bf16.msra.mxu0 %v4824
          %4953 = vmatprep.subr.bf16.mxu0 0
          %4954 = vmatpush1.bf16.msra.mxu0 0
          %4955 = vmatprep.subr.bf16.mxu0 0
          %4956 = vmatpush1.bf16.msra.mxu0 0
          %4957 = vmatprep.subr.bf16.mxu0 0
          %4958 = vmatpush1.bf16.msra.mxu0 0
          %4959 = vmatprep.subr.bf16.mxu0 0
          %4960 = vmatpush1.bf16.msra.mxu0 0
          %4961 = vmatprep.subr.bf16.mxu0 0
          %4962 = vmatpush1.bf16.msra.mxu0 0
          %4963 = vmatprep.subr.bf16.mxu0 0
          %4964 = vmatpush1.bf16.msra.mxu0 0
          %4965 = vmatprep.subr.bf16.mxu0 0
          %4966 = vmatpush1.bf16.msra.mxu0 0
          %4967 = vmatprep.subr.bf16.mxu0 0
          %4968 = vmatpush1.bf16.msra.mxu0 0
          %4969 = vmatprep.subr.bf16.mxu0 0
          %4970 = vmatpush1.bf16.msra.mxu0 0
          %4971 = vmatprep.subr.bf16.mxu0 0
          %4972 = vmatpush1.bf16.msra.mxu0 0
          %4973 = vmatprep.subr.bf16.mxu0 0
          %4974 = vmatpush1.bf16.msra.mxu0 0
          %4975 = vmatprep.subr.bf16.mxu0 0
          %4976 = vmatpush1.bf16.msra.mxu0 0
          %4977 = vmatprep.subr.bf16.mxu0 0
          %4978 = vmatpush1.bf16.msra.mxu0 0
          %4979 = vmatprep.subr.bf16.mxu0 0
          %4980 = vmatpush1.bf16.msra.mxu0 0
          %4981 = vmatprep.subr.bf16.mxu0 0
          %4982 = vmatpush1.bf16.msra.mxu0 0
          %4983 = vmatprep.mubr.bf16.mxu0 0
          %4984 = vmatmul.mubr.bf16.gmra.mrb[0].mxu0 %v4831
          %v4985 = vpop.f32.mrb[0].mxu0
          %v4986 = vadd.f32 %v4889, %v4985
          %v4987 = vpop.f32.mrb[0].mxu0
          %v4988 = vpop.f32.mrb[0].mxu0
          %v4989 = vadd.f32 %v4892, %v4988
          %v4990 = vpop.f32.mrb[0].mxu0
          %4991 = vmatprep.mubr.bf16.mxu0 0
          %4992 = vmatmul.mubr.bf16.gmra.mrb[0].mxu0 %v4834
          %v4993 = vpop.f32.mrb[0].mxu0
          %v4994 = vadd.f32 %v4897, %v4993
          %v4995 = vpop.f32.mrb[0].mxu0
          %v4996 = vpop.f32.mrb[0].mxu0
          %v4997 = vadd.f32 %v4900, %v4996
          %v4998 = vpop.f32.mrb[0].mxu0
          %4999 = vmatprep.mubr.bf16.mxu0 0
          %5000 = vmatmul.mubr.bf16.gmra.mrb[0].mxu0 %v4837
          %v5001 = vpop.f32.mrb[0].mxu0
          %v5002 = vadd.f32 %v4905, %v5001
          %v5003 = vpop.f32.mrb[0].mxu0
          %v5004 = vpop.f32.mrb[0].mxu0
          %v5005 = vadd.f32 %v4908, %v5004
          %v5006 = vpop.f32.mrb[0].mxu0
          %5007 = vmatprep.mubr.bf16.mxu0 0
          %5008 = vmatmul.mubr.bf16.gmra.mrb[0].mxu0 %v4840
          %v5009 = vpop.f32.mrb[0].mxu0
          %v5010 = vadd.f32 %v4913, %v5009
          %v5011 = vpop.f32.mrb[0].mxu0
          %v5012 = vpop.f32.mrb[0].mxu0
          %v5013 = vadd.f32 %v4916, %v5012
          %v5014 = vpop.f32.mrb[0].mxu0
          %5015 = vmatprep.mubr.bf16.mxu0 0
          %5016 = vmatmul.mubr.bf16.gmra.mrb[0].mxu0 %v4843
          %v5017 = vpop.f32.mrb[0].mxu0
          %v5018 = vadd.f32 %v4921, %v5017
          %v5019 = vpop.f32.mrb[0].mxu0
          %v5020 = vpop.f32.mrb[0].mxu0
          %v5021 = vadd.f32 %v4924, %v5020
          %v5022 = vpop.f32.mrb[0].mxu0
          %5023 = vmatprep.mubr.bf16.mxu0 0
          %5024 = vmatmul.mubr.bf16.gmra.mrb[0].mxu0 %v4846
          %v5025 = vpop.f32.mrb[0].mxu0
          %v5026 = vadd.f32 %v4929, %v5025
          %v5027 = vpop.f32.mrb[0].mxu0
          %v5028 = vpop.f32.mrb[0].mxu0
          %v5029 = vadd.f32 %v4932, %v5028
          %v5030 = vpop.f32.mrb[0].mxu0
          %5031 = vmatprep.mubr.bf16.mxu0 0
          %5032 = vmatmul.mubr.bf16.gmra.mrb[0].mxu0 %v4849
          %v5033 = vpop.f32.mrb[0].mxu0
          %v5034 = vadd.f32 %v4937, %v5033
          %v5035 = vpop.f32.mrb[0].mxu0
          %v5036 = vpop.f32.mrb[0].mxu0
          %v5037 = vadd.f32 %v4940, %v5036
          %v5038 = vpop.f32.mrb[0].mxu0
          %5039 = vmatprep.mubr.bf16.mxu0 0
          %5040 = vmatmul.mubr.bf16.gmra.mrb[0].mxu0 %v4852
          %v5041 = vpop.f32.mrb[0].mxu0
          %v5042 = vadd.f32 %v4945, %v5041
          %v5043 = vpop.f32.mrb[0].mxu0
          %v5044 = vpop.f32.mrb[0].mxu0
          %v5045 = vadd.f32 %v4948, %v5044
          %v5046 = vpop.f32.mrb[0].mxu0
          %5047 = vdwg.mxu0
          %v5049 = vsel %vm4070, %v4816, 0
          %v5052 = vsel %vm4070, %v4817, 0
          %v5055 = vsel %vm4070, %v4818, 0
          %v5058 = vsel %vm4070, %v4819, 0
          %v5061 = vsel %vm4070, %v4820, 0
          %v5064 = vsel %vm4070, %v4821, 0
          %v5067 = vsel %vm4070, %v4822, 0
          %v5070 = vsel %vm4070, %v4823, 0
          %5072 = vmatprep.subr.bf16.mxu0 0
          %5073 = vmatpush1.bf16.msra.mxu0 %v4824
          %5074 = vmatprep.subr.bf16.mxu0 0
          %5075 = vmatpush1.bf16.msra.mxu0 0
          %5076 = vmatprep.subr.bf16.mxu0 0
          %5077 = vmatpush1.bf16.msra.mxu0 0
          %5078 = vmatprep.subr.bf16.mxu0 0
          %5079 = vmatpush1.bf16.msra.mxu0 0
          %5080 = vmatprep.subr.bf16.mxu0 0
          %5081 = vmatpush1.bf16.msra.mxu0 0
          %5082 = vmatprep.subr.bf16.mxu0 0
          %5083 = vmatpush1.bf16.msra.mxu0 0
          %5084 = vmatprep.subr.bf16.mxu0 0
          %5085 = vmatpush1.bf16.msra.mxu0 0
          %5086 = vmatprep.subr.bf16.mxu0 0
          %5087 = vmatpush1.bf16.msra.mxu0 0
          %5088 = vmatprep.subr.bf16.mxu0 0
          %5089 = vmatpush1.bf16.msra.mxu0 0
          %5090 = vmatprep.subr.bf16.mxu0 0
          %5091 = vmatpush1.bf16.msra.mxu0 0
          %5092 = vmatprep.subr.bf16.mxu0 0
          %5093 = vmatpush1.bf16.msra.mxu0 0
          %5094 = vmatprep.subr.bf16.mxu0 0
          %5095 = vmatpush1.bf16.msra.mxu0 0
          %5096 = vmatprep.subr.bf16.mxu0 0
          %5097 = vmatpush1.bf16.msra.mxu0 0
          %5098 = vmatprep.subr.bf16.mxu0 0
          %5099 = vmatpush1.bf16.msra.mxu0 0
          %5100 = vmatprep.subr.bf16.mxu0 0
          %5101 = vmatpush1.bf16.msra.mxu0 0
          %5102 = vmatprep.subr.bf16.mxu0 0
          %5103 = vmatpush1.bf16.msra.mxu0 0
          %5104 = vmatprep.mubr.bf16.mxu0 0
          %5105 = vmatmul.mubr.bf16.gmra.mrb[0].mxu0 %v5049
          %v5106 = vpop.f32.mrb[0].mxu0
          %v5107 = vadd.f32 0.0, %v5106
          %v5108 = vpop.f32.mrb[0].mxu0
          %v5109 = vpop.f32.mrb[0].mxu0
          %v5110 = vadd.f32 0.0, %v5109
          %v5111 = vpop.f32.mrb[0].mxu0
          %5112 = vmatprep.mubr.bf16.mxu0 0
          %5113 = vmatmul.mubr.bf16.gmra.mrb[0].mxu0 %v5052
          %v5114 = vpop.f32.mrb[0].mxu0
          %v5115 = vadd.f32 0.0, %v5114
          %v5116 = vpop.f32.mrb[0].mxu0
          %v5117 = vpop.f32.mrb[0].mxu0
          %v5118 = vadd.f32 0.0, %v5117
          %v5119 = vpop.f32.mrb[0].mxu0
          %5120 = vmatprep.mubr.bf16.mxu0 0
          %5121 = vmatmul.mubr.bf16.gmra.mrb[0].mxu0 %v5055
          %v5122 = vpop.f32.mrb[0].mxu0
          %v5123 = vadd.f32 0.0, %v5122
          %v5124 = vpop.f32.mrb[0].mxu0
          %v5125 = vpop.f32.mrb[0].mxu0
          %v5126 = vadd.f32 0.0, %v5125
          %v5127 = vpop.f32.mrb[0].mxu0
          %5128 = vmatprep.mubr.bf16.mxu0 0
          %5129 = vmatmul.mubr.bf16.gmra.mrb[0].mxu0 %v5058
          %v5130 = vpop.f32.mrb[0].mxu0
          %v5131 = vadd.f32 0.0, %v5130
          %v5132 = vpop.f32.mrb[0].mxu0
          %v5133 = vpop.f32.mrb[0].mxu0
          %v5134 = vadd.f32 0.0, %v5133
          %v5135 = vpop.f32.mrb[0].mxu0
          %5136 = vmatprep.mubr.bf16.mxu0 0
          %5137 = vmatmul.mubr.bf16.gmra.mrb[0].mxu0 %v5061
          %v5138 = vpop.f32.mrb[0].mxu0
          %v5139 = vadd.f32 0.0, %v5138
          %v5140 = vpop.f32.mrb[0].mxu0
          %v5141 = vpop.f32.mrb[0].mxu0
          %v5142 = vadd.f32 0.0, %v5141
          %v5143 = vpop.f32.mrb[0].mxu0
          %5144 = vmatprep.mubr.bf16.mxu0 0
          %5145 = vmatmul.mubr.bf16.gmra.mrb[0].mxu0 %v5064
          %v5146 = vpop.f32.mrb[0].mxu0
          %v5147 = vadd.f32 0.0, %v5146
          %v5148 = vpop.f32.mrb[0].mxu0
          %v5149 = vpop.f32.mrb[0].mxu0
          %v5150 = vadd.f32 0.0, %v5149
          %v5151 = vpop.f32.mrb[0].mxu0
          %5152 = vmatprep.mubr.bf16.mxu0 0
          %5153 = vmatmul.mubr.bf16.gmra.mrb[0].mxu0 %v5067
          %v5154 = vpop.f32.mrb[0].mxu0
          %v5155 = vadd.f32 0.0, %v5154
          %v5156 = vpop.f32.mrb[0].mxu0
          %v5157 = vpop.f32.mrb[0].mxu0
          %v5158 = vadd.f32 0.0, %v5157
          %v5159 = vpop.f32.mrb[0].mxu0
          %5160 = vmatprep.mubr.bf16.mxu0 0
          %5161 = vmatmul.mubr.bf16.gmra.mrb[0].mxu0 %v5070
          %v5162 = vpop.f32.mrb[0].mxu0
          %v5163 = vadd.f32 0.0, %v5162
          %v5164 = vpop.f32.mrb[0].mxu0
          %v5165 = vpop.f32.mrb[0].mxu0
          %v5166 = vadd.f32 0.0, %v5165
          %v5167 = vpop.f32.mrb[0].mxu0
          %5168 = vdwg.mxu0
          %v5169 = vadd.f32 %v4986, %v5107
          %v5170 = vadd.f32 %v4989, %v5110
          %v5171 = vadd.f32 %v4994, %v5115
          %v5172 = vadd.f32 %v4997, %v5118
          %v5173 = vadd.f32 %v5002, %v5123
          %v5174 = vadd.f32 %v5005, %v5126
          %v5175 = vadd.f32 %v5010, %v5131
          %v5176 = vadd.f32 %v5013, %v5134
          %v5177 = vadd.f32 %v5018, %v5139
          %v5178 = vadd.f32 %v5021, %v5142
          %v5179 = vadd.f32 %v5026, %v5147
          %v5180 = vadd.f32 %v5029, %v5150
          %v5181 = vadd.f32 %v5034, %v5155
          %v5182 = vadd.f32 %v5037, %v5158
          %v5183 = vadd.f32 %v5042, %v5163
          %v5184 = vadd.f32 %v5045, %v5166
          %v5185 = vadd.f32 %v4742, %v5169
          %v5186 = vadd.f32 %v4743, %v5170
          %v5187 = vadd.f32 %v4744, %v5171
          %v5188 = vadd.f32 %v4745, %v5172
          %v5189 = vadd.f32 %v4746, %v5173
          %v5190 = vadd.f32 %v4747, %v5174
          %v5191 = vadd.f32 %v4748, %v5175
          %v5192 = vadd.f32 %v4749, %v5176
          %v5193 = vadd.f32 %v4750, %v5177
          %v5194 = vadd.f32 %v4751, %v5178
          %v5195 = vadd.f32 %v4752, %v5179
          %v5196 = vadd.f32 %v4753, %v5180
          %v5197 = vadd.f32 %v4754, %v5181
          %v5198 = vadd.f32 %v4755, %v5182
          %v5199 = vadd.f32 %v4756, %v5183
          %v5200 = vadd.f32 %v4757, %v5184
          %5201 = vst [vmem:[%s516] sm:$0xff] %v5185
          %5202 = vst [vmem:[%s516 + $0x8] sm:$0xff] %v5186
          %5203 = vst [vmem:[%s516 + $0x10] sm:$0xff] %v5187
          %5204 = vst [vmem:[%s516 + $0x18] sm:$0xff] %v5188
          %5205 = vst [vmem:[%s516 + $0x20] sm:$0xff] %v5189
          %5206 = vst [vmem:[%s516 + $0x28] sm:$0xff] %v5190
          %5207 = vst [vmem:[%s516 + $0x30] sm:$0xff] %v5191
          %5208 = vst [vmem:[%s516 + $0x38] sm:$0xff] %v5192
          %5209 = vst [vmem:[%s516 + $0x40] sm:$0xff] %v5193
          %5210 = vst [vmem:[%s516 + $0x48] sm:$0xff] %v5194
          %5211 = vst [vmem:[%s516 + $0x50] sm:$0xff] %v5195
          %5212 = vst [vmem:[%s516 + $0x58] sm:$0xff] %v5196
          %5213 = vst [vmem:[%s516 + $0x60] sm:$0xff] %v5197
          %5214 = vst [vmem:[%s516 + $0x68] sm:$0xff] %v5198
          %5215 = vst [vmem:[%s516 + $0x70] sm:$0xff] %v5199
          %5216 = vst [vmem:[%s516 + $0x78] sm:$0xff] %v5200
        $region96: #{tpu_custom_call.1} parent=71 // pred_fallthru
          _
        %s5217 = sand.u32 %s350, 1
        %s5218 = scalar_lea.sflag [#allocation7], %s5217
        %s5219 = sand.u32 %s350, 1
        %s5220 = smul.addr %s5219, 128
        %s5221 = scalar_lea.vmem [#allocation6], %s5220
        // Predicated region
        $region97: #{tpu_custom_call.1} parent=71 // pred_check
          %p5222 = pneg %p360
        $region98: #{tpu_custom_call.1} parent=71 // pred_check_branch
          %5224 = sbr.rel (%p5222) target = $region100
        $region99: #{tpu_custom_call.1} parent=71 // pred_region
          %s5225 = smul.u32 16, %s31
          %s5227 = ssub.s32 2048, 2048
          %5228 = vsyncadd %s5218, %s5227
          %s5229 = smul.addr %s5225, 128
          %s5230 = scalar_lea.hbm %s13, %s5229
          %s5231 = sshll.u32 %s5221, 4
          %s5232 = int_to_ptr.vmem [resolvable:$true] %s5231
          %5237 = dma.vmem_to_hbm [thread:$0]  %s5232, 2048, %s5230, %s5218, 128, 128, 8
        $region100: #{tpu_custom_call.1} parent=71 // pred_fallthru
          _
      $region72: #{tpu_custom_call.1} parent=5 // pred_fallthru
        _
      %p5238 = scmp.le.s32.totalorder 2, %s22
      // Predicated region
      $region101: #{tpu_custom_call.1} parent=5 // pred_check
        %p5239 = pneg %p5238
      $region102: #{tpu_custom_call.1} parent=5 // pred_check_branch
        %5241 = sbr.rel (%p5239) target = $region104
      $region103: #{tpu_custom_call.1} parent=5 // pred_region
        %s5242 = ssub.s32 %s22, 2
        // Predicated region
        $region105: #{tpu_custom_call.1} parent=103 // pred_check
          %p5243 = pneg %p366
        $region106: #{tpu_custom_call.1} parent=103 // pred_check_branch
          %5245 = sbr.rel (%p5243) target = $region108
        $region107: #{tpu_custom_call.1} parent=103 // pred_region
          %s5246 = sand.u32 %s351, 1
          %s5247 = scalar_lea.sflag [#allocation7], %s5246
          %s5248 = sand.u32 %s351, 1
          %s5249 = smul.addr %s5248, 128
          %s5250 = scalar_lea.vmem [#allocation6], %s5249
          %5251 = dma.done %s5247, 2048
        $region108: #{tpu_custom_call.1} parent=103 // pred_fallthru
          _
      $region104: #{tpu_custom_call.1} parent=5 // pred_fallthru
        _
    $region6: #{tpu_custom_call.1} parent=1 // loop_footer
      %s26 = sadd.s32 1, %s22
    $region7: #{tpu_custom_call.1} parent=1 // loop_footer_branch
      %21 = sbr.rel target = $region3
    $region8: #{tpu_custom_call.1} parent=1 // loop_exit
      _
    %5252 = vsyncpa [#allocation7], 1
    %s5253 = scalar_lea.sflag [#allocation7], 1
    %5254 = vsyncpa %s5253, 1

</llo_original>
